<compile_context>
chip_gen: v5e
topology: v5e:2x2
jax: 0.10.0
libtpu: 0.0.40
codegen_flags: <defaults>
</compile_context>

<pallas_src>
import functools

import jax
import jax.numpy as jnp
from jax.experimental import pallas as pl
from jax.experimental.pallas import tpu as pltpu


# ----------------------------- Pallas kernel ------------------------------- #

def _conv3x3_bn_relu_kernel(*refs, n_inputs, h, pw, relu):
    """One batch element per grid step, channel-major throughout.

    refs = (x_0, ..., x_{n_inputs-1}, w, scale, shift, out) with
      x_j:   (1, Cin_j, (H+2)*(W+2)+2) f32  zero-padded, row-flattened input
      w:     (Cout_pad, 9*sum(Cin_j))  bf16 columns ordered (input j, tap k, ci)
      scale: (Cout_pad, 1)             f32  folded BN scale
      shift: (Cout_pad, 1)             f32  folded BN shift
      out:   (1, Cout_pad, H*(W+2))    f32  flat over the padded width
    """
    x_refs = refs[:n_inputs]
    w_ref, scale_ref, shift_ref, o_ref = refs[n_inputs:]
    l_out = h * pw

    # Patch matrix (9*sum(Cin), H*(W+2)) from static lane slices of the flat
    # padded input: source index for tap (dy,dx) is out_index + dy*(W+2) + dx.
    pieces = []
    for j in range(n_inputs):
        for dy in range(3):
            for dx in range(3):
                off = dy * pw + dx
                pieces.append(x_refs[j][0, :, off:off + l_out])
    patches = jnp.concatenate(pieces, axis=0).astype(jnp.bfloat16)

    # Single deep-K bf16 MXU matmul, f32 accumulation, lane-dense output.
    acc = jnp.dot(w_ref[...], patches, preferred_element_type=jnp.float32)

    y = acc * scale_ref[...] + shift_ref[...]      # f32 epilogue (v5e-safe)
    if relu:
        y = jnp.maximum(y, 0.0)
    o_ref[0] = y.astype(o_ref.dtype)


def _conv3x3_bn_relu_pallas(xs, w, scale, shift, *, relu):
    """xs: list of NCHW f32 tensors (same N,H,W). w: (3,3,Cin_total,Cout)."""
    n, _, h, wd = xs[0].shape
    ph, pw = h + 2, wd + 2
    flat = ph * pw + 2          # +2 keeps the (dy=2, dx=2) tap slice in bounds
    l_out = h * pw
    cout = w.shape[-1]
    cout_p = -(-cout // 8) * 8  # pad Cout up to a sublane multiple

    # Channel-major, zero-padded, row-flattened activations (1.13x, not 9x).
    xflats = []
    for x in xs:
        cin_j = x.shape[1]
        xp = jnp.pad(x, ((0, 0), (0, 0), (1, 1), (1, 1)))
        xp = xp.reshape(n, cin_j, ph * pw)
        xp = jnp.pad(xp, ((0, 0), (0, 0), (0, 2)))
        xflats.append(xp)

    # Weight matrix (Cout_pad, 9*sum Cin); columns ordered (input j, tap, ci)
    # to match the in-kernel patch construction.
    # NOTE: real PyTorch weights are (Cout, Cin, 3, 3) and must be permuted to
    # (3, 3, Cin, Cout) before this step.
    wmats, off = [], 0
    for x in xs:
        cin_j = x.shape[1]
        wj = w[:, :, off:off + cin_j, :]                               # (3,3,Cin_j,Cout)
        wm = wj.reshape(9, cin_j, cout).transpose(2, 0, 1).reshape(cout, 9 * cin_j)
        wmats.append(wm)
        off += cin_j
    wmat = jnp.concatenate(wmats, axis=1)
    wmat = jnp.pad(wmat, ((0, cout_p - cout), (0, 0))).astype(jnp.bfloat16)

    scale_p = jnp.pad(scale.astype(jnp.float32), (0, cout_p - cout)).reshape(cout_p, 1)
    shift_p = jnp.pad(shift.astype(jnp.float32), (0, cout_p - cout)).reshape(cout_p, 1)

    in_specs = [pl.BlockSpec((1, x.shape[1], flat), lambda b: (b, 0, 0)) for x in xs]
    in_specs += [
        pl.BlockSpec((cout_p, wmat.shape[1]), lambda b: (0, 0)),
        pl.BlockSpec((cout_p, 1), lambda b: (0, 0)),
        pl.BlockSpec((cout_p, 1), lambda b: (0, 0)),
    ]

    kernel = functools.partial(_conv3x3_bn_relu_kernel,
                               n_inputs=len(xs), h=h, pw=pw, relu=relu)

    # TODO(synk): for DRAEM-realistic sizes (base_width=64, 256x256) add an HW
    # row-tile grid axis (manual halo DMA) plus an explicit vmem_limit_bytes so
    # per-step blocks fit v7x's 64 MiB / v5e's 16 MiB scoped VMEM.
    outp = pl.pallas_call(
        kernel,
        out_shape=jax.ShapeDtypeStruct((n, cout_p, l_out), jnp.float32),
        grid_spec=pltpu.PrefetchScalarGridSpec(
            num_scalar_prefetch=0,
            grid=(n,),
            in_specs=in_specs,
            out_specs=pl.BlockSpec((1, cout_p, l_out), lambda b: (b, 0, 0)),
        ),
        compiler_params=pltpu.CompilerParams(
            dimension_semantics=("parallel",)),
    )(*xflats, wmat, scale_p, shift_p)

    # Drop the padded-width columns and the Cout padding.
    return outp.reshape(n, cout_p, h, pw)[:, :cout, :, :wd]


def _conv3x3_bn_relu_xla(xs, w, scale, shift, *, relu):
    """Plain-XLA path for the tiny (<=8x8) scales: Pallas launch overhead
    would dominate there."""
    x = xs[0] if len(xs) == 1 else jnp.concatenate(xs, axis=1)
    y = jax.lax.conv_general_dilated(
        x, w, window_strides=(1, 1), padding=((1, 1), (1, 1)),
        dimension_numbers=("NCHW", "HWIO", "NCHW"))
    y = y * scale.reshape(1, -1, 1, 1) + shift.reshape(1, -1, 1, 1)
    return jnp.maximum(y, 0.0) if relu else y


def conv3x3_bn_relu(xs, w, scale, shift, *, relu=True):
    h, wd = xs[0].shape[2], xs[0].shape[3]
    if h * wd >= 256:   # 16x16 and larger -> Pallas; tiny scales -> XLA
        return _conv3x3_bn_relu_pallas(xs, w, scale, shift, relu=relu)
    return _conv3x3_bn_relu_xla(xs, w, scale, shift, relu=relu)


# ------------------------------ JAX glue ops -------------------------------- #

def _interp_matrix(n_in, n_out):
    """Bilinear interpolation matrix (align_corners=True), shape (n_out, n_in)."""
    if n_in == 1:
        return jnp.ones((n_out, 1), jnp.float32)
    src = jnp.arange(n_out, dtype=jnp.float32) * (n_in - 1) / (n_out - 1)
    lo = jnp.clip(jnp.floor(src).astype(jnp.int32), 0, n_in - 2)
    frac = src - lo.astype(jnp.float32)
    m = jnp.zeros((n_out, n_in), jnp.float32)
    m = m.at[jnp.arange(n_out), lo].add(1.0 - frac)
    m = m.at[jnp.arange(n_out), lo + 1].add(frac)
    return m


def upsample2x_bilinear(x):
    """nn.Upsample(scale_factor=2, mode='bilinear', align_corners=True), NCHW."""
    n, c, h, w = x.shape
    mh = _interp_matrix(h, 2 * h)
    mw = _interp_matrix(w, 2 * w)
    y = jnp.einsum("oh,nchw->ncow", mh, x)
    y = jnp.einsum("pw,ncow->ncop", mw, y)
    return y


# --------------------------- parameter construction ------------------------- #

def _init_conv(key, cin, cout):
    kw_, kb_ = jax.random.split(key)
    w = jax.random.normal(kw_, (3, 3, cin, cout), jnp.float32) * (0.1 / (cin ** 0.5))
    b = jax.random.normal(kb_, (cout,), jnp.float32) * 0.05
    return w, b


def _init_bn(key, c):
    kg, kb, km, kv = jax.random.split(key, 4)
    gamma = 1.0 + 0.1 * jax.random.normal(kg, (c,), jnp.float32)
    beta = 0.05 * jax.random.normal(kb, (c,), jnp.float32)
    mean = 0.05 * jax.random.normal(km, (c,), jnp.float32)
    var = 1.0 + 0.1 * jax.random.uniform(kv, (c,), jnp.float32)
    return gamma, beta, mean, var


def _fold_bn(bias, gamma, beta, mean, var, eps=1e-5):
    # Eval-mode BatchNorm folded into the conv epilogue:
    # y = gamma*(conv(x)+bias - mean)/sqrt(var+eps) + beta = conv(x)*scale + shift
    scale = gamma / jnp.sqrt(var + eps)
    shift = (bias - mean) * scale + beta
    return scale, shift


def make_params(key, base_width, out_channels=1):
    bw = base_width
    layer_defs = [
        ("up_b",  8 * bw, 8 * bw, True),
        ("db_b1", 16 * bw, 8 * bw, True),
        ("db_b2", 8 * bw, 8 * bw, True),
        ("up1",   8 * bw, 4 * bw, True),
        ("db1_1", 12 * bw, 4 * bw, True),
        ("db1_2", 4 * bw, 4 * bw, True),
        ("up2",   4 * bw, 2 * bw, True),
        ("db2_1", 6 * bw, 2 * bw, True),
        ("db2_2", 2 * bw, 2 * bw, True),
        ("up3",   2 * bw, 1 * bw, True),
        ("db3_1", 3 * bw, 1 * bw, True),
        ("db3_2", 1 * bw, 1 * bw, True),
        ("up4",   1 * bw, 1 * bw, True),
        ("db4_1", 2 * bw, 1 * bw, True),
        ("db4_2", 1 * bw, 1 * bw, True),
        ("fin",   1 * bw, out_channels, False),
    ]
    params = {}
    keys = jax.random.split(key, len(layer_defs))
    for k, (name, cin, cout, has_bn) in zip(keys, layer_defs):
        kc, kbn = jax.random.split(k)
        w, b = _init_conv(kc, cin, cout)
        if has_bn:
            gamma, beta, mean, var = _init_bn(kbn, cout)
            scale, shift = _fold_bn(b, gamma, beta, mean, var)
        else:
            scale, shift = jnp.ones((cout,), jnp.float32), b
        params[name] = {"w": w, "scale": scale, "shift": shift}
    return params


# ------------------------------- forward pass ------------------------------- #

def decoder_forward(params, b1, b2, b3, b4, b5, b6):
    """All b* are NCHW float32. Mirrors DecoderDiscriminative.forward exactly
    (eval-mode BatchNorm with running statistics)."""

    def cbr(xs, name, relu=True):
        p = params[name]
        return conv3x3_bn_relu(xs, p["w"], p["scale"], p["shift"], relu=relu)

    # db*_1 layers receive both tensors -> the channel concat never hits HBM.
    up_b = cbr([upsample2x_bilinear(b6)], "up_b")
    db_b = cbr([cbr([up_b, b5], "db_b1")], "db_b2")

    up1 = cbr([upsample2x_bilinear(db_b)], "up1")
    db1 = cbr([cbr([up1, b4], "db1_1")], "db1_2")

    up2 = cbr([upsample2x_bilinear(db1)], "up2")
    db2 = cbr([cbr([up2, b3], "db2_1")], "db2_2")

    up3 = cbr([upsample2x_bilinear(db2)], "up3")
    db3 = cbr([cbr([up3, b2], "db3_1")], "db3_2")

    up4 = cbr([upsample2x_bilinear(db3)], "up4")
    db4 = cbr([cbr([up4, b1], "db4_1")], "db4_2")

    out = cbr([db4], "fin", relu=False)   # final conv: bias only, no BN/ReLU
    return out


# ----------------------------------- main ----------------------------------- #

if __name__ == "__main__":
    base_width = 8
    out_channels = 1
    N = 2

    key = jax.random.PRNGKey(0)
    kp, k1, k2, k3, k4, k5, k6 = jax.random.split(key, 7)

    # Encoder features in PyTorch NCHW convention (largest b1 -> smallest b6).
    b1 = jax.random.normal(k1, (N, 1 * base_width, 32, 32), jnp.float32)
    b2 = jax.random.normal(k2, (N, 2 * base_width, 16, 16), jnp.float32)
    b3 = jax.random.normal(k3, (N, 4 * base_width, 8, 8), jnp.float32)
    b4 = jax.random.normal(k4, (N, 8 * base_width, 4, 4), jnp.float32)
    b5 = jax.random.normal(k5, (N, 8 * base_width, 2, 2), jnp.float32)
    b6 = jax.random.normal(k6, (N, 8 * base_width, 1, 1), jnp.float32)

    params = make_params(kp, base_width, out_channels)

    fwd = jax.jit(decoder_forward)
    out = fwd(params, b1, b2, b3, b4, b5, b6)
    jax.block_until_ready(out)

    assert out.shape == (N, out_channels, 32, 32), out.shape
    print("KERNEL_OK")
</pallas_src>

<mosaic_0001>
module attributes {stable_mosaic.version = 11 : i64} {
  func.func @_conv3x3_bn_relu_kernel(%arg0: i32, %arg1: memref<1x16x326xf32, #tpu.memory_space<vmem>>, %arg2: memref<8x144xbf16, #tpu.memory_space<vmem>>, %arg3: memref<8x1xf32, #tpu.memory_space<vmem>>, %arg4: memref<8x1xf32, #tpu.memory_space<vmem>>, %arg5: memref<1x8x288xf32, #tpu.memory_space<vmem>>) attributes {dimension_semantics = [#tpu.dimension_semantics<parallel>], iteration_bounds = array<i64: 2>, scalar_prefetch = 0 : i64, scratch_operands = 0 : i64, tpu.core_type = #tpu.core_type<tc>, window_params = [{transform_indices = @transform_0, window_bounds = array<i64: 1, 16, 326>}, {pipeline_mode = #tpu.pipeline_mode<synchronous>, transform_indices = @transform_1, window_bounds = array<i64: 8, 144>}, {pipeline_mode = #tpu.pipeline_mode<synchronous>, transform_indices = @transform_2, window_bounds = array<i64: 8, 1>}, {pipeline_mode = #tpu.pipeline_mode<synchronous>, transform_indices = @transform_3, window_bounds = array<i64: 8, 1>}, {transform_indices = @transform_4, window_bounds = array<i64: 1, 8, 288>}]} {
    %c0 = arith.constant 0 : index
    %c0_0 = arith.constant 0 : index
    %c0_1 = arith.constant 0 : index
    %0 = vector.load %arg1[%c0, %c0_0, %c0_1] : memref<1x16x326xf32, #tpu.memory_space<vmem>>, vector<1x16x288xf32>
    %1 = vector.shape_cast %0 : vector<1x16x288xf32> to vector<16x288xf32>
    %c0_2 = arith.constant 0 : index
    %c0_3 = arith.constant 0 : index
    %c1 = arith.constant 1 : index
    %2 = vector.load %arg1[%c0_2, %c0_3, %c1] : memref<1x16x326xf32, #tpu.memory_space<vmem>>, vector<1x16x288xf32>
    %3 = vector.shape_cast %2 : vector<1x16x288xf32> to vector<16x288xf32>
    %c0_4 = arith.constant 0 : index
    %c0_5 = arith.constant 0 : index
    %c2 = arith.constant 2 : index
    %4 = vector.load %arg1[%c0_4, %c0_5, %c2] : memref<1x16x326xf32, #tpu.memory_space<vmem>>, vector<1x16x288xf32>
    %5 = vector.shape_cast %4 : vector<1x16x288xf32> to vector<16x288xf32>
    %c0_6 = arith.constant 0 : index
    %c0_7 = arith.constant 0 : index
    %c18 = arith.constant 18 : index
    %6 = vector.load %arg1[%c0_6, %c0_7, %c18] : memref<1x16x326xf32, #tpu.memory_space<vmem>>, vector<1x16x288xf32>
    %7 = vector.shape_cast %6 : vector<1x16x288xf32> to vector<16x288xf32>
    %c0_8 = arith.constant 0 : index
    %c0_9 = arith.constant 0 : index
    %c19 = arith.constant 19 : index
    %8 = vector.load %arg1[%c0_8, %c0_9, %c19] : memref<1x16x326xf32, #tpu.memory_space<vmem>>, vector<1x16x288xf32>
    %9 = vector.shape_cast %8 : vector<1x16x288xf32> to vector<16x288xf32>
    %c0_10 = arith.constant 0 : index
    %c0_11 = arith.constant 0 : index
    %c20 = arith.constant 20 : index
    %10 = vector.load %arg1[%c0_10, %c0_11, %c20] : memref<1x16x326xf32, #tpu.memory_space<vmem>>, vector<1x16x288xf32>
    %11 = vector.shape_cast %10 : vector<1x16x288xf32> to vector<16x288xf32>
    %c0_12 = arith.constant 0 : index
    %c0_13 = arith.constant 0 : index
    %c36 = arith.constant 36 : index
    %12 = vector.load %arg1[%c0_12, %c0_13, %c36] : memref<1x16x326xf32, #tpu.memory_space<vmem>>, vector<1x16x288xf32>
    %13 = vector.shape_cast %12 : vector<1x16x288xf32> to vector<16x288xf32>
    %c0_14 = arith.constant 0 : index
    %c0_15 = arith.constant 0 : index
    %c37 = arith.constant 37 : index
    %14 = vector.load %arg1[%c0_14, %c0_15, %c37] : memref<1x16x326xf32, #tpu.memory_space<vmem>>, vector<1x16x288xf32>
    %15 = vector.shape_cast %14 : vector<1x16x288xf32> to vector<16x288xf32>
    %c0_16 = arith.constant 0 : index
    %c0_17 = arith.constant 0 : index
    %c38 = arith.constant 38 : index
    %16 = vector.load %arg1[%c0_16, %c0_17, %c38] : memref<1x16x326xf32, #tpu.memory_space<vmem>>, vector<1x16x288xf32>
    %17 = vector.shape_cast %16 : vector<1x16x288xf32> to vector<16x288xf32>
    %18 = tpu.concatenate %1, %3, %5, %7, %9, %11, %13, %15, %17 in 0 : vector<16x288xf32>, vector<16x288xf32>, vector<16x288xf32>, vector<16x288xf32>, vector<16x288xf32>, vector<16x288xf32>, vector<16x288xf32>, vector<16x288xf32>, vector<16x288xf32> -> vector<144x288xf32>
    %19 = arith.truncf %18 : vector<144x288xf32> to vector<144x288xbf16>
    %c0_18 = arith.constant 0 : index
    %c0_19 = arith.constant 0 : index
    %20 = vector.load %arg2[%c0_18, %c0_19] : memref<8x144xbf16, #tpu.memory_space<vmem>>, vector<8x144xbf16>
    %cst = arith.constant dense<0.000000e+00> : vector<8x288xf32>
    %21 = tpu.matmul %20, %19, %cst {dimension_numbers = #tpu.dot_dimension_numbers<[1], [0], [0], [1], [0, 0, 1, 1], [], []>} : vector<8x144xbf16>, vector<144x288xbf16>, vector<8x288xf32> -> vector<8x288xf32>
    %c0_20 = arith.constant 0 : index
    %c0_21 = arith.constant 0 : index
    %22 = vector.load %arg3[%c0_20, %c0_21] : memref<8x1xf32, #tpu.memory_space<vmem>>, vector<8x1xf32>
    %23 = vector.broadcast %22 : vector<8x1xf32> to vector<8x288xf32>
    %24 = arith.mulf %21, %23 : vector<8x288xf32>
    %c0_22 = arith.constant 0 : index
    %c0_23 = arith.constant 0 : index
    %25 = vector.load %arg4[%c0_22, %c0_23] : memref<8x1xf32, #tpu.memory_space<vmem>>, vector<8x1xf32>
    %26 = vector.broadcast %25 : vector<8x1xf32> to vector<8x288xf32>
    %27 = arith.addf %24, %26 : vector<8x288xf32>
    %cst_24 = arith.constant 0.000000e+00 : f32
    %28 = vector.broadcast %cst_24 : f32 to vector<8x288xf32>
    %29 = arith.maximumf %27, %28 : vector<8x288xf32>
    %c0_25 = arith.constant 0 : index
    %c0_26 = arith.constant 0 : index
    %c0_27 = arith.constant 0 : index
    %30 = vector.load %arg5[%c0_25, %c0_26, %c0_27] : memref<1x8x288xf32, #tpu.memory_space<vmem>>, vector<1x8x288xf32>
    %31 = vector.shape_cast %30 : vector<1x8x288xf32> to vector<8x288xf32>
    %32 = vector.shape_cast %29 : vector<8x288xf32> to vector<1x8x288xf32>
    tpu.vector_store %arg5[%c0_25, %c0_26, %c0_27], %32 {strides = array<i32>} : memref<1x8x288xf32, #tpu.memory_space<vmem>>, vector<1x8x288xf32>,
    return
  }
  func.func @transform_0(%arg0: i32) -> (i32, i32, i32) {
    %c0_i32 = arith.constant 0 : i32
    %c0_i32_0 = arith.constant 0 : i32
    %c0_i32_1 = arith.constant 0 : i32
    return %arg0, %c0_i32, %c0_i32_0 : i32, i32, i32
  }
  func.func @transform_1(%arg0: i32) -> (i32, i32) {
    %c0_i32 = arith.constant 0 : i32
    %c0_i32_0 = arith.constant 0 : i32
    %c0_i32_1 = arith.constant 0 : i32
    return %c0_i32, %c0_i32_0 : i32, i32
  }
  func.func @transform_2(%arg0: i32) -> (i32, i32) {
    %c0_i32 = arith.constant 0 : i32
    %c0_i32_0 = arith.constant 0 : i32
    %c0_i32_1 = arith.constant 0 : i32
    return %c0_i32, %c0_i32_0 : i32, i32
  }
  func.func @transform_3(%arg0: i32) -> (i32, i32) {
    %c0_i32 = arith.constant 0 : i32
    %c0_i32_0 = arith.constant 0 : i32
    %c0_i32_1 = arith.constant 0 : i32
    return %c0_i32, %c0_i32_0 : i32, i32
  }
  func.func @transform_4(%arg0: i32) -> (i32, i32, i32) {
    %c0_i32 = arith.constant 0 : i32
    %c0_i32_0 = arith.constant 0 : i32
    %c0_i32_1 = arith.constant 0 : i32
    return %arg0, %c0_i32, %c0_i32_0 : i32, i32, i32
  }
}

module attributes {stable_mosaic.version = 11 : i64} {
  func.func @_conv3x3_bn_relu_kernel(%arg0: i32, %arg1: memref<1x8x326xf32, #tpu.memory_space<vmem>>, %arg2: memref<1x16x326xf32, #tpu.memory_space<vmem>>, %arg3: memref<8x216xbf16, #tpu.memory_space<vmem>>, %arg4: memref<8x1xf32, #tpu.memory_space<vmem>>, %arg5: memref<8x1xf32, #tpu.memory_space<vmem>>, %arg6: memref<1x8x288xf32, #tpu.memory_space<vmem>>) attributes {dimension_semantics = [#tpu.dimension_semantics<parallel>], iteration_bounds = array<i64: 2>, scalar_prefetch = 0 : i64, scratch_operands = 0 : i64, tpu.core_type = #tpu.core_type<tc>, window_params = [{transform_indices = @transform_0, window_bounds = array<i64: 1, 8, 326>}, {transform_indices = @transform_1, window_bounds = array<i64: 1, 16, 326>}, {pipeline_mode = #tpu.pipeline_mode<synchronous>, transform_indices = @transform_2, window_bounds = array<i64: 8, 216>}, {pipeline_mode = #tpu.pipeline_mode<synchronous>, transform_indices = @transform_3, window_bounds = array<i64: 8, 1>}, {pipeline_mode = #tpu.pipeline_mode<synchronous>, transform_indices = @transform_4, window_bounds = array<i64: 8, 1>}, {transform_indices = @transform_5, window_bounds = array<i64: 1, 8, 288>}]} {
    %c0 = arith.constant 0 : index
    %c0_0 = arith.constant 0 : index
    %c0_1 = arith.constant 0 : index
    %0 = vector.load %arg1[%c0, %c0_0, %c0_1] : memref<1x8x326xf32, #tpu.memory_space<vmem>>, vector<1x8x288xf32>
    %1 = vector.shape_cast %0 : vector<1x8x288xf32> to vector<8x288xf32>
    %c0_2 = arith.constant 0 : index
    %c0_3 = arith.constant 0 : index
    %c1 = arith.constant 1 : index
    %2 = vector.load %arg1[%c0_2, %c0_3, %c1] : memref<1x8x326xf32, #tpu.memory_space<vmem>>, vector<1x8x288xf32>
    %3 = vector.shape_cast %2 : vector<1x8x288xf32> to vector<8x288xf32>
    %c0_4 = arith.constant 0 : index
    %c0_5 = arith.constant 0 : index
    %c2 = arith.constant 2 : index
    %4 = vector.load %arg1[%c0_4, %c0_5, %c2] : memref<1x8x326xf32, #tpu.memory_space<vmem>>, vector<1x8x288xf32>
    %5 = vector.shape_cast %4 : vector<1x8x288xf32> to vector<8x288xf32>
    %c0_6 = arith.constant 0 : index
    %c0_7 = arith.constant 0 : index
    %c18 = arith.constant 18 : index
    %6 = vector.load %arg1[%c0_6, %c0_7, %c18] : memref<1x8x326xf32, #tpu.memory_space<vmem>>, vector<1x8x288xf32>
    %7 = vector.shape_cast %6 : vector<1x8x288xf32> to vector<8x288xf32>
    %c0_8 = arith.constant 0 : index
    %c0_9 = arith.constant 0 : index
    %c19 = arith.constant 19 : index
    %8 = vector.load %arg1[%c0_8, %c0_9, %c19] : memref<1x8x326xf32, #tpu.memory_space<vmem>>, vector<1x8x288xf32>
    %9 = vector.shape_cast %8 : vector<1x8x288xf32> to vector<8x288xf32>
    %c0_10 = arith.constant 0 : index
    %c0_11 = arith.constant 0 : index
    %c20 = arith.constant 20 : index
    %10 = vector.load %arg1[%c0_10, %c0_11, %c20] : memref<1x8x326xf32, #tpu.memory_space<vmem>>, vector<1x8x288xf32>
    %11 = vector.shape_cast %10 : vector<1x8x288xf32> to vector<8x288xf32>
    %c0_12 = arith.constant 0 : index
    %c0_13 = arith.constant 0 : index
    %c36 = arith.constant 36 : index
    %12 = vector.load %arg1[%c0_12, %c0_13, %c36] : memref<1x8x326xf32, #tpu.memory_space<vmem>>, vector<1x8x288xf32>
    %13 = vector.shape_cast %12 : vector<1x8x288xf32> to vector<8x288xf32>
    %c0_14 = arith.constant 0 : index
    %c0_15 = arith.constant 0 : index
    %c37 = arith.constant 37 : index
    %14 = vector.load %arg1[%c0_14, %c0_15, %c37] : memref<1x8x326xf32, #tpu.memory_space<vmem>>, vector<1x8x288xf32>
    %15 = vector.shape_cast %14 : vector<1x8x288xf32> to vector<8x288xf32>
    %c0_16 = arith.constant 0 : index
    %c0_17 = arith.constant 0 : index
    %c38 = arith.constant 38 : index
    %16 = vector.load %arg1[%c0_16, %c0_17, %c38] : memref<1x8x326xf32, #tpu.memory_space<vmem>>, vector<1x8x288xf32>
    %17 = vector.shape_cast %16 : vector<1x8x288xf32> to vector<8x288xf32>
    %c0_18 = arith.constant 0 : index
    %c0_19 = arith.constant 0 : index
    %c0_20 = arith.constant 0 : index
    %18 = vector.load %arg2[%c0_18, %c0_19, %c0_20] : memref<1x16x326xf32, #tpu.memory_space<vmem>>, vector<1x16x288xf32>
    %19 = vector.shape_cast %18 : vector<1x16x288xf32> to vector<16x288xf32>
    %c0_21 = arith.constant 0 : index
    %c0_22 = arith.constant 0 : index
    %c1_23 = arith.constant 1 : index
    %20 = vector.load %arg2[%c0_21, %c0_22, %c1_23] : memref<1x16x326xf32, #tpu.memory_space<vmem>>, vector<1x16x288xf32>
    %21 = vector.shape_cast %20 : vector<1x16x288xf32> to vector<16x288xf32>
    %c0_24 = arith.constant 0 : index
    %c0_25 = arith.constant 0 : index
    %c2_26 = arith.constant 2 : index
    %22 = vector.load %arg2[%c0_24, %c0_25, %c2_26] : memref<1x16x326xf32, #tpu.memory_space<vmem>>, vector<1x16x288xf32>
    %23 = vector.shape_cast %22 : vector<1x16x288xf32> to vector<16x288xf32>
    %c0_27 = arith.constant 0 : index
    %c0_28 = arith.constant 0 : index
    %c18_29 = arith.constant 18 : index
    %24 = vector.load %arg2[%c0_27, %c0_28, %c18_29] : memref<1x16x326xf32, #tpu.memory_space<vmem>>, vector<1x16x288xf32>
    %25 = vector.shape_cast %24 : vector<1x16x288xf32> to vector<16x288xf32>
    %c0_30 = arith.constant 0 : index
    %c0_31 = arith.constant 0 : index
    %c19_32 = arith.constant 19 : index
    %26 = vector.load %arg2[%c0_30, %c0_31, %c19_32] : memref<1x16x326xf32, #tpu.memory_space<vmem>>, vector<1x16x288xf32>
    %27 = vector.shape_cast %26 : vector<1x16x288xf32> to vector<16x288xf32>
    %c0_33 = arith.constant 0 : index
    %c0_34 = arith.constant 0 : index
    %c20_35 = arith.constant 20 : index
    %28 = vector.load %arg2[%c0_33, %c0_34, %c20_35] : memref<1x16x326xf32, #tpu.memory_space<vmem>>, vector<1x16x288xf32>
    %29 = vector.shape_cast %28 : vector<1x16x288xf32> to vector<16x288xf32>
    %c0_36 = arith.constant 0 : index
    %c0_37 = arith.constant 0 : index
    %c36_38 = arith.constant 36 : index
    %30 = vector.load %arg2[%c0_36, %c0_37, %c36_38] : memref<1x16x326xf32, #tpu.memory_space<vmem>>, vector<1x16x288xf32>
    %31 = vector.shape_cast %30 : vector<1x16x288xf32> to vector<16x288xf32>
    %c0_39 = arith.constant 0 : index
    %c0_40 = arith.constant 0 : index
    %c37_41 = arith.constant 37 : index
    %32 = vector.load %arg2[%c0_39, %c0_40, %c37_41] : memref<1x16x326xf32, #tpu.memory_space<vmem>>, vector<1x16x288xf32>
    %33 = vector.shape_cast %32 : vector<1x16x288xf32> to vector<16x288xf32>
    %c0_42 = arith.constant 0 : index
    %c0_43 = arith.constant 0 : index
    %c38_44 = arith.constant 38 : index
    %34 = vector.load %arg2[%c0_42, %c0_43, %c38_44] : memref<1x16x326xf32, #tpu.memory_space<vmem>>, vector<1x16x288xf32>
    %35 = vector.shape_cast %34 : vector<1x16x288xf32> to vector<16x288xf32>
    %36 = tpu.concatenate %1, %3, %5, %7, %9, %11, %13, %15, %17, %19, %21, %23, %25, %27, %29, %31 in 0 : vector<8x288xf32>, vector<8x288xf32>, vector<8x288xf32>, vector<8x288xf32>, vector<8x288xf32>, vector<8x288xf32>, vector<8x288xf32>, vector<8x288xf32>, vector<8x288xf32>, vector<16x288xf32>, vector<16x288xf32>, vector<16x288xf32>, vector<16x288xf32>, vector<16x288xf32>, vector<16x288xf32>, vector<16x288xf32> -> vector<184x288xf32>
    %37 = tpu.concatenate %33, %35 in 0 : vector<16x288xf32>, vector<16x288xf32> -> vector<32x288xf32>
    %38 = tpu.concatenate %36, %37 in 0 : vector<184x288xf32>, vector<32x288xf32> -> vector<216x288xf32>
    %39 = arith.truncf %38 : vector<216x288xf32> to vector<216x288xbf16>
    %c0_45 = arith.constant 0 : index
    %c0_46 = arith.constant 0 : index
    %40 = vector.load %arg3[%c0_45, %c0_46] : memref<8x216xbf16, #tpu.memory_space<vmem>>, vector<8x216xbf16>
    %cst = arith.constant dense<0.000000e+00> : vector<8x288xf32>
    %41 = tpu.matmul %40, %39, %cst {dimension_numbers = #tpu.dot_dimension_numbers<[1], [0], [0], [1], [0, 0, 1, 1], [], []>} : vector<8x216xbf16>, vector<216x288xbf16>, vector<8x288xf32> -> vector<8x288xf32>
    %c0_47 = arith.constant 0 : index
    %c0_48 = arith.constant 0 : index
    %42 = vector.load %arg4[%c0_47, %c0_48] : memref<8x1xf32, #tpu.memory_space<vmem>>, vector<8x1xf32>
    %43 = vector.broadcast %42 : vector<8x1xf32> to vector<8x288xf32>
    %44 = arith.mulf %41, %43 : vector<8x288xf32>
    %c0_49 = arith.constant 0 : index
    %c0_50 = arith.constant 0 : index
    %45 = vector.load %arg5[%c0_49, %c0_50] : memref<8x1xf32, #tpu.memory_space<vmem>>, vector<8x1xf32>
    %46 = vector.broadcast %45 : vector<8x1xf32> to vector<8x288xf32>
    %47 = arith.addf %44, %46 : vector<8x288xf32>
    %cst_51 = arith.constant 0.000000e+00 : f32
    %48 = vector.broadcast %cst_51 : f32 to vector<8x288xf32>
    %49 = arith.maximumf %47, %48 : vector<8x288xf32>
    %c0_52 = arith.constant 0 : index
    %c0_53 = arith.constant 0 : index
    %c0_54 = arith.constant 0 : index
    %50 = vector.load %arg6[%c0_52, %c0_53, %c0_54] : memref<1x8x288xf32, #tpu.memory_space<vmem>>, vector<1x8x288xf32>
    %51 = vector.shape_cast %50 : vector<1x8x288xf32> to vector<8x288xf32>
    %52 = vector.shape_cast %49 : vector<8x288xf32> to vector<1x8x288xf32>
    tpu.vector_store %arg6[%c0_52, %c0_53, %c0_54], %52 {strides = array<i32>} : memref<1x8x288xf32, #tpu.memory_space<vmem>>, vector<1x8x288xf32>,
    return
  }
  func.func @transform_0(%arg0: i32) -> (i32, i32, i32) {
    %c0_i32 = arith.constant 0 : i32
    %c0_i32_0 = arith.constant 0 : i32
    %c0_i32_1 = arith.constant 0 : i32
    return %arg0, %c0_i32, %c0_i32_0 : i32, i32, i32
  }
  func.func @transform_1(%arg0: i32) -> (i32, i32, i32) {
    %c0_i32 = arith.constant 0 : i32
    %c0_i32_0 = arith.constant 0 : i32
    %c0_i32_1 = arith.constant 0 : i32
    return %arg0, %c0_i32, %c0_i32_0 : i32, i32, i32
  }
  func.func @transform_2(%arg0: i32) -> (i32, i32) {
    %c0_i32 = arith.constant 0 : i32
    %c0_i32_0 = arith.constant 0 : i32
    %c0_i32_1 = arith.constant 0 : i32
    return %c0_i32, %c0_i32_0 : i32, i32
  }
  func.func @transform_3(%arg0: i32) -> (i32, i32) {
    %c0_i32 = arith.constant 0 : i32
    %c0_i32_0 = arith.constant 0 : i32
    %c0_i32_1 = arith.constant 0 : i32
    return %c0_i32, %c0_i32_0 : i32, i32
  }
  func.func @transform_4(%arg0: i32) -> (i32, i32) {
    %c0_i32 = arith.constant 0 : i32
    %c0_i32_0 = arith.constant 0 : i32
    %c0_i32_1 = arith.constant 0 : i32
    return %c0_i32, %c0_i32_0 : i32, i32
  }
  func.func @transform_5(%arg0: i32) -> (i32, i32, i32) {
    %c0_i32 = arith.constant 0 : i32
    %c0_i32_0 = arith.constant 0 : i32
    %c0_i32_1 = arith.constant 0 : i32
    return %arg0, %c0_i32, %c0_i32_0 : i32, i32, i32
  }
}

module attributes {stable_mosaic.version = 11 : i64} {
  func.func @_conv3x3_bn_relu_kernel(%arg0: i32, %arg1: memref<1x8x326xf32, #tpu.memory_space<vmem>>, %arg2: memref<8x72xbf16, #tpu.memory_space<vmem>>, %arg3: memref<8x1xf32, #tpu.memory_space<vmem>>, %arg4: memref<8x1xf32, #tpu.memory_space<vmem>>, %arg5: memref<1x8x288xf32, #tpu.memory_space<vmem>>) attributes {dimension_semantics = [#tpu.dimension_semantics<parallel>], iteration_bounds = array<i64: 2>, scalar_prefetch = 0 : i64, scratch_operands = 0 : i64, tpu.core_type = #tpu.core_type<tc>, window_params = [{transform_indices = @transform_0, window_bounds = array<i64: 1, 8, 326>}, {pipeline_mode = #tpu.pipeline_mode<synchronous>, transform_indices = @transform_1, window_bounds = array<i64: 8, 72>}, {pipeline_mode = #tpu.pipeline_mode<synchronous>, transform_indices = @transform_2, window_bounds = array<i64: 8, 1>}, {pipeline_mode = #tpu.pipeline_mode<synchronous>, transform_indices = @transform_3, window_bounds = array<i64: 8, 1>}, {transform_indices = @transform_4, window_bounds = array<i64: 1, 8, 288>}]} {
    %c0 = arith.constant 0 : index
    %c0_0 = arith.constant 0 : index
    %c0_1 = arith.constant 0 : index
    %0 = vector.load %arg1[%c0, %c0_0, %c0_1] : memref<1x8x326xf32, #tpu.memory_space<vmem>>, vector<1x8x288xf32>
    %1 = vector.shape_cast %0 : vector<1x8x288xf32> to vector<8x288xf32>
    %c0_2 = arith.constant 0 : index
    %c0_3 = arith.constant 0 : index
    %c1 = arith.constant 1 : index
    %2 = vector.load %arg1[%c0_2, %c0_3, %c1] : memref<1x8x326xf32, #tpu.memory_space<vmem>>, vector<1x8x288xf32>
    %3 = vector.shape_cast %2 : vector<1x8x288xf32> to vector<8x288xf32>
    %c0_4 = arith.constant 0 : index
    %c0_5 = arith.constant 0 : index
    %c2 = arith.constant 2 : index
    %4 = vector.load %arg1[%c0_4, %c0_5, %c2] : memref<1x8x326xf32, #tpu.memory_space<vmem>>, vector<1x8x288xf32>
    %5 = vector.shape_cast %4 : vector<1x8x288xf32> to vector<8x288xf32>
    %c0_6 = arith.constant 0 : index
    %c0_7 = arith.constant 0 : index
    %c18 = arith.constant 18 : index
    %6 = vector.load %arg1[%c0_6, %c0_7, %c18] : memref<1x8x326xf32, #tpu.memory_space<vmem>>, vector<1x8x288xf32>
    %7 = vector.shape_cast %6 : vector<1x8x288xf32> to vector<8x288xf32>
    %c0_8 = arith.constant 0 : index
    %c0_9 = arith.constant 0 : index
    %c19 = arith.constant 19 : index
    %8 = vector.load %arg1[%c0_8, %c0_9, %c19] : memref<1x8x326xf32, #tpu.memory_space<vmem>>, vector<1x8x288xf32>
    %9 = vector.shape_cast %8 : vector<1x8x288xf32> to vector<8x288xf32>
    %c0_10 = arith.constant 0 : index
    %c0_11 = arith.constant 0 : index
    %c20 = arith.constant 20 : index
    %10 = vector.load %arg1[%c0_10, %c0_11, %c20] : memref<1x8x326xf32, #tpu.memory_space<vmem>>, vector<1x8x288xf32>
    %11 = vector.shape_cast %10 : vector<1x8x288xf32> to vector<8x288xf32>
    %c0_12 = arith.constant 0 : index
    %c0_13 = arith.constant 0 : index
    %c36 = arith.constant 36 : index
    %12 = vector.load %arg1[%c0_12, %c0_13, %c36] : memref<1x8x326xf32, #tpu.memory_space<vmem>>, vector<1x8x288xf32>
    %13 = vector.shape_cast %12 : vector<1x8x288xf32> to vector<8x288xf32>
    %c0_14 = arith.constant 0 : index
    %c0_15 = arith.constant 0 : index
    %c37 = arith.constant 37 : index
    %14 = vector.load %arg1[%c0_14, %c0_15, %c37] : memref<1x8x326xf32, #tpu.memory_space<vmem>>, vector<1x8x288xf32>
    %15 = vector.shape_cast %14 : vector<1x8x288xf32> to vector<8x288xf32>
    %c0_16 = arith.constant 0 : index
    %c0_17 = arith.constant 0 : index
    %c38 = arith.constant 38 : index
    %16 = vector.load %arg1[%c0_16, %c0_17, %c38] : memref<1x8x326xf32, #tpu.memory_space<vmem>>, vector<1x8x288xf32>
    %17 = vector.shape_cast %16 : vector<1x8x288xf32> to vector<8x288xf32>
    %18 = tpu.concatenate %1, %3, %5, %7, %9, %11, %13, %15, %17 in 0 : vector<8x288xf32>, vector<8x288xf32>, vector<8x288xf32>, vector<8x288xf32>, vector<8x288xf32>, vector<8x288xf32>, vector<8x288xf32>, vector<8x288xf32>, vector<8x288xf32> -> vector<72x288xf32>
    %19 = arith.truncf %18 : vector<72x288xf32> to vector<72x288xbf16>
    %c0_18 = arith.constant 0 : index
    %c0_19 = arith.constant 0 : index
    %20 = vector.load %arg2[%c0_18, %c0_19] : memref<8x72xbf16, #tpu.memory_space<vmem>>, vector<8x72xbf16>
    %cst = arith.constant dense<0.000000e+00> : vector<8x288xf32>
    %21 = tpu.matmul %20, %19, %cst {dimension_numbers = #tpu.dot_dimension_numbers<[1], [0], [0], [1], [0, 0, 1, 1], [], []>} : vector<8x72xbf16>, vector<72x288xbf16>, vector<8x288xf32> -> vector<8x288xf32>
    %c0_20 = arith.constant 0 : index
    %c0_21 = arith.constant 0 : index
    %22 = vector.load %arg3[%c0_20, %c0_21] : memref<8x1xf32, #tpu.memory_space<vmem>>, vector<8x1xf32>
    %23 = vector.broadcast %22 : vector<8x1xf32> to vector<8x288xf32>
    %24 = arith.mulf %21, %23 : vector<8x288xf32>
    %c0_22 = arith.constant 0 : index
    %c0_23 = arith.constant 0 : index
    %25 = vector.load %arg4[%c0_22, %c0_23] : memref<8x1xf32, #tpu.memory_space<vmem>>, vector<8x1xf32>
    %26 = vector.broadcast %25 : vector<8x1xf32> to vector<8x288xf32>
    %27 = arith.addf %24, %26 : vector<8x288xf32>
    %cst_24 = arith.constant 0.000000e+00 : f32
    %28 = vector.broadcast %cst_24 : f32 to vector<8x288xf32>
    %29 = arith.maximumf %27, %28 : vector<8x288xf32>
    %c0_25 = arith.constant 0 : index
    %c0_26 = arith.constant 0 : index
    %c0_27 = arith.constant 0 : index
    %30 = vector.load %arg5[%c0_25, %c0_26, %c0_27] : memref<1x8x288xf32, #tpu.memory_space<vmem>>, vector<1x8x288xf32>
    %31 = vector.shape_cast %30 : vector<1x8x288xf32> to vector<8x288xf32>
    %32 = vector.shape_cast %29 : vector<8x288xf32> to vector<1x8x288xf32>
    tpu.vector_store %arg5[%c0_25, %c0_26, %c0_27], %32 {strides = array<i32>} : memref<1x8x288xf32, #tpu.memory_space<vmem>>, vector<1x8x288xf32>,
    return
  }
  func.func @transform_0(%arg0: i32) -> (i32, i32, i32) {
    %c0_i32 = arith.constant 0 : i32
    %c0_i32_0 = arith.constant 0 : i32
    %c0_i32_1 = arith.constant 0 : i32
    return %arg0, %c0_i32, %c0_i32_0 : i32, i32, i32
  }
  func.func @transform_1(%arg0: i32) -> (i32, i32) {
    %c0_i32 = arith.constant 0 : i32
    %c0_i32_0 = arith.constant 0 : i32
    %c0_i32_1 = arith.constant 0 : i32
    return %c0_i32, %c0_i32_0 : i32, i32
  }
  func.func @transform_2(%arg0: i32) -> (i32, i32) {
    %c0_i32 = arith.constant 0 : i32
    %c0_i32_0 = arith.constant 0 : i32
    %c0_i32_1 = arith.constant 0 : i32
    return %c0_i32, %c0_i32_0 : i32, i32
  }
  func.func @transform_3(%arg0: i32) -> (i32, i32) {
    %c0_i32 = arith.constant 0 : i32
    %c0_i32_0 = arith.constant 0 : i32
    %c0_i32_1 = arith.constant 0 : i32
    return %c0_i32, %c0_i32_0 : i32, i32
  }
  func.func @transform_4(%arg0: i32) -> (i32, i32, i32) {
    %c0_i32 = arith.constant 0 : i32
    %c0_i32_0 = arith.constant 0 : i32
    %c0_i32_1 = arith.constant 0 : i32
    return %arg0, %c0_i32, %c0_i32_0 : i32, i32, i32
  }
}

module attributes {stable_mosaic.version = 11 : i64} {
  func.func @_conv3x3_bn_relu_kernel(%arg0: i32, %arg1: memref<1x8x1158xf32, #tpu.memory_space<vmem>>, %arg2: memref<8x72xbf16, #tpu.memory_space<vmem>>, %arg3: memref<8x1xf32, #tpu.memory_space<vmem>>, %arg4: memref<8x1xf32, #tpu.memory_space<vmem>>, %arg5: memref<1x8x1088xf32, #tpu.memory_space<vmem>>) attributes {dimension_semantics = [#tpu.dimension_semantics<parallel>], iteration_bounds = array<i64: 2>, scalar_prefetch = 0 : i64, scratch_operands = 0 : i64, tpu.core_type = #tpu.core_type<tc>, window_params = [{transform_indices = @transform_0, window_bounds = array<i64: 1, 8, 1158>}, {pipeline_mode = #tpu.pipeline_mode<synchronous>, transform_indices = @transform_1, window_bounds = array<i64: 8, 72>}, {pipeline_mode = #tpu.pipeline_mode<synchronous>, transform_indices = @transform_2, window_bounds = array<i64: 8, 1>}, {pipeline_mode = #tpu.pipeline_mode<synchronous>, transform_indices = @transform_3, window_bounds = array<i64: 8, 1>}, {transform_indices = @transform_4, window_bounds = array<i64: 1, 8, 1088>}]} {
    %c0 = arith.constant 0 : index
    %c0_0 = arith.constant 0 : index
    %c0_1 = arith.constant 0 : index
    %0 = vector.load %arg1[%c0, %c0_0, %c0_1] : memref<1x8x1158xf32, #tpu.memory_space<vmem>>, vector<1x8x1088xf32>
    %1 = vector.shape_cast %0 : vector<1x8x1088xf32> to vector<8x1088xf32>
    %c0_2 = arith.constant 0 : index
    %c0_3 = arith.constant 0 : index
    %c1 = arith.constant 1 : index
    %2 = vector.load %arg1[%c0_2, %c0_3, %c1] : memref<1x8x1158xf32, #tpu.memory_space<vmem>>, vector<1x8x1088xf32>
    %3 = vector.shape_cast %2 : vector<1x8x1088xf32> to vector<8x1088xf32>
    %c0_4 = arith.constant 0 : index
    %c0_5 = arith.constant 0 : index
    %c2 = arith.constant 2 : index
    %4 = vector.load %arg1[%c0_4, %c0_5, %c2] : memref<1x8x1158xf32, #tpu.memory_space<vmem>>, vector<1x8x1088xf32>
    %5 = vector.shape_cast %4 : vector<1x8x1088xf32> to vector<8x1088xf32>
    %c0_6 = arith.constant 0 : index
    %c0_7 = arith.constant 0 : index
    %c34 = arith.constant 34 : index
    %6 = vector.load %arg1[%c0_6, %c0_7, %c34] : memref<1x8x1158xf32, #tpu.memory_space<vmem>>, vector<1x8x1088xf32>
    %7 = vector.shape_cast %6 : vector<1x8x1088xf32> to vector<8x1088xf32>
    %c0_8 = arith.constant 0 : index
    %c0_9 = arith.constant 0 : index
    %c35 = arith.constant 35 : index
    %8 = vector.load %arg1[%c0_8, %c0_9, %c35] : memref<1x8x1158xf32, #tpu.memory_space<vmem>>, vector<1x8x1088xf32>
    %9 = vector.shape_cast %8 : vector<1x8x1088xf32> to vector<8x1088xf32>
    %c0_10 = arith.constant 0 : index
    %c0_11 = arith.constant 0 : index
    %c36 = arith.constant 36 : index
    %10 = vector.load %arg1[%c0_10, %c0_11, %c36] : memref<1x8x1158xf32, #tpu.memory_space<vmem>>, vector<1x8x1088xf32>
    %11 = vector.shape_cast %10 : vector<1x8x1088xf32> to vector<8x1088xf32>
    %c0_12 = arith.constant 0 : index
    %c0_13 = arith.constant 0 : index
    %c68 = arith.constant 68 : index
    %12 = vector.load %arg1[%c0_12, %c0_13, %c68] : memref<1x8x1158xf32, #tpu.memory_space<vmem>>, vector<1x8x1088xf32>
    %13 = vector.shape_cast %12 : vector<1x8x1088xf32> to vector<8x1088xf32>
    %c0_14 = arith.constant 0 : index
    %c0_15 = arith.constant 0 : index
    %c69 = arith.constant 69 : index
    %14 = vector.load %arg1[%c0_14, %c0_15, %c69] : memref<1x8x1158xf32, #tpu.memory_space<vmem>>, vector<1x8x1088xf32>
    %15 = vector.shape_cast %14 : vector<1x8x1088xf32> to vector<8x1088xf32>
    %c0_16 = arith.constant 0 : index
    %c0_17 = arith.constant 0 : index
    %c70 = arith.constant 70 : index
    %16 = vector.load %arg1[%c0_16, %c0_17, %c70] : memref<1x8x1158xf32, #tpu.memory_space<vmem>>, vector<1x8x1088xf32>
    %17 = vector.shape_cast %16 : vector<1x8x1088xf32> to vector<8x1088xf32>
    %18 = tpu.concatenate %1, %3, %5, %7, %9, %11, %13, %15, %17 in 0 : vector<8x1088xf32>, vector<8x1088xf32>, vector<8x1088xf32>, vector<8x1088xf32>, vector<8x1088xf32>, vector<8x1088xf32>, vector<8x1088xf32>, vector<8x1088xf32>, vector<8x1088xf32> -> vector<72x1088xf32>
    %19 = arith.truncf %18 : vector<72x1088xf32> to vector<72x1088xbf16>
    %c0_18 = arith.constant 0 : index
    %c0_19 = arith.constant 0 : index
    %20 = vector.load %arg2[%c0_18, %c0_19] : memref<8x72xbf16, #tpu.memory_space<vmem>>, vector<8x72xbf16>
    %cst = arith.constant dense<0.000000e+00> : vector<8x1088xf32>
    %21 = tpu.matmul %20, %19, %cst {dimension_numbers = #tpu.dot_dimension_numbers<[1], [0], [0], [1], [0, 0, 1, 1], [], []>} : vector<8x72xbf16>, vector<72x1088xbf16>, vector<8x1088xf32> -> vector<8x1088xf32>
    %c0_20 = arith.constant 0 : index
    %c0_21 = arith.constant 0 : index
    %22 = vector.load %arg3[%c0_20, %c0_21] : memref<8x1xf32, #tpu.memory_space<vmem>>, vector<8x1xf32>
    %23 = vector.broadcast %22 : vector<8x1xf32> to vector<8x1088xf32>
    %24 = arith.mulf %21, %23 : vector<8x1088xf32>
    %c0_22 = arith.constant 0 : index
    %c0_23 = arith.constant 0 : index
    %25 = vector.load %arg4[%c0_22, %c0_23] : memref<8x1xf32, #tpu.memory_space<vmem>>, vector<8x1xf32>
    %26 = vector.broadcast %25 : vector<8x1xf32> to vector<8x1088xf32>
    %27 = arith.addf %24, %26 : vector<8x1088xf32>
    %cst_24 = arith.constant 0.000000e+00 : f32
    %28 = vector.broadcast %cst_24 : f32 to vector<8x1088xf32>
    %29 = arith.maximumf %27, %28 : vector<8x1088xf32>
    %c0_25 = arith.constant 0 : index
    %c0_26 = arith.constant 0 : index
    %c0_27 = arith.constant 0 : index
    %30 = vector.load %arg5[%c0_25, %c0_26, %c0_27] : memref<1x8x1088xf32, #tpu.memory_space<vmem>>, vector<1x8x1088xf32>
    %31 = vector.shape_cast %30 : vector<1x8x1088xf32> to vector<8x1088xf32>
    %32 = vector.shape_cast %29 : vector<8x1088xf32> to vector<1x8x1088xf32>
    tpu.vector_store %arg5[%c0_25, %c0_26, %c0_27], %32 {strides = array<i32>} : memref<1x8x1088xf32, #tpu.memory_space<vmem>>, vector<1x8x1088xf32>,
    return
  }
  func.func @transform_0(%arg0: i32) -> (i32, i32, i32) {
    %c0_i32 = arith.constant 0 : i32
    %c0_i32_0 = arith.constant 0 : i32
    %c0_i32_1 = arith.constant 0 : i32
    return %arg0, %c0_i32, %c0_i32_0 : i32, i32, i32
  }
  func.func @transform_1(%arg0: i32) -> (i32, i32) {
    %c0_i32 = arith.constant 0 : i32
    %c0_i32_0 = arith.constant 0 : i32
    %c0_i32_1 = arith.constant 0 : i32
    return %c0_i32, %c0_i32_0 : i32, i32
  }
  func.func @transform_2(%arg0: i32) -> (i32, i32) {
    %c0_i32 = arith.constant 0 : i32
    %c0_i32_0 = arith.constant 0 : i32
    %c0_i32_1 = arith.constant 0 : i32
    return %c0_i32, %c0_i32_0 : i32, i32
  }
  func.func @transform_3(%arg0: i32) -> (i32, i32) {
    %c0_i32 = arith.constant 0 : i32
    %c0_i32_0 = arith.constant 0 : i32
    %c0_i32_1 = arith.constant 0 : i32
    return %c0_i32, %c0_i32_0 : i32, i32
  }
  func.func @transform_4(%arg0: i32) -> (i32, i32, i32) {
    %c0_i32 = arith.constant 0 : i32
    %c0_i32_0 = arith.constant 0 : i32
    %c0_i32_1 = arith.constant 0 : i32
    return %arg0, %c0_i32, %c0_i32_0 : i32, i32, i32
  }
}

module attributes {stable_mosaic.version = 11 : i64} {
  func.func @_conv3x3_bn_relu_kernel(%arg0: i32, %arg1: memref<1x8x1158xf32, #tpu.memory_space<vmem>>, %arg2: memref<1x8x1158xf32, #tpu.memory_space<vmem>>, %arg3: memref<8x144xbf16, #tpu.memory_space<vmem>>, %arg4: memref<8x1xf32, #tpu.memory_space<vmem>>, %arg5: memref<8x1xf32, #tpu.memory_space<vmem>>, %arg6: memref<1x8x1088xf32, #tpu.memory_space<vmem>>) attributes {dimension_semantics = [#tpu.dimension_semantics<parallel>], iteration_bounds = array<i64: 2>, scalar_prefetch = 0 : i64, scratch_operands = 0 : i64, tpu.core_type = #tpu.core_type<tc>, window_params = [{transform_indices = @transform_0, window_bounds = array<i64: 1, 8, 1158>}, {transform_indices = @transform_1, window_bounds = array<i64: 1, 8, 1158>}, {pipeline_mode = #tpu.pipeline_mode<synchronous>, transform_indices = @transform_2, window_bounds = array<i64: 8, 144>}, {pipeline_mode = #tpu.pipeline_mode<synchronous>, transform_indices = @transform_3, window_bounds = array<i64: 8, 1>}, {pipeline_mode = #tpu.pipeline_mode<synchronous>, transform_indices = @transform_4, window_bounds = array<i64: 8, 1>}, {transform_indices = @transform_5, window_bounds = array<i64: 1, 8, 1088>}]} {
    %c0 = arith.constant 0 : index
    %c0_0 = arith.constant 0 : index
    %c0_1 = arith.constant 0 : index
    %0 = vector.load %arg1[%c0, %c0_0, %c0_1] : memref<1x8x1158xf32, #tpu.memory_space<vmem>>, vector<1x8x1088xf32>
    %1 = vector.shape_cast %0 : vector<1x8x1088xf32> to vector<8x1088xf32>
    %c0_2 = arith.constant 0 : index
    %c0_3 = arith.constant 0 : index
    %c1 = arith.constant 1 : index
    %2 = vector.load %arg1[%c0_2, %c0_3, %c1] : memref<1x8x1158xf32, #tpu.memory_space<vmem>>, vector<1x8x1088xf32>
    %3 = vector.shape_cast %2 : vector<1x8x1088xf32> to vector<8x1088xf32>
    %c0_4 = arith.constant 0 : index
    %c0_5 = arith.constant 0 : index
    %c2 = arith.constant 2 : index
    %4 = vector.load %arg1[%c0_4, %c0_5, %c2] : memref<1x8x1158xf32, #tpu.memory_space<vmem>>, vector<1x8x1088xf32>
    %5 = vector.shape_cast %4 : vector<1x8x1088xf32> to vector<8x1088xf32>
    %c0_6 = arith.constant 0 : index
    %c0_7 = arith.constant 0 : index
    %c34 = arith.constant 34 : index
    %6 = vector.load %arg1[%c0_6, %c0_7, %c34] : memref<1x8x1158xf32, #tpu.memory_space<vmem>>, vector<1x8x1088xf32>
    %7 = vector.shape_cast %6 : vector<1x8x1088xf32> to vector<8x1088xf32>
    %c0_8 = arith.constant 0 : index
    %c0_9 = arith.constant 0 : index
    %c35 = arith.constant 35 : index
    %8 = vector.load %arg1[%c0_8, %c0_9, %c35] : memref<1x8x1158xf32, #tpu.memory_space<vmem>>, vector<1x8x1088xf32>
    %9 = vector.shape_cast %8 : vector<1x8x1088xf32> to vector<8x1088xf32>
    %c0_10 = arith.constant 0 : index
    %c0_11 = arith.constant 0 : index
    %c36 = arith.constant 36 : index
    %10 = vector.load %arg1[%c0_10, %c0_11, %c36] : memref<1x8x1158xf32, #tpu.memory_space<vmem>>, vector<1x8x1088xf32>
    %11 = vector.shape_cast %10 : vector<1x8x1088xf32> to vector<8x1088xf32>
    %c0_12 = arith.constant 0 : index
    %c0_13 = arith.constant 0 : index
    %c68 = arith.constant 68 : index
    %12 = vector.load %arg1[%c0_12, %c0_13, %c68] : memref<1x8x1158xf32, #tpu.memory_space<vmem>>, vector<1x8x1088xf32>
    %13 = vector.shape_cast %12 : vector<1x8x1088xf32> to vector<8x1088xf32>
    %c0_14 = arith.constant 0 : index
    %c0_15 = arith.constant 0 : index
    %c69 = arith.constant 69 : index
    %14 = vector.load %arg1[%c0_14, %c0_15, %c69] : memref<1x8x1158xf32, #tpu.memory_space<vmem>>, vector<1x8x1088xf32>
    %15 = vector.shape_cast %14 : vector<1x8x1088xf32> to vector<8x1088xf32>
    %c0_16 = arith.constant 0 : index
    %c0_17 = arith.constant 0 : index
    %c70 = arith.constant 70 : index
    %16 = vector.load %arg1[%c0_16, %c0_17, %c70] : memref<1x8x1158xf32, #tpu.memory_space<vmem>>, vector<1x8x1088xf32>
    %17 = vector.shape_cast %16 : vector<1x8x1088xf32> to vector<8x1088xf32>
    %c0_18 = arith.constant 0 : index
    %c0_19 = arith.constant 0 : index
    %c0_20 = arith.constant 0 : index
    %18 = vector.load %arg2[%c0_18, %c0_19, %c0_20] : memref<1x8x1158xf32, #tpu.memory_space<vmem>>, vector<1x8x1088xf32>
    %19 = vector.shape_cast %18 : vector<1x8x1088xf32> to vector<8x1088xf32>
    %c0_21 = arith.constant 0 : index
    %c0_22 = arith.constant 0 : index
    %c1_23 = arith.constant 1 : index
    %20 = vector.load %arg2[%c0_21, %c0_22, %c1_23] : memref<1x8x1158xf32, #tpu.memory_space<vmem>>, vector<1x8x1088xf32>
    %21 = vector.shape_cast %20 : vector<1x8x1088xf32> to vector<8x1088xf32>
    %c0_24 = arith.constant 0 : index
    %c0_25 = arith.constant 0 : index
    %c2_26 = arith.constant 2 : index
    %22 = vector.load %arg2[%c0_24, %c0_25, %c2_26] : memref<1x8x1158xf32, #tpu.memory_space<vmem>>, vector<1x8x1088xf32>
    %23 = vector.shape_cast %22 : vector<1x8x1088xf32> to vector<8x1088xf32>
    %c0_27 = arith.constant 0 : index
    %c0_28 = arith.constant 0 : index
    %c34_29 = arith.constant 34 : index
    %24 = vector.load %arg2[%c0_27, %c0_28, %c34_29] : memref<1x8x1158xf32, #tpu.memory_space<vmem>>, vector<1x8x1088xf32>
    %25 = vector.shape_cast %24 : vector<1x8x1088xf32> to vector<8x1088xf32>
    %c0_30 = arith.constant 0 : index
    %c0_31 = arith.constant 0 : index
    %c35_32 = arith.constant 35 : index
    %26 = vector.load %arg2[%c0_30, %c0_31, %c35_32] : memref<1x8x1158xf32, #tpu.memory_space<vmem>>, vector<1x8x1088xf32>
    %27 = vector.shape_cast %26 : vector<1x8x1088xf32> to vector<8x1088xf32>
    %c0_33 = arith.constant 0 : index
    %c0_34 = arith.constant 0 : index
    %c36_35 = arith.constant 36 : index
    %28 = vector.load %arg2[%c0_33, %c0_34, %c36_35] : memref<1x8x1158xf32, #tpu.memory_space<vmem>>, vector<1x8x1088xf32>
    %29 = vector.shape_cast %28 : vector<1x8x1088xf32> to vector<8x1088xf32>
    %c0_36 = arith.constant 0 : index
    %c0_37 = arith.constant 0 : index
    %c68_38 = arith.constant 68 : index
    %30 = vector.load %arg2[%c0_36, %c0_37, %c68_38] : memref<1x8x1158xf32, #tpu.memory_space<vmem>>, vector<1x8x1088xf32>
    %31 = vector.shape_cast %30 : vector<1x8x1088xf32> to vector<8x1088xf32>
    %c0_39 = arith.constant 0 : index
    %c0_40 = arith.constant 0 : index
    %c69_41 = arith.constant 69 : index
    %32 = vector.load %arg2[%c0_39, %c0_40, %c69_41] : memref<1x8x1158xf32, #tpu.memory_space<vmem>>, vector<1x8x1088xf32>
    %33 = vector.shape_cast %32 : vector<1x8x1088xf32> to vector<8x1088xf32>
    %c0_42 = arith.constant 0 : index
    %c0_43 = arith.constant 0 : index
    %c70_44 = arith.constant 70 : index
    %34 = vector.load %arg2[%c0_42, %c0_43, %c70_44] : memref<1x8x1158xf32, #tpu.memory_space<vmem>>, vector<1x8x1088xf32>
    %35 = vector.shape_cast %34 : vector<1x8x1088xf32> to vector<8x1088xf32>
    %36 = tpu.concatenate %1, %3, %5, %7, %9, %11, %13, %15, %17, %19, %21, %23, %25, %27, %29, %31 in 0 : vector<8x1088xf32>, vector<8x1088xf32>, vector<8x1088xf32>, vector<8x1088xf32>, vector<8x1088xf32>, vector<8x1088xf32>, vector<8x1088xf32>, vector<8x1088xf32>, vector<8x1088xf32>, vector<8x1088xf32>, vector<8x1088xf32>, vector<8x1088xf32>, vector<8x1088xf32>, vector<8x1088xf32>, vector<8x1088xf32>, vector<8x1088xf32> -> vector<128x1088xf32>
    %37 = tpu.concatenate %33, %35 in 0 : vector<8x1088xf32>, vector<8x1088xf32> -> vector<16x1088xf32>
    %38 = tpu.concatenate %36, %37 in 0 : vector<128x1088xf32>, vector<16x1088xf32> -> vector<144x1088xf32>
    %39 = arith.truncf %38 : vector<144x1088xf32> to vector<144x1088xbf16>
    %c0_45 = arith.constant 0 : index
    %c0_46 = arith.constant 0 : index
    %40 = vector.load %arg3[%c0_45, %c0_46] : memref<8x144xbf16, #tpu.memory_space<vmem>>, vector<8x144xbf16>
    %cst = arith.constant dense<0.000000e+00> : vector<8x1088xf32>
    %41 = tpu.matmul %40, %39, %cst {dimension_numbers = #tpu.dot_dimension_numbers<[1], [0], [0], [1], [0, 0, 1, 1], [], []>} : vector<8x144xbf16>, vector<144x1088xbf16>, vector<8x1088xf32> -> vector<8x1088xf32>
    %c0_47 = arith.constant 0 : index
    %c0_48 = arith.constant 0 : index
    %42 = vector.load %arg4[%c0_47, %c0_48] : memref<8x1xf32, #tpu.memory_space<vmem>>, vector<8x1xf32>
    %43 = vector.broadcast %42 : vector<8x1xf32> to vector<8x1088xf32>
    %44 = arith.mulf %41, %43 : vector<8x1088xf32>
    %c0_49 = arith.constant 0 : index
    %c0_50 = arith.constant 0 : index
    %45 = vector.load %arg5[%c0_49, %c0_50] : memref<8x1xf32, #tpu.memory_space<vmem>>, vector<8x1xf32>
    %46 = vector.broadcast %45 : vector<8x1xf32> to vector<8x1088xf32>
    %47 = arith.addf %44, %46 : vector<8x1088xf32>
    %cst_51 = arith.constant 0.000000e+00 : f32
    %48 = vector.broadcast %cst_51 : f32 to vector<8x1088xf32>
    %49 = arith.maximumf %47, %48 : vector<8x1088xf32>
    %c0_52 = arith.constant 0 : index
    %c0_53 = arith.constant 0 : index
    %c0_54 = arith.constant 0 : index
    %50 = vector.load %arg6[%c0_52, %c0_53, %c0_54] : memref<1x8x1088xf32, #tpu.memory_space<vmem>>, vector<1x8x1088xf32>
    %51 = vector.shape_cast %50 : vector<1x8x1088xf32> to vector<8x1088xf32>
    %52 = vector.shape_cast %49 : vector<8x1088xf32> to vector<1x8x1088xf32>
    tpu.vector_store %arg6[%c0_52, %c0_53, %c0_54], %52 {strides = array<i32>} : memref<1x8x1088xf32, #tpu.memory_space<vmem>>, vector<1x8x1088xf32>,
    return
  }
  func.func @transform_0(%arg0: i32) -> (i32, i32, i32) {
    %c0_i32 = arith.constant 0 : i32
    %c0_i32_0 = arith.constant 0 : i32
    %c0_i32_1 = arith.constant 0 : i32
    return %arg0, %c0_i32, %c0_i32_0 : i32, i32, i32
  }
  func.func @transform_1(%arg0: i32) -> (i32, i32, i32) {
    %c0_i32 = arith.constant 0 : i32
    %c0_i32_0 = arith.constant 0 : i32
    %c0_i32_1 = arith.constant 0 : i32
    return %arg0, %c0_i32, %c0_i32_0 : i32, i32, i32
  }
  func.func @transform_2(%arg0: i32) -> (i32, i32) {
    %c0_i32 = arith.constant 0 : i32
    %c0_i32_0 = arith.constant 0 : i32
    %c0_i32_1 = arith.constant 0 : i32
    return %c0_i32, %c0_i32_0 : i32, i32
  }
  func.func @transform_3(%arg0: i32) -> (i32, i32) {
    %c0_i32 = arith.constant 0 : i32
    %c0_i32_0 = arith.constant 0 : i32
    %c0_i32_1 = arith.constant 0 : i32
    return %c0_i32, %c0_i32_0 : i32, i32
  }
  func.func @transform_4(%arg0: i32) -> (i32, i32) {
    %c0_i32 = arith.constant 0 : i32
    %c0_i32_0 = arith.constant 0 : i32
    %c0_i32_1 = arith.constant 0 : i32
    return %c0_i32, %c0_i32_0 : i32, i32
  }
  func.func @transform_5(%arg0: i32) -> (i32, i32, i32) {
    %c0_i32 = arith.constant 0 : i32
    %c0_i32_0 = arith.constant 0 : i32
    %c0_i32_1 = arith.constant 0 : i32
    return %arg0, %c0_i32, %c0_i32_0 : i32, i32, i32
  }
}

module attributes {stable_mosaic.version = 11 : i64} {
  func.func @_conv3x3_bn_relu_kernel(%arg0: i32, %arg1: memref<1x8x1158xf32, #tpu.memory_space<vmem>>, %arg2: memref<8x72xbf16, #tpu.memory_space<vmem>>, %arg3: memref<8x1xf32, #tpu.memory_space<vmem>>, %arg4: memref<8x1xf32, #tpu.memory_space<vmem>>, %arg5: memref<1x8x1088xf32, #tpu.memory_space<vmem>>) attributes {dimension_semantics = [#tpu.dimension_semantics<parallel>], iteration_bounds = array<i64: 2>, scalar_prefetch = 0 : i64, scratch_operands = 0 : i64, tpu.core_type = #tpu.core_type<tc>, window_params = [{transform_indices = @transform_0, window_bounds = array<i64: 1, 8, 1158>}, {pipeline_mode = #tpu.pipeline_mode<synchronous>, transform_indices = @transform_1, window_bounds = array<i64: 8, 72>}, {pipeline_mode = #tpu.pipeline_mode<synchronous>, transform_indices = @transform_2, window_bounds = array<i64: 8, 1>}, {pipeline_mode = #tpu.pipeline_mode<synchronous>, transform_indices = @transform_3, window_bounds = array<i64: 8, 1>}, {transform_indices = @transform_4, window_bounds = array<i64: 1, 8, 1088>}]} {
    %c0 = arith.constant 0 : index
    %c0_0 = arith.constant 0 : index
    %c0_1 = arith.constant 0 : index
    %0 = vector.load %arg1[%c0, %c0_0, %c0_1] : memref<1x8x1158xf32, #tpu.memory_space<vmem>>, vector<1x8x1088xf32>
    %1 = vector.shape_cast %0 : vector<1x8x1088xf32> to vector<8x1088xf32>
    %c0_2 = arith.constant 0 : index
    %c0_3 = arith.constant 0 : index
    %c1 = arith.constant 1 : index
    %2 = vector.load %arg1[%c0_2, %c0_3, %c1] : memref<1x8x1158xf32, #tpu.memory_space<vmem>>, vector<1x8x1088xf32>
    %3 = vector.shape_cast %2 : vector<1x8x1088xf32> to vector<8x1088xf32>
    %c0_4 = arith.constant 0 : index
    %c0_5 = arith.constant 0 : index
    %c2 = arith.constant 2 : index
    %4 = vector.load %arg1[%c0_4, %c0_5, %c2] : memref<1x8x1158xf32, #tpu.memory_space<vmem>>, vector<1x8x1088xf32>
    %5 = vector.shape_cast %4 : vector<1x8x1088xf32> to vector<8x1088xf32>
    %c0_6 = arith.constant 0 : index
    %c0_7 = arith.constant 0 : index
    %c34 = arith.constant 34 : index
    %6 = vector.load %arg1[%c0_6, %c0_7, %c34] : memref<1x8x1158xf32, #tpu.memory_space<vmem>>, vector<1x8x1088xf32>
    %7 = vector.shape_cast %6 : vector<1x8x1088xf32> to vector<8x1088xf32>
    %c0_8 = arith.constant 0 : index
    %c0_9 = arith.constant 0 : index
    %c35 = arith.constant 35 : index
    %8 = vector.load %arg1[%c0_8, %c0_9, %c35] : memref<1x8x1158xf32, #tpu.memory_space<vmem>>, vector<1x8x1088xf32>
    %9 = vector.shape_cast %8 : vector<1x8x1088xf32> to vector<8x1088xf32>
    %c0_10 = arith.constant 0 : index
    %c0_11 = arith.constant 0 : index
    %c36 = arith.constant 36 : index
    %10 = vector.load %arg1[%c0_10, %c0_11, %c36] : memref<1x8x1158xf32, #tpu.memory_space<vmem>>, vector<1x8x1088xf32>
    %11 = vector.shape_cast %10 : vector<1x8x1088xf32> to vector<8x1088xf32>
    %c0_12 = arith.constant 0 : index
    %c0_13 = arith.constant 0 : index
    %c68 = arith.constant 68 : index
    %12 = vector.load %arg1[%c0_12, %c0_13, %c68] : memref<1x8x1158xf32, #tpu.memory_space<vmem>>, vector<1x8x1088xf32>
    %13 = vector.shape_cast %12 : vector<1x8x1088xf32> to vector<8x1088xf32>
    %c0_14 = arith.constant 0 : index
    %c0_15 = arith.constant 0 : index
    %c69 = arith.constant 69 : index
    %14 = vector.load %arg1[%c0_14, %c0_15, %c69] : memref<1x8x1158xf32, #tpu.memory_space<vmem>>, vector<1x8x1088xf32>
    %15 = vector.shape_cast %14 : vector<1x8x1088xf32> to vector<8x1088xf32>
    %c0_16 = arith.constant 0 : index
    %c0_17 = arith.constant 0 : index
    %c70 = arith.constant 70 : index
    %16 = vector.load %arg1[%c0_16, %c0_17, %c70] : memref<1x8x1158xf32, #tpu.memory_space<vmem>>, vector<1x8x1088xf32>
    %17 = vector.shape_cast %16 : vector<1x8x1088xf32> to vector<8x1088xf32>
    %18 = tpu.concatenate %1, %3, %5, %7, %9, %11, %13, %15, %17 in 0 : vector<8x1088xf32>, vector<8x1088xf32>, vector<8x1088xf32>, vector<8x1088xf32>, vector<8x1088xf32>, vector<8x1088xf32>, vector<8x1088xf32>, vector<8x1088xf32>, vector<8x1088xf32> -> vector<72x1088xf32>
    %19 = arith.truncf %18 : vector<72x1088xf32> to vector<72x1088xbf16>
    %c0_18 = arith.constant 0 : index
    %c0_19 = arith.constant 0 : index
    %20 = vector.load %arg2[%c0_18, %c0_19] : memref<8x72xbf16, #tpu.memory_space<vmem>>, vector<8x72xbf16>
    %cst = arith.constant dense<0.000000e+00> : vector<8x1088xf32>
    %21 = tpu.matmul %20, %19, %cst {dimension_numbers = #tpu.dot_dimension_numbers<[1], [0], [0], [1], [0, 0, 1, 1], [], []>} : vector<8x72xbf16>, vector<72x1088xbf16>, vector<8x1088xf32> -> vector<8x1088xf32>
    %c0_20 = arith.constant 0 : index
    %c0_21 = arith.constant 0 : index
    %22 = vector.load %arg3[%c0_20, %c0_21] : memref<8x1xf32, #tpu.memory_space<vmem>>, vector<8x1xf32>
    %23 = vector.broadcast %22 : vector<8x1xf32> to vector<8x1088xf32>
    %24 = arith.mulf %21, %23 : vector<8x1088xf32>
    %c0_22 = arith.constant 0 : index
    %c0_23 = arith.constant 0 : index
    %25 = vector.load %arg4[%c0_22, %c0_23] : memref<8x1xf32, #tpu.memory_space<vmem>>, vector<8x1xf32>
    %26 = vector.broadcast %25 : vector<8x1xf32> to vector<8x1088xf32>
    %27 = arith.addf %24, %26 : vector<8x1088xf32>
    %c0_24 = arith.constant 0 : index
    %c0_25 = arith.constant 0 : index
    %c0_26 = arith.constant 0 : index
    %28 = vector.load %arg5[%c0_24, %c0_25, %c0_26] : memref<1x8x1088xf32, #tpu.memory_space<vmem>>, vector<1x8x1088xf32>
    %29 = vector.shape_cast %28 : vector<1x8x1088xf32> to vector<8x1088xf32>
    %30 = vector.shape_cast %27 : vector<8x1088xf32> to vector<1x8x1088xf32>
    tpu.vector_store %arg5[%c0_24, %c0_25, %c0_26], %30 {strides = array<i32>} : memref<1x8x1088xf32, #tpu.memory_space<vmem>>, vector<1x8x1088xf32>,
    return
  }
  func.func @transform_0(%arg0: i32) -> (i32, i32, i32) {
    %c0_i32 = arith.constant 0 : i32
    %c0_i32_0 = arith.constant 0 : i32
    %c0_i32_1 = arith.constant 0 : i32
    return %arg0, %c0_i32, %c0_i32_0 : i32, i32, i32
  }
  func.func @transform_1(%arg0: i32) -> (i32, i32) {
    %c0_i32 = arith.constant 0 : i32
    %c0_i32_0 = arith.constant 0 : i32
    %c0_i32_1 = arith.constant 0 : i32
    return %c0_i32, %c0_i32_0 : i32, i32
  }
  func.func @transform_2(%arg0: i32) -> (i32, i32) {
    %c0_i32 = arith.constant 0 : i32
    %c0_i32_0 = arith.constant 0 : i32
    %c0_i32_1 = arith.constant 0 : i32
    return %c0_i32, %c0_i32_0 : i32, i32
  }
  func.func @transform_3(%arg0: i32) -> (i32, i32) {
    %c0_i32 = arith.constant 0 : i32
    %c0_i32_0 = arith.constant 0 : i32
    %c0_i32_1 = arith.constant 0 : i32
    return %c0_i32, %c0_i32_0 : i32, i32
  }
  func.func @transform_4(%arg0: i32) -> (i32, i32, i32) {
    %c0_i32 = arith.constant 0 : i32
    %c0_i32_0 = arith.constant 0 : i32
    %c0_i32_1 = arith.constant 0 : i32
    return %arg0, %c0_i32, %c0_i32_0 : i32, i32, i32
  }
}

</mosaic_0001>

<llo_original>
// kernel: reverse
$region0: #{reverse}
  #allocation0 [shape = 's32[1]{0}', space=sflag, size = 0x4, scoped, tag = 'scoped memory for reverse']
  %s0 = inlined_call_operand.vmem [shape: f32[3,3,64,64], index: 0, kind: input, shape index: {}]
  %s1 = inlined_call_operand.vmem [shape: bf16[3,3,64,64], index: 1, kind: output, shape index: {}]
  %s2 = scalar_lea.vmem %s0, 512
  %v3 = vld [vmem:[%s2] sm:$0xff]
  %v4 = vpack.c.bf16 0.0, %v3
  %5 = vst [vmem:[%s1] sm:$0xf] %v4
  %s6 = scalar_lea.vmem %s0, 320
  %v7 = vld [vmem:[%s6] sm:$0xff]
  %s8 = scalar_lea.vmem %s1, 96
  %v9 = vpack.c.bf16 0.0, %v7
  %10 = vst [vmem:[%s8] sm:$0xf] %v9
  %s11 = scalar_lea.vmem %s0, 128
  %v12 = vld [vmem:[%s11] sm:$0xff]
  %s13 = scalar_lea.vmem %s1, 192
  %v14 = vpack.c.bf16 0.0, %v12
  %15 = vst [vmem:[%s13] sm:$0xf] %v14
  %s16 = scalar_lea.vmem %s0, 448
  %v17 = vld [vmem:[%s16] sm:$0xff]
  %s18 = scalar_lea.vmem %s1, 32
  %v19 = vpack.c.bf16 0.0, %v17
  %20 = vst [vmem:[%s18] sm:$0xf] %v19
  %s21 = scalar_lea.vmem %s0, 256
  %v22 = vld [vmem:[%s21] sm:$0xff]
  %s23 = scalar_lea.vmem %s1, 128
  %v24 = vpack.c.bf16 0.0, %v22
  %25 = vst [vmem:[%s23] sm:$0xf] %v24
  %s26 = scalar_lea.vmem %s0, 64
  %v27 = vld [vmem:[%s26] sm:$0xff]
  %s28 = scalar_lea.vmem %s1, 224
  %v29 = vpack.c.bf16 0.0, %v27
  %30 = vst [vmem:[%s28] sm:$0xf] %v29
  %s31 = scalar_lea.vmem %s0, 384
  %v32 = vld [vmem:[%s31] sm:$0xff]
  %s33 = scalar_lea.vmem %s1, 64
  %v34 = vpack.c.bf16 0.0, %v32
  %35 = vst [vmem:[%s33] sm:$0xf] %v34
  %s36 = scalar_lea.vmem %s0, 192
  %v37 = vld [vmem:[%s36] sm:$0xff]
  %s38 = scalar_lea.vmem %s1, 160
  %v39 = vpack.c.bf16 0.0, %v37
  %40 = vst [vmem:[%s38] sm:$0xf] %v39
  %v41 = vld [vmem:[%s0] sm:$0xff]
  %s42 = scalar_lea.vmem %s1, 256
  %v43 = vpack.c.bf16 0.0, %v41
  %44 = vst [vmem:[%s42] sm:$0xf] %v43
  %s45 = scalar_lea.vmem %s0, 520
  %v46 = vld [vmem:[%s45] sm:$0xff]
  %s47 = scalar_lea.vmem %s1, 4
  %v48 = vpack.c.bf16 0.0, %v46
  %49 = vst [vmem:[%s47] sm:$0xf] %v48
  %s50 = scalar_lea.vmem %s0, 328
  %v51 = vld [vmem:[%s50] sm:$0xff]
  %s52 = scalar_lea.vmem %s1, 100
  %v53 = vpack.c.bf16 0.0, %v51
  %54 = vst [vmem:[%s52] sm:$0xf] %v53
  %s55 = scalar_lea.vmem %s0, 136
  %v56 = vld [vmem:[%s55] sm:$0xff]
  %s57 = scalar_lea.vmem %s1, 196
  %v58 = vpack.c.bf16 0.0, %v56
  %59 = vst [vmem:[%s57] sm:$0xf] %v58
  %s60 = scalar_lea.vmem %s0, 456
  %v61 = vld [vmem:[%s60] sm:$0xff]
  %s62 = scalar_lea.vmem %s1, 36
  %v63 = vpack.c.bf16 0.0, %v61
  %64 = vst [vmem:[%s62] sm:$0xf] %v63
  %s65 = scalar_lea.vmem %s0, 264
  %v66 = vld [vmem:[%s65] sm:$0xff]
  %s67 = scalar_lea.vmem %s1, 132
  %v68 = vpack.c.bf16 0.0, %v66
  %69 = vst [vmem:[%s67] sm:$0xf] %v68
  %s70 = scalar_lea.vmem %s0, 72
  %v71 = vld [vmem:[%s70] sm:$0xff]
  %s72 = scalar_lea.vmem %s1, 228
  %v73 = vpack.c.bf16 0.0, %v71
  %74 = vst [vmem:[%s72] sm:$0xf] %v73
  %s75 = scalar_lea.vmem %s0, 392
  %v76 = vld [vmem:[%s75] sm:$0xff]
  %s77 = scalar_lea.vmem %s1, 68
  %v78 = vpack.c.bf16 0.0, %v76
  %79 = vst [vmem:[%s77] sm:$0xf] %v78
  %s80 = scalar_lea.vmem %s0, 200
  %v81 = vld [vmem:[%s80] sm:$0xff]
  %s82 = scalar_lea.vmem %s1, 164
  %v83 = vpack.c.bf16 0.0, %v81
  %84 = vst [vmem:[%s82] sm:$0xf] %v83
  %s85 = scalar_lea.vmem %s0, 8
  %v86 = vld [vmem:[%s85] sm:$0xff]
  %s87 = scalar_lea.vmem %s1, 260
  %v88 = vpack.c.bf16 0.0, %v86
  %89 = vst [vmem:[%s87] sm:$0xf] %v88
  %s90 = scalar_lea.vmem %s0, 528
  %v91 = vld [vmem:[%s90] sm:$0xff]
  %s92 = scalar_lea.vmem %s1, 8
  %v93 = vpack.c.bf16 0.0, %v91
  %94 = vst [vmem:[%s92] sm:$0xf] %v93
  %s95 = scalar_lea.vmem %s0, 336
  %v96 = vld [vmem:[%s95] sm:$0xff]
  %s97 = scalar_lea.vmem %s1, 104
  %v98 = vpack.c.bf16 0.0, %v96
  %99 = vst [vmem:[%s97] sm:$0xf] %v98
  %s100 = scalar_lea.vmem %s0, 144
  %v101 = vld [vmem:[%s100] sm:$0xff]
  %s102 = scalar_lea.vmem %s1, 200
  %v103 = vpack.c.bf16 0.0, %v101
  %104 = vst [vmem:[%s102] sm:$0xf] %v103
  %s105 = scalar_lea.vmem %s0, 464
  %v106 = vld [vmem:[%s105] sm:$0xff]
  %s107 = scalar_lea.vmem %s1, 40
  %v108 = vpack.c.bf16 0.0, %v106
  %109 = vst [vmem:[%s107] sm:$0xf] %v108
  %s110 = scalar_lea.vmem %s0, 272
  %v111 = vld [vmem:[%s110] sm:$0xff]
  %s112 = scalar_lea.vmem %s1, 136
  %v113 = vpack.c.bf16 0.0, %v111
  %114 = vst [vmem:[%s112] sm:$0xf] %v113
  %s115 = scalar_lea.vmem %s0, 80
  %v116 = vld [vmem:[%s115] sm:$0xff]
  %s117 = scalar_lea.vmem %s1, 232
  %v118 = vpack.c.bf16 0.0, %v116
  %119 = vst [vmem:[%s117] sm:$0xf] %v118
  %s120 = scalar_lea.vmem %s0, 400
  %v121 = vld [vmem:[%s120] sm:$0xff]
  %s122 = scalar_lea.vmem %s1, 72
  %v123 = vpack.c.bf16 0.0, %v121
  %124 = vst [vmem:[%s122] sm:$0xf] %v123
  %s125 = scalar_lea.vmem %s0, 208
  %v126 = vld [vmem:[%s125] sm:$0xff]
  %s127 = scalar_lea.vmem %s1, 168
  %v128 = vpack.c.bf16 0.0, %v126
  %129 = vst [vmem:[%s127] sm:$0xf] %v128
  %s130 = scalar_lea.vmem %s0, 16
  %v131 = vld [vmem:[%s130] sm:$0xff]
  %s132 = scalar_lea.vmem %s1, 264
  %v133 = vpack.c.bf16 0.0, %v131
  %134 = vst [vmem:[%s132] sm:$0xf] %v133
  %s135 = scalar_lea.vmem %s0, 536
  %v136 = vld [vmem:[%s135] sm:$0xff]
  %s137 = scalar_lea.vmem %s1, 12
  %v138 = vpack.c.bf16 0.0, %v136
  %139 = vst [vmem:[%s137] sm:$0xf] %v138
  %s140 = scalar_lea.vmem %s0, 344
  %v141 = vld [vmem:[%s140] sm:$0xff]
  %s142 = scalar_lea.vmem %s1, 108
  %v143 = vpack.c.bf16 0.0, %v141
  %144 = vst [vmem:[%s142] sm:$0xf] %v143
  %s145 = scalar_lea.vmem %s0, 152
  %v146 = vld [vmem:[%s145] sm:$0xff]
  %s147 = scalar_lea.vmem %s1, 204
  %v148 = vpack.c.bf16 0.0, %v146
  %149 = vst [vmem:[%s147] sm:$0xf] %v148
  %s150 = scalar_lea.vmem %s0, 472
  %v151 = vld [vmem:[%s150] sm:$0xff]
  %s152 = scalar_lea.vmem %s1, 44
  %v153 = vpack.c.bf16 0.0, %v151
  %154 = vst [vmem:[%s152] sm:$0xf] %v153
  %s155 = scalar_lea.vmem %s0, 280
  %v156 = vld [vmem:[%s155] sm:$0xff]
  %s157 = scalar_lea.vmem %s1, 140
  %v158 = vpack.c.bf16 0.0, %v156
  %159 = vst [vmem:[%s157] sm:$0xf] %v158
  %s160 = scalar_lea.vmem %s0, 88
  %v161 = vld [vmem:[%s160] sm:$0xff]
  %s162 = scalar_lea.vmem %s1, 236
  %v163 = vpack.c.bf16 0.0, %v161
  %164 = vst [vmem:[%s162] sm:$0xf] %v163
  %s165 = scalar_lea.vmem %s0, 408
  %v166 = vld [vmem:[%s165] sm:$0xff]
  %s167 = scalar_lea.vmem %s1, 76
  %v168 = vpack.c.bf16 0.0, %v166
  %169 = vst [vmem:[%s167] sm:$0xf] %v168
  %s170 = scalar_lea.vmem %s0, 216
  %v171 = vld [vmem:[%s170] sm:$0xff]
  %s172 = scalar_lea.vmem %s1, 172
  %v173 = vpack.c.bf16 0.0, %v171
  %174 = vst [vmem:[%s172] sm:$0xf] %v173
  %s175 = scalar_lea.vmem %s0, 24
  %v176 = vld [vmem:[%s175] sm:$0xff]
  %s177 = scalar_lea.vmem %s1, 268
  %v178 = vpack.c.bf16 0.0, %v176
  %179 = vst [vmem:[%s177] sm:$0xf] %v178
  %s180 = scalar_lea.vmem %s0, 544
  %v181 = vld [vmem:[%s180] sm:$0xff]
  %s182 = scalar_lea.vmem %s1, 16
  %v183 = vpack.c.bf16 0.0, %v181
  %184 = vst [vmem:[%s182] sm:$0xf] %v183
  %s185 = scalar_lea.vmem %s0, 352
  %v186 = vld [vmem:[%s185] sm:$0xff]
  %s187 = scalar_lea.vmem %s1, 112
  %v188 = vpack.c.bf16 0.0, %v186
  %189 = vst [vmem:[%s187] sm:$0xf] %v188
  %s190 = scalar_lea.vmem %s0, 160
  %v191 = vld [vmem:[%s190] sm:$0xff]
  %s192 = scalar_lea.vmem %s1, 208
  %v193 = vpack.c.bf16 0.0, %v191
  %194 = vst [vmem:[%s192] sm:$0xf] %v193
  %s195 = scalar_lea.vmem %s0, 480
  %v196 = vld [vmem:[%s195] sm:$0xff]
  %s197 = scalar_lea.vmem %s1, 48
  %v198 = vpack.c.bf16 0.0, %v196
  %199 = vst [vmem:[%s197] sm:$0xf] %v198
  %s200 = scalar_lea.vmem %s0, 288
  %v201 = vld [vmem:[%s200] sm:$0xff]
  %s202 = scalar_lea.vmem %s1, 144
  %v203 = vpack.c.bf16 0.0, %v201
  %204 = vst [vmem:[%s202] sm:$0xf] %v203
  %s205 = scalar_lea.vmem %s0, 96
  %v206 = vld [vmem:[%s205] sm:$0xff]
  %s207 = scalar_lea.vmem %s1, 240
  %v208 = vpack.c.bf16 0.0, %v206
  %209 = vst [vmem:[%s207] sm:$0xf] %v208
  %s210 = scalar_lea.vmem %s0, 416
  %v211 = vld [vmem:[%s210] sm:$0xff]
  %s212 = scalar_lea.vmem %s1, 80
  %v213 = vpack.c.bf16 0.0, %v211
  %214 = vst [vmem:[%s212] sm:$0xf] %v213
  %s215 = scalar_lea.vmem %s0, 224
  %v216 = vld [vmem:[%s215] sm:$0xff]
  %s217 = scalar_lea.vmem %s1, 176
  %v218 = vpack.c.bf16 0.0, %v216
  %219 = vst [vmem:[%s217] sm:$0xf] %v218
  %s220 = scalar_lea.vmem %s0, 32
  %v221 = vld [vmem:[%s220] sm:$0xff]
  %s222 = scalar_lea.vmem %s1, 272
  %v223 = vpack.c.bf16 0.0, %v221
  %224 = vst [vmem:[%s222] sm:$0xf] %v223
  %s225 = scalar_lea.vmem %s0, 552
  %v226 = vld [vmem:[%s225] sm:$0xff]
  %s227 = scalar_lea.vmem %s1, 20
  %v228 = vpack.c.bf16 0.0, %v226
  %229 = vst [vmem:[%s227] sm:$0xf] %v228
  %s230 = scalar_lea.vmem %s0, 360
  %v231 = vld [vmem:[%s230] sm:$0xff]
  %s232 = scalar_lea.vmem %s1, 116
  %v233 = vpack.c.bf16 0.0, %v231
  %234 = vst [vmem:[%s232] sm:$0xf] %v233
  %s235 = scalar_lea.vmem %s0, 168
  %v236 = vld [vmem:[%s235] sm:$0xff]
  %s237 = scalar_lea.vmem %s1, 212
  %v238 = vpack.c.bf16 0.0, %v236
  %239 = vst [vmem:[%s237] sm:$0xf] %v238
  %s240 = scalar_lea.vmem %s0, 488
  %v241 = vld [vmem:[%s240] sm:$0xff]
  %s242 = scalar_lea.vmem %s1, 52
  %v243 = vpack.c.bf16 0.0, %v241
  %244 = vst [vmem:[%s242] sm:$0xf] %v243
  %s245 = scalar_lea.vmem %s0, 296
  %v246 = vld [vmem:[%s245] sm:$0xff]
  %s247 = scalar_lea.vmem %s1, 148
  %v248 = vpack.c.bf16 0.0, %v246
  %249 = vst [vmem:[%s247] sm:$0xf] %v248
  %s250 = scalar_lea.vmem %s0, 104
  %v251 = vld [vmem:[%s250] sm:$0xff]
  %s252 = scalar_lea.vmem %s1, 244
  %v253 = vpack.c.bf16 0.0, %v251
  %254 = vst [vmem:[%s252] sm:$0xf] %v253
  %s255 = scalar_lea.vmem %s0, 424
  %v256 = vld [vmem:[%s255] sm:$0xff]
  %s257 = scalar_lea.vmem %s1, 84
  %v258 = vpack.c.bf16 0.0, %v256
  %259 = vst [vmem:[%s257] sm:$0xf] %v258
  %s260 = scalar_lea.vmem %s0, 232
  %v261 = vld [vmem:[%s260] sm:$0xff]
  %s262 = scalar_lea.vmem %s1, 180
  %v263 = vpack.c.bf16 0.0, %v261
  %264 = vst [vmem:[%s262] sm:$0xf] %v263
  %s265 = scalar_lea.vmem %s0, 40
  %v266 = vld [vmem:[%s265] sm:$0xff]
  %s267 = scalar_lea.vmem %s1, 276
  %v268 = vpack.c.bf16 0.0, %v266
  %269 = vst [vmem:[%s267] sm:$0xf] %v268
  %s270 = scalar_lea.vmem %s0, 560
  %v271 = vld [vmem:[%s270] sm:$0xff]
  %s272 = scalar_lea.vmem %s1, 24
  %v273 = vpack.c.bf16 0.0, %v271
  %274 = vst [vmem:[%s272] sm:$0xf] %v273
  %s275 = scalar_lea.vmem %s0, 368
  %v276 = vld [vmem:[%s275] sm:$0xff]
  %s277 = scalar_lea.vmem %s1, 120
  %v278 = vpack.c.bf16 0.0, %v276
  %279 = vst [vmem:[%s277] sm:$0xf] %v278
  %s280 = scalar_lea.vmem %s0, 176
  %v281 = vld [vmem:[%s280] sm:$0xff]
  %s282 = scalar_lea.vmem %s1, 216
  %v283 = vpack.c.bf16 0.0, %v281
  %284 = vst [vmem:[%s282] sm:$0xf] %v283
  %s285 = scalar_lea.vmem %s0, 496
  %v286 = vld [vmem:[%s285] sm:$0xff]
  %s287 = scalar_lea.vmem %s1, 56
  %v288 = vpack.c.bf16 0.0, %v286
  %289 = vst [vmem:[%s287] sm:$0xf] %v288
  %s290 = scalar_lea.vmem %s0, 304
  %v291 = vld [vmem:[%s290] sm:$0xff]
  %s292 = scalar_lea.vmem %s1, 152
  %v293 = vpack.c.bf16 0.0, %v291
  %294 = vst [vmem:[%s292] sm:$0xf] %v293
  %s295 = scalar_lea.vmem %s0, 112
  %v296 = vld [vmem:[%s295] sm:$0xff]
  %s297 = scalar_lea.vmem %s1, 248
  %v298 = vpack.c.bf16 0.0, %v296
  %299 = vst [vmem:[%s297] sm:$0xf] %v298
  %s300 = scalar_lea.vmem %s0, 432
  %v301 = vld [vmem:[%s300] sm:$0xff]
  %s302 = scalar_lea.vmem %s1, 88
  %v303 = vpack.c.bf16 0.0, %v301
  %304 = vst [vmem:[%s302] sm:$0xf] %v303
  %s305 = scalar_lea.vmem %s0, 240
  %v306 = vld [vmem:[%s305] sm:$0xff]
  %s307 = scalar_lea.vmem %s1, 184
  %v308 = vpack.c.bf16 0.0, %v306
  %309 = vst [vmem:[%s307] sm:$0xf] %v308
  %s310 = scalar_lea.vmem %s0, 48
  %v311 = vld [vmem:[%s310] sm:$0xff]
  %s312 = scalar_lea.vmem %s1, 280
  %v313 = vpack.c.bf16 0.0, %v311
  %314 = vst [vmem:[%s312] sm:$0xf] %v313
  %s315 = scalar_lea.vmem %s0, 568
  %v316 = vld [vmem:[%s315] sm:$0xff]
  %s317 = scalar_lea.vmem %s1, 28
  %v318 = vpack.c.bf16 0.0, %v316
  %319 = vst [vmem:[%s317] sm:$0xf] %v318
  %s320 = scalar_lea.vmem %s0, 376
  %v321 = vld [vmem:[%s320] sm:$0xff]
  %s322 = scalar_lea.vmem %s1, 124
  %v323 = vpack.c.bf16 0.0, %v321
  %324 = vst [vmem:[%s322] sm:$0xf] %v323
  %s325 = scalar_lea.vmem %s0, 184
  %v326 = vld [vmem:[%s325] sm:$0xff]
  %s327 = scalar_lea.vmem %s1, 220
  %v328 = vpack.c.bf16 0.0, %v326
  %329 = vst [vmem:[%s327] sm:$0xf] %v328
  %s330 = scalar_lea.vmem %s0, 504
  %v331 = vld [vmem:[%s330] sm:$0xff]
  %s332 = scalar_lea.vmem %s1, 60
  %v333 = vpack.c.bf16 0.0, %v331
  %334 = vst [vmem:[%s332] sm:$0xf] %v333
  %s335 = scalar_lea.vmem %s0, 312
  %v336 = vld [vmem:[%s335] sm:$0xff]
  %s337 = scalar_lea.vmem %s1, 156
  %v338 = vpack.c.bf16 0.0, %v336
  %339 = vst [vmem:[%s337] sm:$0xf] %v338
  %s340 = scalar_lea.vmem %s0, 120
  %v341 = vld [vmem:[%s340] sm:$0xff]
  %s342 = scalar_lea.vmem %s1, 252
  %v343 = vpack.c.bf16 0.0, %v341
  %344 = vst [vmem:[%s342] sm:$0xf] %v343
  %s345 = scalar_lea.vmem %s0, 440
  %v346 = vld [vmem:[%s345] sm:$0xff]
  %s347 = scalar_lea.vmem %s1, 92
  %v348 = vpack.c.bf16 0.0, %v346
  %349 = vst [vmem:[%s347] sm:$0xf] %v348
  %s350 = scalar_lea.vmem %s0, 248
  %v351 = vld [vmem:[%s350] sm:$0xff]
  %s352 = scalar_lea.vmem %s1, 188
  %v353 = vpack.c.bf16 0.0, %v351
  %354 = vst [vmem:[%s352] sm:$0xf] %v353
  %s355 = scalar_lea.vmem %s0, 56
  %v356 = vld [vmem:[%s355] sm:$0xff]
  %s357 = scalar_lea.vmem %s1, 284
  %v358 = vpack.c.bf16 0.0, %v356
  %359 = vst [vmem:[%s357] sm:$0xf] %v358

// kernel: reverse.1
$region0: #{reverse.1}
  #allocation0 [shape = 's32[1]{0}', space=sflag, size = 0x4, scoped, tag = 'scoped memory for reverse.1']
  %s0 = inlined_call_operand.vmem [shape: f32[3,3,128,64], index: 0, kind: input, shape index: {}]
  %s1 = inlined_call_operand.vmem [shape: bf16[3,3,128,64], index: 1, kind: output, shape index: {}]
  %s2 = scalar_lea.vmem %s0, 512
  %v3 = vld [vmem:[%s2] sm:$0xff]
  %v4 = vpack.c.bf16 0.0, %v3
  %5 = vst [vmem:[%s1] sm:$0xf] %v4
  %s6 = scalar_lea.vmem %s0, 320
  %v7 = vld [vmem:[%s6] sm:$0xff]
  %s8 = scalar_lea.vmem %s1, 96
  %v9 = vpack.c.bf16 0.0, %v7
  %10 = vst [vmem:[%s8] sm:$0xf] %v9
  %s11 = scalar_lea.vmem %s0, 128
  %v12 = vld [vmem:[%s11] sm:$0xff]
  %s13 = scalar_lea.vmem %s1, 192
  %v14 = vpack.c.bf16 0.0, %v12
  %15 = vst [vmem:[%s13] sm:$0xf] %v14
  %s16 = scalar_lea.vmem %s0, 448
  %v17 = vld [vmem:[%s16] sm:$0xff]
  %s18 = scalar_lea.vmem %s1, 32
  %v19 = vpack.c.bf16 0.0, %v17
  %20 = vst [vmem:[%s18] sm:$0xf] %v19
  %s21 = scalar_lea.vmem %s0, 256
  %v22 = vld [vmem:[%s21] sm:$0xff]
  %s23 = scalar_lea.vmem %s1, 128
  %v24 = vpack.c.bf16 0.0, %v22
  %25 = vst [vmem:[%s23] sm:$0xf] %v24
  %s26 = scalar_lea.vmem %s0, 64
  %v27 = vld [vmem:[%s26] sm:$0xff]
  %s28 = scalar_lea.vmem %s1, 224
  %v29 = vpack.c.bf16 0.0, %v27
  %30 = vst [vmem:[%s28] sm:$0xf] %v29
  %s31 = scalar_lea.vmem %s0, 384
  %v32 = vld [vmem:[%s31] sm:$0xff]
  %s33 = scalar_lea.vmem %s1, 64
  %v34 = vpack.c.bf16 0.0, %v32
  %35 = vst [vmem:[%s33] sm:$0xf] %v34
  %s36 = scalar_lea.vmem %s0, 192
  %v37 = vld [vmem:[%s36] sm:$0xff]
  %s38 = scalar_lea.vmem %s1, 160
  %v39 = vpack.c.bf16 0.0, %v37
  %40 = vst [vmem:[%s38] sm:$0xf] %v39
  %v41 = vld [vmem:[%s0] sm:$0xff]
  %s42 = scalar_lea.vmem %s1, 256
  %v43 = vpack.c.bf16 0.0, %v41
  %44 = vst [vmem:[%s42] sm:$0xf] %v43
  %s45 = scalar_lea.vmem %s0, 520
  %v46 = vld [vmem:[%s45] sm:$0xff]
  %s47 = scalar_lea.vmem %s1, 4
  %v48 = vpack.c.bf16 0.0, %v46
  %49 = vst [vmem:[%s47] sm:$0xf] %v48
  %s50 = scalar_lea.vmem %s0, 328
  %v51 = vld [vmem:[%s50] sm:$0xff]
  %s52 = scalar_lea.vmem %s1, 100
  %v53 = vpack.c.bf16 0.0, %v51
  %54 = vst [vmem:[%s52] sm:$0xf] %v53
  %s55 = scalar_lea.vmem %s0, 136
  %v56 = vld [vmem:[%s55] sm:$0xff]
  %s57 = scalar_lea.vmem %s1, 196
  %v58 = vpack.c.bf16 0.0, %v56
  %59 = vst [vmem:[%s57] sm:$0xf] %v58
  %s60 = scalar_lea.vmem %s0, 456
  %v61 = vld [vmem:[%s60] sm:$0xff]
  %s62 = scalar_lea.vmem %s1, 36
  %v63 = vpack.c.bf16 0.0, %v61
  %64 = vst [vmem:[%s62] sm:$0xf] %v63
  %s65 = scalar_lea.vmem %s0, 264
  %v66 = vld [vmem:[%s65] sm:$0xff]
  %s67 = scalar_lea.vmem %s1, 132
  %v68 = vpack.c.bf16 0.0, %v66
  %69 = vst [vmem:[%s67] sm:$0xf] %v68
  %s70 = scalar_lea.vmem %s0, 72
  %v71 = vld [vmem:[%s70] sm:$0xff]
  %s72 = scalar_lea.vmem %s1, 228
  %v73 = vpack.c.bf16 0.0, %v71
  %74 = vst [vmem:[%s72] sm:$0xf] %v73
  %s75 = scalar_lea.vmem %s0, 392
  %v76 = vld [vmem:[%s75] sm:$0xff]
  %s77 = scalar_lea.vmem %s1, 68
  %v78 = vpack.c.bf16 0.0, %v76
  %79 = vst [vmem:[%s77] sm:$0xf] %v78
  %s80 = scalar_lea.vmem %s0, 200
  %v81 = vld [vmem:[%s80] sm:$0xff]
  %s82 = scalar_lea.vmem %s1, 164
  %v83 = vpack.c.bf16 0.0, %v81
  %84 = vst [vmem:[%s82] sm:$0xf] %v83
  %s85 = scalar_lea.vmem %s0, 8
  %v86 = vld [vmem:[%s85] sm:$0xff]
  %s87 = scalar_lea.vmem %s1, 260
  %v88 = vpack.c.bf16 0.0, %v86
  %89 = vst [vmem:[%s87] sm:$0xf] %v88
  %s90 = scalar_lea.vmem %s0, 528
  %v91 = vld [vmem:[%s90] sm:$0xff]
  %s92 = scalar_lea.vmem %s1, 8
  %v93 = vpack.c.bf16 0.0, %v91
  %94 = vst [vmem:[%s92] sm:$0xf] %v93
  %s95 = scalar_lea.vmem %s0, 336
  %v96 = vld [vmem:[%s95] sm:$0xff]
  %s97 = scalar_lea.vmem %s1, 104
  %v98 = vpack.c.bf16 0.0, %v96
  %99 = vst [vmem:[%s97] sm:$0xf] %v98
  %s100 = scalar_lea.vmem %s0, 144
  %v101 = vld [vmem:[%s100] sm:$0xff]
  %s102 = scalar_lea.vmem %s1, 200
  %v103 = vpack.c.bf16 0.0, %v101
  %104 = vst [vmem:[%s102] sm:$0xf] %v103
  %s105 = scalar_lea.vmem %s0, 464
  %v106 = vld [vmem:[%s105] sm:$0xff]
  %s107 = scalar_lea.vmem %s1, 40
  %v108 = vpack.c.bf16 0.0, %v106
  %109 = vst [vmem:[%s107] sm:$0xf] %v108
  %s110 = scalar_lea.vmem %s0, 272
  %v111 = vld [vmem:[%s110] sm:$0xff]
  %s112 = scalar_lea.vmem %s1, 136
  %v113 = vpack.c.bf16 0.0, %v111
  %114 = vst [vmem:[%s112] sm:$0xf] %v113
  %s115 = scalar_lea.vmem %s0, 80
  %v116 = vld [vmem:[%s115] sm:$0xff]
  %s117 = scalar_lea.vmem %s1, 232
  %v118 = vpack.c.bf16 0.0, %v116
  %119 = vst [vmem:[%s117] sm:$0xf] %v118
  %s120 = scalar_lea.vmem %s0, 400
  %v121 = vld [vmem:[%s120] sm:$0xff]
  %s122 = scalar_lea.vmem %s1, 72
  %v123 = vpack.c.bf16 0.0, %v121
  %124 = vst [vmem:[%s122] sm:$0xf] %v123
  %s125 = scalar_lea.vmem %s0, 208
  %v126 = vld [vmem:[%s125] sm:$0xff]
  %s127 = scalar_lea.vmem %s1, 168
  %v128 = vpack.c.bf16 0.0, %v126
  %129 = vst [vmem:[%s127] sm:$0xf] %v128
  %s130 = scalar_lea.vmem %s0, 16
  %v131 = vld [vmem:[%s130] sm:$0xff]
  %s132 = scalar_lea.vmem %s1, 264
  %v133 = vpack.c.bf16 0.0, %v131
  %134 = vst [vmem:[%s132] sm:$0xf] %v133
  %s135 = scalar_lea.vmem %s0, 536
  %v136 = vld [vmem:[%s135] sm:$0xff]
  %s137 = scalar_lea.vmem %s1, 12
  %v138 = vpack.c.bf16 0.0, %v136
  %139 = vst [vmem:[%s137] sm:$0xf] %v138
  %s140 = scalar_lea.vmem %s0, 344
  %v141 = vld [vmem:[%s140] sm:$0xff]
  %s142 = scalar_lea.vmem %s1, 108
  %v143 = vpack.c.bf16 0.0, %v141
  %144 = vst [vmem:[%s142] sm:$0xf] %v143
  %s145 = scalar_lea.vmem %s0, 152
  %v146 = vld [vmem:[%s145] sm:$0xff]
  %s147 = scalar_lea.vmem %s1, 204
  %v148 = vpack.c.bf16 0.0, %v146
  %149 = vst [vmem:[%s147] sm:$0xf] %v148
  %s150 = scalar_lea.vmem %s0, 472
  %v151 = vld [vmem:[%s150] sm:$0xff]
  %s152 = scalar_lea.vmem %s1, 44
  %v153 = vpack.c.bf16 0.0, %v151
  %154 = vst [vmem:[%s152] sm:$0xf] %v153
  %s155 = scalar_lea.vmem %s0, 280
  %v156 = vld [vmem:[%s155] sm:$0xff]
  %s157 = scalar_lea.vmem %s1, 140
  %v158 = vpack.c.bf16 0.0, %v156
  %159 = vst [vmem:[%s157] sm:$0xf] %v158
  %s160 = scalar_lea.vmem %s0, 88
  %v161 = vld [vmem:[%s160] sm:$0xff]
  %s162 = scalar_lea.vmem %s1, 236
  %v163 = vpack.c.bf16 0.0, %v161
  %164 = vst [vmem:[%s162] sm:$0xf] %v163
  %s165 = scalar_lea.vmem %s0, 408
  %v166 = vld [vmem:[%s165] sm:$0xff]
  %s167 = scalar_lea.vmem %s1, 76
  %v168 = vpack.c.bf16 0.0, %v166
  %169 = vst [vmem:[%s167] sm:$0xf] %v168
  %s170 = scalar_lea.vmem %s0, 216
  %v171 = vld [vmem:[%s170] sm:$0xff]
  %s172 = scalar_lea.vmem %s1, 172
  %v173 = vpack.c.bf16 0.0, %v171
  %174 = vst [vmem:[%s172] sm:$0xf] %v173
  %s175 = scalar_lea.vmem %s0, 24
  %v176 = vld [vmem:[%s175] sm:$0xff]
  %s177 = scalar_lea.vmem %s1, 268
  %v178 = vpack.c.bf16 0.0, %v176
  %179 = vst [vmem:[%s177] sm:$0xf] %v178
  %s180 = scalar_lea.vmem %s0, 544
  %v181 = vld [vmem:[%s180] sm:$0xff]
  %s182 = scalar_lea.vmem %s1, 16
  %v183 = vpack.c.bf16 0.0, %v181
  %184 = vst [vmem:[%s182] sm:$0xf] %v183
  %s185 = scalar_lea.vmem %s0, 352
  %v186 = vld [vmem:[%s185] sm:$0xff]
  %s187 = scalar_lea.vmem %s1, 112
  %v188 = vpack.c.bf16 0.0, %v186
  %189 = vst [vmem:[%s187] sm:$0xf] %v188
  %s190 = scalar_lea.vmem %s0, 160
  %v191 = vld [vmem:[%s190] sm:$0xff]
  %s192 = scalar_lea.vmem %s1, 208
  %v193 = vpack.c.bf16 0.0, %v191
  %194 = vst [vmem:[%s192] sm:$0xf] %v193
  %s195 = scalar_lea.vmem %s0, 480
  %v196 = vld [vmem:[%s195] sm:$0xff]
  %s197 = scalar_lea.vmem %s1, 48
  %v198 = vpack.c.bf16 0.0, %v196
  %199 = vst [vmem:[%s197] sm:$0xf] %v198
  %s200 = scalar_lea.vmem %s0, 288
  %v201 = vld [vmem:[%s200] sm:$0xff]
  %s202 = scalar_lea.vmem %s1, 144
  %v203 = vpack.c.bf16 0.0, %v201
  %204 = vst [vmem:[%s202] sm:$0xf] %v203
  %s205 = scalar_lea.vmem %s0, 96
  %v206 = vld [vmem:[%s205] sm:$0xff]
  %s207 = scalar_lea.vmem %s1, 240
  %v208 = vpack.c.bf16 0.0, %v206
  %209 = vst [vmem:[%s207] sm:$0xf] %v208
  %s210 = scalar_lea.vmem %s0, 416
  %v211 = vld [vmem:[%s210] sm:$0xff]
  %s212 = scalar_lea.vmem %s1, 80
  %v213 = vpack.c.bf16 0.0, %v211
  %214 = vst [vmem:[%s212] sm:$0xf] %v213
  %s215 = scalar_lea.vmem %s0, 224
  %v216 = vld [vmem:[%s215] sm:$0xff]
  %s217 = scalar_lea.vmem %s1, 176
  %v218 = vpack.c.bf16 0.0, %v216
  %219 = vst [vmem:[%s217] sm:$0xf] %v218
  %s220 = scalar_lea.vmem %s0, 32
  %v221 = vld [vmem:[%s220] sm:$0xff]
  %s222 = scalar_lea.vmem %s1, 272
  %v223 = vpack.c.bf16 0.0, %v221
  %224 = vst [vmem:[%s222] sm:$0xf] %v223
  %s225 = scalar_lea.vmem %s0, 552
  %v226 = vld [vmem:[%s225] sm:$0xff]
  %s227 = scalar_lea.vmem %s1, 20
  %v228 = vpack.c.bf16 0.0, %v226
  %229 = vst [vmem:[%s227] sm:$0xf] %v228
  %s230 = scalar_lea.vmem %s0, 360
  %v231 = vld [vmem:[%s230] sm:$0xff]
  %s232 = scalar_lea.vmem %s1, 116
  %v233 = vpack.c.bf16 0.0, %v231
  %234 = vst [vmem:[%s232] sm:$0xf] %v233
  %s235 = scalar_lea.vmem %s0, 168
  %v236 = vld [vmem:[%s235] sm:$0xff]
  %s237 = scalar_lea.vmem %s1, 212
  %v238 = vpack.c.bf16 0.0, %v236
  %239 = vst [vmem:[%s237] sm:$0xf] %v238
  %s240 = scalar_lea.vmem %s0, 488
  %v241 = vld [vmem:[%s240] sm:$0xff]
  %s242 = scalar_lea.vmem %s1, 52
  %v243 = vpack.c.bf16 0.0, %v241
  %244 = vst [vmem:[%s242] sm:$0xf] %v243
  %s245 = scalar_lea.vmem %s0, 296
  %v246 = vld [vmem:[%s245] sm:$0xff]
  %s247 = scalar_lea.vmem %s1, 148
  %v248 = vpack.c.bf16 0.0, %v246
  %249 = vst [vmem:[%s247] sm:$0xf] %v248
  %s250 = scalar_lea.vmem %s0, 104
  %v251 = vld [vmem:[%s250] sm:$0xff]
  %s252 = scalar_lea.vmem %s1, 244
  %v253 = vpack.c.bf16 0.0, %v251
  %254 = vst [vmem:[%s252] sm:$0xf] %v253
  %s255 = scalar_lea.vmem %s0, 424
  %v256 = vld [vmem:[%s255] sm:$0xff]
  %s257 = scalar_lea.vmem %s1, 84
  %v258 = vpack.c.bf16 0.0, %v256
  %259 = vst [vmem:[%s257] sm:$0xf] %v258
  %s260 = scalar_lea.vmem %s0, 232
  %v261 = vld [vmem:[%s260] sm:$0xff]
  %s262 = scalar_lea.vmem %s1, 180
  %v263 = vpack.c.bf16 0.0, %v261
  %264 = vst [vmem:[%s262] sm:$0xf] %v263
  %s265 = scalar_lea.vmem %s0, 40
  %v266 = vld [vmem:[%s265] sm:$0xff]
  %s267 = scalar_lea.vmem %s1, 276
  %v268 = vpack.c.bf16 0.0, %v266
  %269 = vst [vmem:[%s267] sm:$0xf] %v268
  %s270 = scalar_lea.vmem %s0, 560
  %v271 = vld [vmem:[%s270] sm:$0xff]
  %s272 = scalar_lea.vmem %s1, 24
  %v273 = vpack.c.bf16 0.0, %v271
  %274 = vst [vmem:[%s272] sm:$0xf] %v273
  %s275 = scalar_lea.vmem %s0, 368
  %v276 = vld [vmem:[%s275] sm:$0xff]
  %s277 = scalar_lea.vmem %s1, 120
  %v278 = vpack.c.bf16 0.0, %v276
  %279 = vst [vmem:[%s277] sm:$0xf] %v278
  %s280 = scalar_lea.vmem %s0, 176
  %v281 = vld [vmem:[%s280] sm:$0xff]
  %s282 = scalar_lea.vmem %s1, 216
  %v283 = vpack.c.bf16 0.0, %v281
  %284 = vst [vmem:[%s282] sm:$0xf] %v283
  %s285 = scalar_lea.vmem %s0, 496
  %v286 = vld [vmem:[%s285] sm:$0xff]
  %s287 = scalar_lea.vmem %s1, 56
  %v288 = vpack.c.bf16 0.0, %v286
  %289 = vst [vmem:[%s287] sm:$0xf] %v288
  %s290 = scalar_lea.vmem %s0, 304
  %v291 = vld [vmem:[%s290] sm:$0xff]
  %s292 = scalar_lea.vmem %s1, 152
  %v293 = vpack.c.bf16 0.0, %v291
  %294 = vst [vmem:[%s292] sm:$0xf] %v293
  %s295 = scalar_lea.vmem %s0, 112
  %v296 = vld [vmem:[%s295] sm:$0xff]
  %s297 = scalar_lea.vmem %s1, 248
  %v298 = vpack.c.bf16 0.0, %v296
  %299 = vst [vmem:[%s297] sm:$0xf] %v298
  %s300 = scalar_lea.vmem %s0, 432
  %v301 = vld [vmem:[%s300] sm:$0xff]
  %s302 = scalar_lea.vmem %s1, 88
  %v303 = vpack.c.bf16 0.0, %v301
  %304 = vst [vmem:[%s302] sm:$0xf] %v303
  %s305 = scalar_lea.vmem %s0, 240
  %v306 = vld [vmem:[%s305] sm:$0xff]
  %s307 = scalar_lea.vmem %s1, 184
  %v308 = vpack.c.bf16 0.0, %v306
  %309 = vst [vmem:[%s307] sm:$0xf] %v308
  %s310 = scalar_lea.vmem %s0, 48
  %v311 = vld [vmem:[%s310] sm:$0xff]
  %s312 = scalar_lea.vmem %s1, 280
  %v313 = vpack.c.bf16 0.0, %v311
  %314 = vst [vmem:[%s312] sm:$0xf] %v313
  %s315 = scalar_lea.vmem %s0, 568
  %v316 = vld [vmem:[%s315] sm:$0xff]
  %s317 = scalar_lea.vmem %s1, 28
  %v318 = vpack.c.bf16 0.0, %v316
  %319 = vst [vmem:[%s317] sm:$0xf] %v318
  %s320 = scalar_lea.vmem %s0, 376
  %v321 = vld [vmem:[%s320] sm:$0xff]
  %s322 = scalar_lea.vmem %s1, 124
  %v323 = vpack.c.bf16 0.0, %v321
  %324 = vst [vmem:[%s322] sm:$0xf] %v323
  %s325 = scalar_lea.vmem %s0, 184
  %v326 = vld [vmem:[%s325] sm:$0xff]
  %s327 = scalar_lea.vmem %s1, 220
  %v328 = vpack.c.bf16 0.0, %v326
  %329 = vst [vmem:[%s327] sm:$0xf] %v328
  %s330 = scalar_lea.vmem %s0, 504
  %v331 = vld [vmem:[%s330] sm:$0xff]
  %s332 = scalar_lea.vmem %s1, 60
  %v333 = vpack.c.bf16 0.0, %v331
  %334 = vst [vmem:[%s332] sm:$0xf] %v333
  %s335 = scalar_lea.vmem %s0, 312
  %v336 = vld [vmem:[%s335] sm:$0xff]
  %s337 = scalar_lea.vmem %s1, 156
  %v338 = vpack.c.bf16 0.0, %v336
  %339 = vst [vmem:[%s337] sm:$0xf] %v338
  %s340 = scalar_lea.vmem %s0, 120
  %v341 = vld [vmem:[%s340] sm:$0xff]
  %s342 = scalar_lea.vmem %s1, 252
  %v343 = vpack.c.bf16 0.0, %v341
  %344 = vst [vmem:[%s342] sm:$0xf] %v343
  %s345 = scalar_lea.vmem %s0, 440
  %v346 = vld [vmem:[%s345] sm:$0xff]
  %s347 = scalar_lea.vmem %s1, 92
  %v348 = vpack.c.bf16 0.0, %v346
  %349 = vst [vmem:[%s347] sm:$0xf] %v348
  %s350 = scalar_lea.vmem %s0, 248
  %v351 = vld [vmem:[%s350] sm:$0xff]
  %s352 = scalar_lea.vmem %s1, 188
  %v353 = vpack.c.bf16 0.0, %v351
  %354 = vst [vmem:[%s352] sm:$0xf] %v353
  %s355 = scalar_lea.vmem %s0, 56
  %v356 = vld [vmem:[%s355] sm:$0xff]
  %s357 = scalar_lea.vmem %s1, 284
  %v358 = vpack.c.bf16 0.0, %v356
  %359 = vst [vmem:[%s357] sm:$0xf] %v358

// kernel: decoder_forward.7
$region0: #{decoder_forward.7}
  #allocation0 [shape = 'u32[]', space=smem, size = 0x4, offset = 0x4, fixed_abs, tag = 'smem constant byte address 0x4 - core index']
  #allocation1 [shape = 'u32[72,128]{1,0:T(1,128)}', space=vmem, size = 0x9000, scoped, tag = 'internal scratch']
  %s0 = inlined_call_operand.vmem [shape: f32[2,16,326], index: 0, kind: input, shape index: {}]
  %s1 = inlined_call_operand.vmem [shape: bf16[8,144], index: 1, kind: input, shape index: {}]
  %s2 = inlined_call_operand.vmem [shape: f32[8,1], index: 2, kind: input, shape index: {}]
  %s3 = inlined_call_operand.vmem [shape: f32[8,1], index: 3, kind: input, shape index: {}]
  %s4 = inlined_call_operand.vmem [shape: f32[2,8,288], index: 4, kind: output, shape index: {}]
  %s5 = sld [smem:[#allocation0]]
  $region49: #{decoder_forward.7} parent=0
    _
  %s7 = ssub.s32 1, %s5
  %s8 = scalar_select 0, %s7, %s5
  loop: start=0, step=1, limit=4
  $region2: #{decoder_forward.7} parent=0 // loop_pre_header
    _
  $region3: #{decoder_forward.7} parent=0 // loop_header
    %s10 = sphi 0, %s14
    %p11 = scmp.ge.s32.totalorder %s10, 4
    %s20 = sphi 0, %s22
    %s23 = sphi 0, %s20
    %s24 = sphi 0, %s23
    %s40 = sphi 0, %s24
    %s44 = sphi 0, %s44
    %s46 = sphi 0, %s44
    %s47 = sphi 0, %s46
    %s61 = sphi 0, %s47
    %s65 = sphi 0, %s65
    %s67 = sphi 0, %s65
    %s68 = sphi 0, %s67
    %s82 = sphi 0, %s68
    %s86 = sphi 0, %s86
    %s88 = sphi 0, %s86
    %s89 = sphi 0, %s88
    %s103 = sphi 0, %s89
    %s109 = sphi 0, %s111
    %s112 = sphi 0, %s109
    %s113 = sphi 0, %s112
    %s129 = sphi 0, %s113
  $region4: #{decoder_forward.7} parent=0 // loop_header_branch
    %13 = sbr.rel (%p11) target = $region8
  $region5: #{decoder_forward.7} parent=0 // loop_body
    %s15 = ssub.s32 %s10, 1
    %s16 = ssub.s32 %s10, 2
    %s17 = sadd.s32 %s10, 1
    %s18 = ssub.s32 %s10, %s17
    %p19 = scmp.eq.s32.totalorder %s18, 0
    %s21 = sadd.s32 %s20, 1
    %s22 = scalar_select %p19, %s20, %s21
    %p25 = pneg %p19
    %p26 = scmp.eq.s32.totalorder %s10, 1
    %p27 = por %p25, %p26
    %p28 = scmp.ne.s32.totalorder %s20, %s23
    %p29 = scmp.eq.s32.totalorder %s10, 0
    %p30 = por %p28, %p29
    %p31 = scmp.ne.s32.totalorder %s20, %s23
    %p32 = scmp.eq.s32.totalorder %s15, 1
    %p33 = por %p31, %p32
    %p34 = scmp.ne.s32.totalorder %s23, %s24
    %p35 = scmp.eq.s32.totalorder %s15, 0
    %p36 = por %p34, %p35
    %p37 = scmp.ne.s32.totalorder %s23, %s24
    %p38 = scmp.eq.s32.totalorder %s16, 1
    %p39 = por %p37, %p38
    %p41 = scmp.ne.s32.totalorder %s24, %s40
    %p42 = scmp.eq.s32.totalorder %s16, 0
    %p43 = por %p41, %p42
    %s45 = sadd.s32 %s44, 1
    %p48 = scmp.eq.s32.totalorder %s10, 1
    %p49 = scmp.ne.s32.totalorder %s44, %s46
    %p50 = scmp.eq.s32.totalorder %s10, 0
    %p51 = por %p49, %p50
    %p52 = scmp.ne.s32.totalorder %s44, %s46
    %p53 = scmp.eq.s32.totalorder %s15, 1
    %p54 = por %p52, %p53
    %p55 = scmp.ne.s32.totalorder %s46, %s47
    %p56 = scmp.eq.s32.totalorder %s15, 0
    %p57 = por %p55, %p56
    %p58 = scmp.ne.s32.totalorder %s46, %s47
    %p59 = scmp.eq.s32.totalorder %s16, 1
    %p60 = por %p58, %p59
    %p62 = scmp.ne.s32.totalorder %s47, %s61
    %p63 = scmp.eq.s32.totalorder %s16, 0
    %p64 = por %p62, %p63
    %s66 = sadd.s32 %s65, 1
    %p69 = scmp.eq.s32.totalorder %s10, 1
    %p70 = scmp.ne.s32.totalorder %s65, %s67
    %p71 = scmp.eq.s32.totalorder %s10, 0
    %p72 = por %p70, %p71
    %p73 = scmp.ne.s32.totalorder %s65, %s67
    %p74 = scmp.eq.s32.totalorder %s15, 1
    %p75 = por %p73, %p74
    %p76 = scmp.ne.s32.totalorder %s67, %s68
    %p77 = scmp.eq.s32.totalorder %s15, 0
    %p78 = por %p76, %p77
    %p79 = scmp.ne.s32.totalorder %s67, %s68
    %p80 = scmp.eq.s32.totalorder %s16, 1
    %p81 = por %p79, %p80
    %p83 = scmp.ne.s32.totalorder %s68, %s82
    %p84 = scmp.eq.s32.totalorder %s16, 0
    %p85 = por %p83, %p84
    %s87 = sadd.s32 %s86, 1
    %p90 = scmp.eq.s32.totalorder %s10, 1
    %p91 = scmp.ne.s32.totalorder %s86, %s88
    %p92 = scmp.eq.s32.totalorder %s10, 0
    %p93 = por %p91, %p92
    %p94 = scmp.ne.s32.totalorder %s86, %s88
    %p95 = scmp.eq.s32.totalorder %s15, 1
    %p96 = por %p94, %p95
    %p97 = scmp.ne.s32.totalorder %s88, %s89
    %p98 = scmp.eq.s32.totalorder %s15, 0
    %p99 = por %p97, %p98
    %p100 = scmp.ne.s32.totalorder %s88, %s89
    %p101 = scmp.eq.s32.totalorder %s16, 1
    %p102 = por %p100, %p101
    %p104 = scmp.ne.s32.totalorder %s89, %s103
    %p105 = scmp.eq.s32.totalorder %s16, 0
    %p106 = por %p104, %p105
    %s107 = ssub.s32 %s10, %s17
    %p108 = scmp.eq.s32.totalorder %s107, 0
    %s110 = sadd.s32 %s109, 1
    %s111 = scalar_select %p108, %s109, %s110
    %p114 = pneg %p108
    %p115 = scmp.eq.s32.totalorder %s10, 1
    %p116 = por %p114, %p115
    %p117 = scmp.ne.s32.totalorder %s109, %s112
    %p118 = scmp.eq.s32.totalorder %s10, 0
    %p119 = por %p117, %p118
    %p120 = scmp.ne.s32.totalorder %s109, %s112
    %p121 = scmp.eq.s32.totalorder %s15, 1
    %p122 = por %p120, %p121
    %p123 = scmp.ne.s32.totalorder %s112, %s113
    %p124 = scmp.eq.s32.totalorder %s15, 0
    %p125 = por %p123, %p124
    %p126 = scmp.ne.s32.totalorder %s112, %s113
    %p127 = scmp.eq.s32.totalorder %s16, 1
    %p128 = por %p126, %p127
    %p130 = scmp.ne.s32.totalorder %s113, %s129
    %p131 = scmp.eq.s32.totalorder %s16, 0
    %p132 = por %p130, %p131
    %p133 = scmp.le.s32.totalorder 1, %s10
    %p134 = scmp.lt.s32.totalorder %s10, 3
    %p135 = pnand %p133, %p134
    %p136 = pneg %p135
    // Predicated region
    $region9: #{decoder_forward.7} parent=5 // pred_check
      _
    $region10: #{decoder_forward.7} parent=5 // pred_check_branch
      %138 = sbr.rel (%p135) target = $region12
    $region11: #{decoder_forward.7} parent=5 // pred_region
      %s139 = ssub.s32 %s10, 1
      // Predicated region
      $region13: #{decoder_forward.7} parent=11 // pred_check
        %p140 = pneg %p57
      $region14: #{decoder_forward.7} parent=11 // pred_check_branch
        %142 = sbr.rel (%p140) target = $region16
      $region15: #{decoder_forward.7} parent=11 // pred_region
        _
      $region16: #{decoder_forward.7} parent=11 // pred_fallthru
        _
      // Predicated region
      $region17: #{decoder_forward.7} parent=11 // pred_check
        %p143 = pneg %p78
      $region18: #{decoder_forward.7} parent=11 // pred_check_branch
        %145 = sbr.rel (%p143) target = $region20
      $region19: #{decoder_forward.7} parent=11 // pred_region
        _
      $region20: #{decoder_forward.7} parent=11 // pred_fallthru
        _
      // Predicated region
      $region21: #{decoder_forward.7} parent=11 // pred_check
        %p146 = pneg %p99
      $region22: #{decoder_forward.7} parent=11 // pred_check_branch
        %148 = sbr.rel (%p146) target = $region24
      $region23: #{decoder_forward.7} parent=11 // pred_region
        _
      $region24: #{decoder_forward.7} parent=11 // pred_fallthru
        _
    $region12: #{decoder_forward.7} parent=5 // pred_fallthru
      _
    %p149 = scmp.lt.s32.totalorder %s10, 2
    // Predicated region
    $region25: #{decoder_forward.7} parent=5 // pred_check
      %p150 = pneg %p149
    $region26: #{decoder_forward.7} parent=5 // pred_check_branch
      %152 = sbr.rel (%p150) target = $region28
    $region27: #{decoder_forward.7} parent=5 // pred_region
      // Predicated region
      $region29: #{decoder_forward.7} parent=27 // pred_check
        %p153 = pneg %p30
      $region30: #{decoder_forward.7} parent=27 // pred_check_branch
        %155 = sbr.rel (%p153) target = $region32
      $region31: #{decoder_forward.7} parent=27 // pred_region
        %p156 = scmp.lt.s32.totalorder %s10, 1
        %s157 = scalar_select %p156, %s10, 1
        %s158 = smul.addr %s157, 6
        %s159 = smul.addr %s158, 8
        %s160 = scalar_lea.vmem %s0, %s159
      $region32: #{decoder_forward.7} parent=27 // pred_fallthru
        _
    $region28: #{decoder_forward.7} parent=5 // pred_fallthru
      _
    %p161 = scmp.le.s32.totalorder 1, %s10
    %p162 = scmp.lt.s32.totalorder %s10, 3
    %p163 = pnand %p161, %p162
    %p164 = pneg %p163
    // Predicated region
    $region33: #{decoder_forward.7} parent=5 // pred_check
      _
    $region34: #{decoder_forward.7} parent=5 // pred_check_branch
      %166 = sbr.rel (%p163) target = $region36
    $region35: #{decoder_forward.7} parent=5 // pred_region
      %s167 = ssub.s32 %s10, 1
      %p168 = scmp.lt.s32.totalorder %s15, 1
      %s169 = scalar_select %p168, %s15, 1
      %s170 = smul.addr %s169, 6
      %s171 = smul.addr %s170, 8
      %s172 = scalar_lea.vmem %s0, %s171
      %p173 = pneg %p36
      %p174 = pneg %p33
      %p175 = pneg %p57
      %p176 = pneg %p54
      %p177 = pneg %p78
      %p178 = pneg %p75
      %p179 = pneg %p99
      %p180 = pneg %p96
      %p181 = pneg %p125
      %p182 = pneg %p122
      %p183 = scmp.lt.s32.totalorder %s15, 1
      %s184 = scalar_select %p183, %s15, 1
      %s185 = smul.addr %s184, 3
      %s186 = smul.addr %s185, 8
      %s187 = scalar_lea.vmem %s4, %s186
      %p188 = scmp.lt.s32.totalorder %s15, 1
      %s189 = scalar_select %p188, %s15, 1
      %s190 = smul.addr %s189, 6
      %s191 = smul.addr %s190, 8
      %s192 = scalar_lea.vmem %s0, %s191
      %p193 = scmp.lt.s32.totalorder %s15, 1
      %s194 = scalar_select %p193, %s15, 1
      %s195 = smul.addr %s194, 3
      %s196 = smul.addr %s195, 8
      %s197 = scalar_lea.vmem %s4, %s196
      %v199 = vld [vmem:[%s192] sm:$0xff]
      %v200 = vld [vmem:[%s192 + $0x8] sm:$0xff]
      %v201 = vld [vmem:[%s192 + $0x10] sm:$0xff]
      %v202 = vld [vmem:[%s192 + $0x18] sm:$0xff]
      %v203 = vld [vmem:[%s192 + $0x20] sm:$0xff]
      %v204 = vld [vmem:[%s192 + $0x28] sm:$0xff]
      %211 = vrot.lane.b32.xlu0 %v199, 127
      %v212 = vpop.permute.xlu0 %211
      %213 = vrot.lane.b32.xlu0 %v200, 127
      %v214 = vpop.permute.xlu0 %213
      %215 = vrot.lane.b32.xlu0 %v201, 127
      %v216 = vpop.permute.xlu0 %215
      %217 = vrot.lane.b32.xlu0 %v202, 127
      %v218 = vpop.permute.xlu0 %217
      %219 = vrot.lane.b32.xlu0 %v203, 127
      %v220 = vpop.permute.xlu0 %219
      %221 = vrot.lane.b32.xlu0 %v204, 127
      %v222 = vpop.permute.xlu0 %221
      %vm223 = vcmask 1039360
      %v224 = vsel %vm223, %v212, %v214
      %v225 = vsel %vm223, %v214, %v216
      %v226 = vsel %vm223, %v218, %v220
      %v227 = vsel %vm223, %v220, %v222
      %234 = vrot.lane.b32.xlu0 %v199, 126
      %v235 = vpop.permute.xlu0 %234
      %236 = vrot.lane.b32.xlu0 %v200, 126
      %v237 = vpop.permute.xlu0 %236
      %238 = vrot.lane.b32.xlu0 %v201, 126
      %v239 = vpop.permute.xlu0 %238
      %240 = vrot.lane.b32.xlu0 %v202, 126
      %v241 = vpop.permute.xlu0 %240
      %242 = vrot.lane.b32.xlu0 %v203, 126
      %v243 = vpop.permute.xlu0 %242
      %244 = vrot.lane.b32.xlu0 %v204, 126
      %v245 = vpop.permute.xlu0 %244
      %vm246 = vcmask 1031168
      %v247 = vsel %vm246, %v235, %v237
      %v248 = vsel %vm246, %v237, %v239
      %v249 = vsel %vm246, %v241, %v243
      %v250 = vsel %vm246, %v243, %v245
      %257 = vrot.lane.b32.xlu0 %v199, 110
      %v258 = vpop.permute.xlu0 %257
      %259 = vrot.lane.b32.xlu0 %v200, 110
      %v260 = vpop.permute.xlu0 %259
      %261 = vrot.lane.b32.xlu0 %v201, 110
      %v262 = vpop.permute.xlu0 %261
      %263 = vrot.lane.b32.xlu0 %v202, 110
      %v264 = vpop.permute.xlu0 %263
      %265 = vrot.lane.b32.xlu0 %v203, 110
      %v266 = vpop.permute.xlu0 %265
      %267 = vrot.lane.b32.xlu0 %v204, 110
      %v268 = vpop.permute.xlu0 %267
      %vm269 = vcmask 900096
      %v270 = vsel %vm269, %v258, %v260
      %v271 = vsel %vm269, %v260, %v262
      %v272 = vsel %vm269, %v264, %v266
      %v273 = vsel %vm269, %v266, %v268
      %280 = vrot.lane.b32.xlu0 %v199, 109
      %v281 = vpop.permute.xlu0 %280
      %282 = vrot.lane.b32.xlu0 %v200, 109
      %v283 = vpop.permute.xlu0 %282
      %284 = vrot.lane.b32.xlu0 %v201, 109
      %v285 = vpop.permute.xlu0 %284
      %286 = vrot.lane.b32.xlu0 %v202, 109
      %v287 = vpop.permute.xlu0 %286
      %288 = vrot.lane.b32.xlu0 %v203, 109
      %v289 = vpop.permute.xlu0 %288
      %290 = vrot.lane.b32.xlu0 %v204, 109
      %v291 = vpop.permute.xlu0 %290
      %vm292 = vcmask 891904
      %v293 = vsel %vm292, %v281, %v283
      %v294 = vsel %vm292, %v283, %v285
      %v295 = vsel %vm292, %v287, %v289
      %v296 = vsel %vm292, %v289, %v291
      %303 = vrot.lane.b32.xlu0 %v199, 108
      %v304 = vpop.permute.xlu0 %303
      %305 = vrot.lane.b32.xlu0 %v200, 108
      %v306 = vpop.permute.xlu0 %305
      %307 = vrot.lane.b32.xlu0 %v201, 108
      %v308 = vpop.permute.xlu0 %307
      %309 = vrot.lane.b32.xlu0 %v202, 108
      %v310 = vpop.permute.xlu0 %309
      %311 = vrot.lane.b32.xlu0 %v203, 108
      %v312 = vpop.permute.xlu0 %311
      %313 = vrot.lane.b32.xlu0 %v204, 108
      %v314 = vpop.permute.xlu0 %313
      %vm315 = vcmask 883712
      %v316 = vsel %vm315, %v304, %v306
      %v317 = vsel %vm315, %v306, %v308
      %v318 = vsel %vm315, %v310, %v312
      %v319 = vsel %vm315, %v312, %v314
      %326 = vrot.lane.b32.xlu0 %v199, 92
      %v327 = vpop.permute.xlu0 %326
      %328 = vrot.lane.b32.xlu0 %v200, 92
      %v329 = vpop.permute.xlu0 %328
      %330 = vrot.lane.b32.xlu0 %v201, 92
      %v331 = vpop.permute.xlu0 %330
      %332 = vrot.lane.b32.xlu0 %v202, 92
      %v333 = vpop.permute.xlu0 %332
      %334 = vrot.lane.b32.xlu0 %v203, 92
      %v335 = vpop.permute.xlu0 %334
      %336 = vrot.lane.b32.xlu0 %v204, 92
      %v337 = vpop.permute.xlu0 %336
      %vm338 = vcmask 752640
      %v339 = vsel %vm338, %v327, %v329
      %v340 = vsel %vm338, %v329, %v331
      %v341 = vsel %vm338, %v333, %v335
      %v342 = vsel %vm338, %v335, %v337
      %349 = vrot.lane.b32.xlu0 %v199, 91
      %v350 = vpop.permute.xlu0 %349
      %351 = vrot.lane.b32.xlu0 %v200, 91
      %v352 = vpop.permute.xlu0 %351
      %353 = vrot.lane.b32.xlu0 %v201, 91
      %v354 = vpop.permute.xlu0 %353
      %355 = vrot.lane.b32.xlu0 %v202, 91
      %v356 = vpop.permute.xlu0 %355
      %357 = vrot.lane.b32.xlu0 %v203, 91
      %v358 = vpop.permute.xlu0 %357
      %359 = vrot.lane.b32.xlu0 %v204, 91
      %v360 = vpop.permute.xlu0 %359
      %vm361 = vcmask 744448
      %v362 = vsel %vm361, %v350, %v352
      %v363 = vsel %vm361, %v352, %v354
      %v364 = vsel %vm361, %v356, %v358
      %v365 = vsel %vm361, %v358, %v360
      %372 = vrot.lane.b32.xlu0 %v199, 90
      %v373 = vpop.permute.xlu0 %372
      %374 = vrot.lane.b32.xlu0 %v200, 90
      %v375 = vpop.permute.xlu0 %374
      %376 = vrot.lane.b32.xlu0 %v201, 90
      %v377 = vpop.permute.xlu0 %376
      %378 = vrot.lane.b32.xlu0 %v202, 90
      %v379 = vpop.permute.xlu0 %378
      %380 = vrot.lane.b32.xlu0 %v203, 90
      %v381 = vpop.permute.xlu0 %380
      %382 = vrot.lane.b32.xlu0 %v204, 90
      %v383 = vpop.permute.xlu0 %382
      %vm384 = vcmask 736256
      %v385 = vsel %vm384, %v373, %v375
      %v386 = vsel %vm384, %v375, %v377
      %v387 = vsel %vm384, %v379, %v381
      %v388 = vsel %vm384, %v381, %v383
      %v395 = vpack.c.bf16 %v202, %v199
      %v396 = vpack.c.bf16 %v203, %v200
      %v397 = vpack.c.bf16 %v204, %v201
      %v398 = vpack.c.bf16 %v226, %v224
      %v399 = vpack.c.bf16 %v227, %v225
      %v400 = vpack.c.bf16 %v222, %v216
      %v401 = vpack.c.bf16 %v249, %v247
      %v402 = vpack.c.bf16 %v250, %v248
      %v403 = vpack.c.bf16 %v245, %v239
      %v404 = vpack.c.bf16 %v272, %v270
      %v405 = vpack.c.bf16 %v273, %v271
      %v406 = vpack.c.bf16 %v268, %v262
      %v407 = vpack.c.bf16 %v295, %v293
      %v408 = vpack.c.bf16 %v296, %v294
      %v409 = vpack.c.bf16 %v291, %v285
      %v410 = vpack.c.bf16 %v318, %v316
      %v411 = vpack.c.bf16 %v319, %v317
      %v412 = vpack.c.bf16 %v314, %v308
      %v413 = vpack.c.bf16 %v341, %v339
      %v414 = vpack.c.bf16 %v342, %v340
      %v415 = vpack.c.bf16 %v337, %v331
      %v416 = vpack.c.bf16 %v364, %v362
      %v417 = vpack.c.bf16 %v365, %v363
      %v418 = vpack.c.bf16 %v360, %v354
      %v419 = vpack.c.bf16 %v387, %v385
      %v420 = vpack.c.bf16 %v388, %v386
      %v421 = vpack.c.bf16 %v383, %v377
      %v422 = vld [vmem:[%s1] sm:$0xff]
      %v424 = vunpack.c.l.b16 %v422
      %v425 = vunpack.c.h.b16 %v422
      %v426 = vpack.c.b16 %v424, %v424
      %v427 = vpack.c.b16 %v425, %v425
      %vm429 = vcmask 130048
      %v431 = vsel %vm429, %v427, 0
      %433 = vmatpush.bf16.msra.mxu0 %v416
      %434 = vmatpush.bf16.msra.mxu0 %v413
      %435 = vmatpush.bf16.msra.mxu0 %v410
      %436 = vmatpush.bf16.msra.mxu0 %v407
      %437 = vmatpush.bf16.msra.mxu0 %v404
      %438 = vmatpush.bf16.msra.mxu0 %v401
      %439 = vmatpush.bf16.msra.mxu0 %v398
      %440 = vmatpush.bf16.msra.mxu0 %v395
      %441 = vmatmul.bf16.gmra.mxu0 %v426
      %v442 = vpop.f32.mrf.mxu0
      %v443 = vadd.f32 0.0, %v442
      %v444 = vpop.f32.mrf.mxu0
      %445 = vdwg.mxu0
      %446 = vmatpush.bf16.msra.mxu0 0
      %447 = vmatpush.bf16.msra.mxu0 0
      %448 = vmatpush.bf16.msra.mxu0 0
      %449 = vmatpush.bf16.msra.mxu0 0
      %450 = vmatpush.bf16.msra.mxu0 0
      %451 = vmatpush.bf16.msra.mxu0 0
      %452 = vmatpush.bf16.msra.mxu0 0
      %453 = vmatpush.bf16.msra.mxu0 %v419
      %454 = vmatmul.bf16.gmra.mxu0 %v431
      %v455 = vpop.f32.mrf.mxu0
      %v456 = vadd.f32 %v443, %v455
      %v457 = vpop.f32.mrf.mxu0
      %458 = vdwg.mxu0
      %459 = vmatpush.bf16.msra.mxu0 %v417
      %460 = vmatpush.bf16.msra.mxu0 %v414
      %461 = vmatpush.bf16.msra.mxu0 %v411
      %462 = vmatpush.bf16.msra.mxu0 %v408
      %463 = vmatpush.bf16.msra.mxu0 %v405
      %464 = vmatpush.bf16.msra.mxu0 %v402
      %465 = vmatpush.bf16.msra.mxu0 %v399
      %466 = vmatpush.bf16.msra.mxu0 %v396
      %467 = vmatmul.bf16.gmra.mxu0 %v426
      %v468 = vpop.f32.mrf.mxu0
      %v469 = vadd.f32 0.0, %v468
      %v470 = vpop.f32.mrf.mxu0
      %471 = vdwg.mxu0
      %472 = vmatpush.bf16.msra.mxu0 0
      %473 = vmatpush.bf16.msra.mxu0 0
      %474 = vmatpush.bf16.msra.mxu0 0
      %475 = vmatpush.bf16.msra.mxu0 0
      %476 = vmatpush.bf16.msra.mxu0 0
      %477 = vmatpush.bf16.msra.mxu0 0
      %478 = vmatpush.bf16.msra.mxu0 0
      %479 = vmatpush.bf16.msra.mxu0 %v420
      %480 = vmatmul.bf16.gmra.mxu0 %v431
      %v481 = vpop.f32.mrf.mxu0
      %v482 = vadd.f32 %v469, %v481
      %v483 = vpop.f32.mrf.mxu0
      %484 = vdwg.mxu0
      %485 = vmatpush.bf16.msra.mxu0 %v418
      %486 = vmatpush.bf16.msra.mxu0 %v415
      %487 = vmatpush.bf16.msra.mxu0 %v412
      %488 = vmatpush.bf16.msra.mxu0 %v409
      %489 = vmatpush.bf16.msra.mxu0 %v406
      %490 = vmatpush.bf16.msra.mxu0 %v403
      %491 = vmatpush.bf16.msra.mxu0 %v400
      %492 = vmatpush.bf16.msra.mxu0 %v397
      %493 = vmatmul.bf16.gmra.mxu0 %v426
      %v494 = vpop.f32.mrf.mxu0
      %v495 = vadd.f32 0.0, %v494
      %v496 = vpop.f32.mrf.mxu0
      %497 = vdwg.mxu0
      %498 = vmatpush.bf16.msra.mxu0 0
      %499 = vmatpush.bf16.msra.mxu0 0
      %500 = vmatpush.bf16.msra.mxu0 0
      %501 = vmatpush.bf16.msra.mxu0 0
      %502 = vmatpush.bf16.msra.mxu0 0
      %503 = vmatpush.bf16.msra.mxu0 0
      %504 = vmatpush.bf16.msra.mxu0 0
      %505 = vmatpush.bf16.msra.mxu0 %v421
      %506 = vmatmul.bf16.gmra.mxu0 %v431
      %v507 = vpop.f32.mrf.mxu0
      %v508 = vadd.f32 %v495, %v507
      %v509 = vpop.f32.mrf.mxu0
      %510 = vdwg.mxu0
      %v511 = vld [vmem:[%s2] sm:$0xff]
      %513 = vset.pattern.permute.xlu0 0
      %514 = vperm.xlu0 %513, %v511
      %v515 = vpop.permute.xlu0 %514
      %v517 = vmul.f32 %v456, %v515
      %v518 = vmul.f32 %v482, %v515
      %v519 = vmul.f32 %v508, %v515
      %v520 = vld [vmem:[%s3] sm:$0xff]
      %522 = vset.pattern.permute.xlu0 0
      %523 = vperm.xlu0 %522, %v520
      %v524 = vpop.permute.xlu0 %523
      %v526 = vadd.f32 %v517, %v524
      %v527 = vadd.f32 %v518, %v524
      %v528 = vadd.f32 %v519, %v524
      %v529 = vmax.f32 %v526, 0.0
      %v530 = vmax.f32 %v527, 0.0
      %v531 = vmax.f32 %v528, 0.0
      %532 = vst [vmem:[%s197] sm:$0xff] %v529
      %533 = vst [vmem:[%s197 + $0x8] sm:$0xff] %v530
      %vm534 = vcmask 261120
      %535 = vst.msk [vmem:[%s197 + $0x10] sm:$0xff] %vm534, %v531
      %p536 = scmp.lt.s32.totalorder %s15, 1
      %s537 = scalar_select %p536, %s15, 1
      %s538 = smul.addr %s537, 3
      %s539 = smul.addr %s538, 8
      %s540 = scalar_lea.vmem %s4, %s539
      // Predicated region
      $region37: #{decoder_forward.7} parent=35 // pred_check
        %p541 = pneg %p122
      $region38: #{decoder_forward.7} parent=35 // pred_check_branch
        %543 = sbr.rel (%p541) target = $region40
      $region39: #{decoder_forward.7} parent=35 // pred_region
        _
      $region40: #{decoder_forward.7} parent=35 // pred_fallthru
        _
    $region36: #{decoder_forward.7} parent=5 // pred_fallthru
      _
    %p544 = scmp.le.s32.totalorder 2, %s10
    // Predicated region
    $region41: #{decoder_forward.7} parent=5 // pred_check
      %p545 = pneg %p544
    $region42: #{decoder_forward.7} parent=5 // pred_check_branch
      %547 = sbr.rel (%p545) target = $region44
    $region43: #{decoder_forward.7} parent=5 // pred_region
      %s548 = ssub.s32 %s10, 2
      // Predicated region
      $region45: #{decoder_forward.7} parent=43 // pred_check
        %p549 = pneg %p128
      $region46: #{decoder_forward.7} parent=43 // pred_check_branch
        %551 = sbr.rel (%p549) target = $region48
      $region47: #{decoder_forward.7} parent=43 // pred_region
        %p552 = scmp.lt.s32.totalorder %s16, 1
        %s553 = scalar_select %p552, %s16, 1
        %s554 = smul.addr %s553, 3
        %s555 = smul.addr %s554, 8
        %s556 = scalar_lea.vmem %s4, %s555
      $region48: #{decoder_forward.7} parent=43 // pred_fallthru
        _
    $region44: #{decoder_forward.7} parent=5 // pred_fallthru
      _
  $region6: #{decoder_forward.7} parent=0 // loop_footer
    %s14 = sadd.s32 1, %s10
  $region7: #{decoder_forward.7} parent=0 // loop_footer_branch
    %9 = sbr.rel target = $region3
  $region8: #{decoder_forward.7} parent=0 // loop_exit
    _

// kernel: decoder_forward.9
$region0: #{decoder_forward.9}
  #allocation0 [shape = 'u32[]', space=smem, size = 0x4, offset = 0x4, fixed_abs, tag = 'smem constant byte address 0x4 - core index']
  #allocation1 [shape = 'u32[72,128]{1,0:T(1,128)}', space=vmem, size = 0x9000, scoped, tag = 'internal scratch']
  %s0 = inlined_call_operand.vmem [shape: f32[2,8,326], index: 0, kind: input, shape index: {}]
  %s1 = inlined_call_operand.vmem [shape: bf16[8,72], index: 1, kind: input, shape index: {}]
  %s2 = inlined_call_operand.vmem [shape: f32[8,1], index: 2, kind: input, shape index: {}]
  %s3 = inlined_call_operand.vmem [shape: f32[8,1], index: 3, kind: input, shape index: {}]
  %s4 = inlined_call_operand.vmem [shape: f32[2,8,288], index: 4, kind: output, shape index: {}]
  %s5 = sld [smem:[#allocation0]]
  $region49: #{decoder_forward.9} parent=0
    _
  %s7 = ssub.s32 1, %s5
  %s8 = scalar_select 0, %s7, %s5
  loop: start=0, step=1, limit=4
  $region2: #{decoder_forward.9} parent=0 // loop_pre_header
    _
  $region3: #{decoder_forward.9} parent=0 // loop_header
    %s10 = sphi 0, %s14
    %p11 = scmp.ge.s32.totalorder %s10, 4
    %s20 = sphi 0, %s22
    %s23 = sphi 0, %s20
    %s24 = sphi 0, %s23
    %s40 = sphi 0, %s24
    %s44 = sphi 0, %s44
    %s46 = sphi 0, %s44
    %s47 = sphi 0, %s46
    %s61 = sphi 0, %s47
    %s65 = sphi 0, %s65
    %s67 = sphi 0, %s65
    %s68 = sphi 0, %s67
    %s82 = sphi 0, %s68
    %s86 = sphi 0, %s86
    %s88 = sphi 0, %s86
    %s89 = sphi 0, %s88
    %s103 = sphi 0, %s89
    %s109 = sphi 0, %s111
    %s112 = sphi 0, %s109
    %s113 = sphi 0, %s112
    %s129 = sphi 0, %s113
  $region4: #{decoder_forward.9} parent=0 // loop_header_branch
    %13 = sbr.rel (%p11) target = $region8
  $region5: #{decoder_forward.9} parent=0 // loop_body
    %s15 = ssub.s32 %s10, 1
    %s16 = ssub.s32 %s10, 2
    %s17 = sadd.s32 %s10, 1
    %s18 = ssub.s32 %s10, %s17
    %p19 = scmp.eq.s32.totalorder %s18, 0
    %s21 = sadd.s32 %s20, 1
    %s22 = scalar_select %p19, %s20, %s21
    %p25 = pneg %p19
    %p26 = scmp.eq.s32.totalorder %s10, 1
    %p27 = por %p25, %p26
    %p28 = scmp.ne.s32.totalorder %s20, %s23
    %p29 = scmp.eq.s32.totalorder %s10, 0
    %p30 = por %p28, %p29
    %p31 = scmp.ne.s32.totalorder %s20, %s23
    %p32 = scmp.eq.s32.totalorder %s15, 1
    %p33 = por %p31, %p32
    %p34 = scmp.ne.s32.totalorder %s23, %s24
    %p35 = scmp.eq.s32.totalorder %s15, 0
    %p36 = por %p34, %p35
    %p37 = scmp.ne.s32.totalorder %s23, %s24
    %p38 = scmp.eq.s32.totalorder %s16, 1
    %p39 = por %p37, %p38
    %p41 = scmp.ne.s32.totalorder %s24, %s40
    %p42 = scmp.eq.s32.totalorder %s16, 0
    %p43 = por %p41, %p42
    %s45 = sadd.s32 %s44, 1
    %p48 = scmp.eq.s32.totalorder %s10, 1
    %p49 = scmp.ne.s32.totalorder %s44, %s46
    %p50 = scmp.eq.s32.totalorder %s10, 0
    %p51 = por %p49, %p50
    %p52 = scmp.ne.s32.totalorder %s44, %s46
    %p53 = scmp.eq.s32.totalorder %s15, 1
    %p54 = por %p52, %p53
    %p55 = scmp.ne.s32.totalorder %s46, %s47
    %p56 = scmp.eq.s32.totalorder %s15, 0
    %p57 = por %p55, %p56
    %p58 = scmp.ne.s32.totalorder %s46, %s47
    %p59 = scmp.eq.s32.totalorder %s16, 1
    %p60 = por %p58, %p59
    %p62 = scmp.ne.s32.totalorder %s47, %s61
    %p63 = scmp.eq.s32.totalorder %s16, 0
    %p64 = por %p62, %p63
    %s66 = sadd.s32 %s65, 1
    %p69 = scmp.eq.s32.totalorder %s10, 1
    %p70 = scmp.ne.s32.totalorder %s65, %s67
    %p71 = scmp.eq.s32.totalorder %s10, 0
    %p72 = por %p70, %p71
    %p73 = scmp.ne.s32.totalorder %s65, %s67
    %p74 = scmp.eq.s32.totalorder %s15, 1
    %p75 = por %p73, %p74
    %p76 = scmp.ne.s32.totalorder %s67, %s68
    %p77 = scmp.eq.s32.totalorder %s15, 0
    %p78 = por %p76, %p77
    %p79 = scmp.ne.s32.totalorder %s67, %s68
    %p80 = scmp.eq.s32.totalorder %s16, 1
    %p81 = por %p79, %p80
    %p83 = scmp.ne.s32.totalorder %s68, %s82
    %p84 = scmp.eq.s32.totalorder %s16, 0
    %p85 = por %p83, %p84
    %s87 = sadd.s32 %s86, 1
    %p90 = scmp.eq.s32.totalorder %s10, 1
    %p91 = scmp.ne.s32.totalorder %s86, %s88
    %p92 = scmp.eq.s32.totalorder %s10, 0
    %p93 = por %p91, %p92
    %p94 = scmp.ne.s32.totalorder %s86, %s88
    %p95 = scmp.eq.s32.totalorder %s15, 1
    %p96 = por %p94, %p95
    %p97 = scmp.ne.s32.totalorder %s88, %s89
    %p98 = scmp.eq.s32.totalorder %s15, 0
    %p99 = por %p97, %p98
    %p100 = scmp.ne.s32.totalorder %s88, %s89
    %p101 = scmp.eq.s32.totalorder %s16, 1
    %p102 = por %p100, %p101
    %p104 = scmp.ne.s32.totalorder %s89, %s103
    %p105 = scmp.eq.s32.totalorder %s16, 0
    %p106 = por %p104, %p105
    %s107 = ssub.s32 %s10, %s17
    %p108 = scmp.eq.s32.totalorder %s107, 0
    %s110 = sadd.s32 %s109, 1
    %s111 = scalar_select %p108, %s109, %s110
    %p114 = pneg %p108
    %p115 = scmp.eq.s32.totalorder %s10, 1
    %p116 = por %p114, %p115
    %p117 = scmp.ne.s32.totalorder %s109, %s112
    %p118 = scmp.eq.s32.totalorder %s10, 0
    %p119 = por %p117, %p118
    %p120 = scmp.ne.s32.totalorder %s109, %s112
    %p121 = scmp.eq.s32.totalorder %s15, 1
    %p122 = por %p120, %p121
    %p123 = scmp.ne.s32.totalorder %s112, %s113
    %p124 = scmp.eq.s32.totalorder %s15, 0
    %p125 = por %p123, %p124
    %p126 = scmp.ne.s32.totalorder %s112, %s113
    %p127 = scmp.eq.s32.totalorder %s16, 1
    %p128 = por %p126, %p127
    %p130 = scmp.ne.s32.totalorder %s113, %s129
    %p131 = scmp.eq.s32.totalorder %s16, 0
    %p132 = por %p130, %p131
    %p133 = scmp.le.s32.totalorder 1, %s10
    %p134 = scmp.lt.s32.totalorder %s10, 3
    %p135 = pnand %p133, %p134
    %p136 = pneg %p135
    // Predicated region
    $region9: #{decoder_forward.9} parent=5 // pred_check
      _
    $region10: #{decoder_forward.9} parent=5 // pred_check_branch
      %138 = sbr.rel (%p135) target = $region12
    $region11: #{decoder_forward.9} parent=5 // pred_region
      %s139 = ssub.s32 %s10, 1
      // Predicated region
      $region13: #{decoder_forward.9} parent=11 // pred_check
        %p140 = pneg %p57
      $region14: #{decoder_forward.9} parent=11 // pred_check_branch
        %142 = sbr.rel (%p140) target = $region16
      $region15: #{decoder_forward.9} parent=11 // pred_region
        _
      $region16: #{decoder_forward.9} parent=11 // pred_fallthru
        _
      // Predicated region
      $region17: #{decoder_forward.9} parent=11 // pred_check
        %p143 = pneg %p78
      $region18: #{decoder_forward.9} parent=11 // pred_check_branch
        %145 = sbr.rel (%p143) target = $region20
      $region19: #{decoder_forward.9} parent=11 // pred_region
        _
      $region20: #{decoder_forward.9} parent=11 // pred_fallthru
        _
      // Predicated region
      $region21: #{decoder_forward.9} parent=11 // pred_check
        %p146 = pneg %p99
      $region22: #{decoder_forward.9} parent=11 // pred_check_branch
        %148 = sbr.rel (%p146) target = $region24
      $region23: #{decoder_forward.9} parent=11 // pred_region
        _
      $region24: #{decoder_forward.9} parent=11 // pred_fallthru
        _
    $region12: #{decoder_forward.9} parent=5 // pred_fallthru
      _
    %p149 = scmp.lt.s32.totalorder %s10, 2
    // Predicated region
    $region25: #{decoder_forward.9} parent=5 // pred_check
      %p150 = pneg %p149
    $region26: #{decoder_forward.9} parent=5 // pred_check_branch
      %152 = sbr.rel (%p150) target = $region28
    $region27: #{decoder_forward.9} parent=5 // pred_region
      // Predicated region
      $region29: #{decoder_forward.9} parent=27 // pred_check
        %p153 = pneg %p30
      $region30: #{decoder_forward.9} parent=27 // pred_check_branch
        %155 = sbr.rel (%p153) target = $region32
      $region31: #{decoder_forward.9} parent=27 // pred_region
        %p156 = scmp.lt.s32.totalorder %s10, 1
        %s157 = scalar_select %p156, %s10, 1
        %s158 = smul.addr %s157, 3
        %s159 = smul.addr %s158, 8
        %s160 = scalar_lea.vmem %s0, %s159
      $region32: #{decoder_forward.9} parent=27 // pred_fallthru
        _
    $region28: #{decoder_forward.9} parent=5 // pred_fallthru
      _
    %p161 = scmp.le.s32.totalorder 1, %s10
    %p162 = scmp.lt.s32.totalorder %s10, 3
    %p163 = pnand %p161, %p162
    %p164 = pneg %p163
    // Predicated region
    $region33: #{decoder_forward.9} parent=5 // pred_check
      _
    $region34: #{decoder_forward.9} parent=5 // pred_check_branch
      %166 = sbr.rel (%p163) target = $region36
    $region35: #{decoder_forward.9} parent=5 // pred_region
      %s167 = ssub.s32 %s10, 1
      %p168 = scmp.lt.s32.totalorder %s15, 1
      %s169 = scalar_select %p168, %s15, 1
      %s170 = smul.addr %s169, 3
      %s171 = smul.addr %s170, 8
      %s172 = scalar_lea.vmem %s0, %s171
      %p173 = pneg %p36
      %p174 = pneg %p33
      %p175 = pneg %p57
      %p176 = pneg %p54
      %p177 = pneg %p78
      %p178 = pneg %p75
      %p179 = pneg %p99
      %p180 = pneg %p96
      %p181 = pneg %p125
      %p182 = pneg %p122
      %p183 = scmp.lt.s32.totalorder %s15, 1
      %s184 = scalar_select %p183, %s15, 1
      %s185 = smul.addr %s184, 3
      %s186 = smul.addr %s185, 8
      %s187 = scalar_lea.vmem %s4, %s186
      %p188 = scmp.lt.s32.totalorder %s15, 1
      %s189 = scalar_select %p188, %s15, 1
      %s190 = smul.addr %s189, 3
      %s191 = smul.addr %s190, 8
      %s192 = scalar_lea.vmem %s0, %s191
      %p193 = scmp.lt.s32.totalorder %s15, 1
      %s194 = scalar_select %p193, %s15, 1
      %s195 = smul.addr %s194, 3
      %s196 = smul.addr %s195, 8
      %s197 = scalar_lea.vmem %s4, %s196
      %v199 = vld [vmem:[%s192] sm:$0xff]
      %v200 = vld [vmem:[%s192 + $0x8] sm:$0xff]
      %v201 = vld [vmem:[%s192 + $0x10] sm:$0xff]
      %205 = vrot.lane.b32.xlu0 %v199, 127
      %v206 = vpop.permute.xlu0 %205
      %207 = vrot.lane.b32.xlu0 %v200, 127
      %v208 = vpop.permute.xlu0 %207
      %209 = vrot.lane.b32.xlu0 %v201, 127
      %v210 = vpop.permute.xlu0 %209
      %vm211 = vcmask 1039360
      %v212 = vsel %vm211, %v206, %v208
      %v213 = vsel %vm211, %v208, %v210
      %217 = vrot.lane.b32.xlu0 %v199, 126
      %v218 = vpop.permute.xlu0 %217
      %219 = vrot.lane.b32.xlu0 %v200, 126
      %v220 = vpop.permute.xlu0 %219
      %221 = vrot.lane.b32.xlu0 %v201, 126
      %v222 = vpop.permute.xlu0 %221
      %vm223 = vcmask 1031168
      %v224 = vsel %vm223, %v218, %v220
      %v225 = vsel %vm223, %v220, %v222
      %229 = vrot.lane.b32.xlu0 %v199, 110
      %v230 = vpop.permute.xlu0 %229
      %231 = vrot.lane.b32.xlu0 %v200, 110
      %v232 = vpop.permute.xlu0 %231
      %233 = vrot.lane.b32.xlu0 %v201, 110
      %v234 = vpop.permute.xlu0 %233
      %vm235 = vcmask 900096
      %v236 = vsel %vm235, %v230, %v232
      %v237 = vsel %vm235, %v232, %v234
      %241 = vrot.lane.b32.xlu0 %v199, 109
      %v242 = vpop.permute.xlu0 %241
      %243 = vrot.lane.b32.xlu0 %v200, 109
      %v244 = vpop.permute.xlu0 %243
      %245 = vrot.lane.b32.xlu0 %v201, 109
      %v246 = vpop.permute.xlu0 %245
      %vm247 = vcmask 891904
      %v248 = vsel %vm247, %v242, %v244
      %v249 = vsel %vm247, %v244, %v246
      %253 = vrot.lane.b32.xlu0 %v199, 108
      %v254 = vpop.permute.xlu0 %253
      %255 = vrot.lane.b32.xlu0 %v200, 108
      %v256 = vpop.permute.xlu0 %255
      %257 = vrot.lane.b32.xlu0 %v201, 108
      %v258 = vpop.permute.xlu0 %257
      %vm259 = vcmask 883712
      %v260 = vsel %vm259, %v254, %v256
      %v261 = vsel %vm259, %v256, %v258
      %265 = vrot.lane.b32.xlu0 %v199, 92
      %v266 = vpop.permute.xlu0 %265
      %267 = vrot.lane.b32.xlu0 %v200, 92
      %v268 = vpop.permute.xlu0 %267
      %269 = vrot.lane.b32.xlu0 %v201, 92
      %v270 = vpop.permute.xlu0 %269
      %vm271 = vcmask 752640
      %v272 = vsel %vm271, %v266, %v268
      %v273 = vsel %vm271, %v268, %v270
      %277 = vrot.lane.b32.xlu0 %v199, 91
      %v278 = vpop.permute.xlu0 %277
      %279 = vrot.lane.b32.xlu0 %v200, 91
      %v280 = vpop.permute.xlu0 %279
      %281 = vrot.lane.b32.xlu0 %v201, 91
      %v282 = vpop.permute.xlu0 %281
      %vm283 = vcmask 744448
      %v284 = vsel %vm283, %v278, %v280
      %v285 = vsel %vm283, %v280, %v282
      %289 = vrot.lane.b32.xlu0 %v199, 90
      %v290 = vpop.permute.xlu0 %289
      %291 = vrot.lane.b32.xlu0 %v200, 90
      %v292 = vpop.permute.xlu0 %291
      %293 = vrot.lane.b32.xlu0 %v201, 90
      %v294 = vpop.permute.xlu0 %293
      %vm295 = vcmask 736256
      %v296 = vsel %vm295, %v290, %v292
      %v297 = vsel %vm295, %v292, %v294
      %v301 = vpack.c.bf16 %v212, %v199
      %v302 = vpack.c.bf16 %v213, %v200
      %v303 = vpack.c.bf16 %v210, %v201
      %v304 = vpack.c.bf16 %v236, %v224
      %v305 = vpack.c.bf16 %v237, %v225
      %v306 = vpack.c.bf16 %v234, %v222
      %v307 = vpack.c.bf16 %v260, %v248
      %v308 = vpack.c.bf16 %v261, %v249
      %v309 = vpack.c.bf16 %v258, %v246
      %v310 = vpack.c.bf16 %v284, %v272
      %v311 = vpack.c.bf16 %v285, %v273
      %v312 = vpack.c.bf16 %v282, %v270
      %v313 = vpack.c.bf16 %v296, %v296
      %v314 = vpack.c.bf16 %v297, %v297
      %v315 = vpack.c.bf16 %v294, %v294
      %v316 = vld [vmem:[%s1] sm:$0xf]
      %vm317 = vcmask 588800
      %v319 = vsel %vm317, %v316, 0
      %vm321 = vcmask 1043456
      %v323 = vsel %vm321, %v313, 0
      %v326 = vsel %vm321, %v314, 0
      %v329 = vsel %vm321, %v315, 0
      %331 = vmatpush.bf16.msra.mxu0 0
      %332 = vmatpush.bf16.msra.mxu0 0
      %333 = vmatpush.bf16.msra.mxu0 0
      %334 = vmatpush.bf16.msra.mxu0 %v323
      %335 = vmatpush.bf16.msra.mxu0 %v310
      %336 = vmatpush.bf16.msra.mxu0 %v307
      %337 = vmatpush.bf16.msra.mxu0 %v304
      %338 = vmatpush.bf16.msra.mxu0 %v301
      %339 = vmatmul.bf16.gmra.mxu0 %v319
      %v340 = vpop.f32.mrf.mxu0
      %v341 = vadd.f32 0.0, %v340
      %v342 = vpop.f32.mrf.mxu0
      %343 = vdwg.mxu0
      %344 = vmatpush.bf16.msra.mxu0 0
      %345 = vmatpush.bf16.msra.mxu0 0
      %346 = vmatpush.bf16.msra.mxu0 0
      %347 = vmatpush.bf16.msra.mxu0 %v326
      %348 = vmatpush.bf16.msra.mxu0 %v311
      %349 = vmatpush.bf16.msra.mxu0 %v308
      %350 = vmatpush.bf16.msra.mxu0 %v305
      %351 = vmatpush.bf16.msra.mxu0 %v302
      %352 = vmatmul.bf16.gmra.mxu0 %v319
      %v353 = vpop.f32.mrf.mxu0
      %v354 = vadd.f32 0.0, %v353
      %v355 = vpop.f32.mrf.mxu0
      %356 = vdwg.mxu0
      %357 = vmatpush.bf16.msra.mxu0 0
      %358 = vmatpush.bf16.msra.mxu0 0
      %359 = vmatpush.bf16.msra.mxu0 0
      %360 = vmatpush.bf16.msra.mxu0 %v329
      %361 = vmatpush.bf16.msra.mxu0 %v312
      %362 = vmatpush.bf16.msra.mxu0 %v309
      %363 = vmatpush.bf16.msra.mxu0 %v306
      %364 = vmatpush.bf16.msra.mxu0 %v303
      %365 = vmatmul.bf16.gmra.mxu0 %v319
      %v366 = vpop.f32.mrf.mxu0
      %v367 = vadd.f32 0.0, %v366
      %v368 = vpop.f32.mrf.mxu0
      %369 = vdwg.mxu0
      %v370 = vld [vmem:[%s2] sm:$0xff]
      %372 = vset.pattern.permute.xlu0 0
      %373 = vperm.xlu0 %372, %v370
      %v374 = vpop.permute.xlu0 %373
      %v376 = vmul.f32 %v341, %v374
      %v377 = vmul.f32 %v354, %v374
      %v378 = vmul.f32 %v367, %v374
      %v379 = vld [vmem:[%s3] sm:$0xff]
      %381 = vset.pattern.permute.xlu0 0
      %382 = vperm.xlu0 %381, %v379
      %v383 = vpop.permute.xlu0 %382
      %v385 = vadd.f32 %v376, %v383
      %v386 = vadd.f32 %v377, %v383
      %v387 = vadd.f32 %v378, %v383
      %v388 = vmax.f32 %v385, 0.0
      %v389 = vmax.f32 %v386, 0.0
      %v390 = vmax.f32 %v387, 0.0
      %391 = vst [vmem:[%s197] sm:$0xff] %v388
      %392 = vst [vmem:[%s197 + $0x8] sm:$0xff] %v389
      %vm393 = vcmask 261120
      %394 = vst.msk [vmem:[%s197 + $0x10] sm:$0xff] %vm393, %v390
      %p395 = scmp.lt.s32.totalorder %s15, 1
      %s396 = scalar_select %p395, %s15, 1
      %s397 = smul.addr %s396, 3
      %s398 = smul.addr %s397, 8
      %s399 = scalar_lea.vmem %s4, %s398
      // Predicated region
      $region37: #{decoder_forward.9} parent=35 // pred_check
        %p400 = pneg %p122
      $region38: #{decoder_forward.9} parent=35 // pred_check_branch
        %402 = sbr.rel (%p400) target = $region40
      $region39: #{decoder_forward.9} parent=35 // pred_region
        _
      $region40: #{decoder_forward.9} parent=35 // pred_fallthru
        _
    $region36: #{decoder_forward.9} parent=5 // pred_fallthru
      _
    %p403 = scmp.le.s32.totalorder 2, %s10
    // Predicated region
    $region41: #{decoder_forward.9} parent=5 // pred_check
      %p404 = pneg %p403
    $region42: #{decoder_forward.9} parent=5 // pred_check_branch
      %406 = sbr.rel (%p404) target = $region44
    $region43: #{decoder_forward.9} parent=5 // pred_region
      %s407 = ssub.s32 %s10, 2
      // Predicated region
      $region45: #{decoder_forward.9} parent=43 // pred_check
        %p408 = pneg %p128
      $region46: #{decoder_forward.9} parent=43 // pred_check_branch
        %410 = sbr.rel (%p408) target = $region48
      $region47: #{decoder_forward.9} parent=43 // pred_region
        %p411 = scmp.lt.s32.totalorder %s16, 1
        %s412 = scalar_select %p411, %s16, 1
        %s413 = smul.addr %s412, 3
        %s414 = smul.addr %s413, 8
        %s415 = scalar_lea.vmem %s4, %s414
      $region48: #{decoder_forward.9} parent=43 // pred_fallthru
        _
    $region44: #{decoder_forward.9} parent=5 // pred_fallthru
      _
  $region6: #{decoder_forward.9} parent=0 // loop_footer
    %s14 = sadd.s32 1, %s10
  $region7: #{decoder_forward.9} parent=0 // loop_footer_branch
    %9 = sbr.rel target = $region3
  $region8: #{decoder_forward.9} parent=0 // loop_exit
    _

// kernel: decoder_forward.8
$region0: #{decoder_forward.8}
  #allocation0 [shape = 'u32[]', space=smem, size = 0x4, offset = 0x4, fixed_abs, tag = 'smem constant byte address 0x4 - core index']
  #allocation1 [shape = 'u32[72,128]{1,0:T(1,128)}', space=vmem, size = 0x9000, scoped, tag = 'internal scratch']
  %s0 = inlined_call_operand.vmem [shape: f32[2,8,326], index: 0, kind: input, shape index: {}]
  %s1 = inlined_call_operand.vmem [shape: f32[2,16,326], index: 1, kind: input, shape index: {}]
  %s2 = inlined_call_operand.vmem [shape: bf16[8,216], index: 2, kind: input, shape index: {}]
  %s3 = inlined_call_operand.vmem [shape: f32[8,1], index: 3, kind: input, shape index: {}]
  %s4 = inlined_call_operand.vmem [shape: f32[8,1], index: 4, kind: input, shape index: {}]
  %s5 = inlined_call_operand.vmem [shape: f32[2,8,288], index: 5, kind: output, shape index: {}]
  %s6 = sld [smem:[#allocation0]]
  $region53: #{decoder_forward.8} parent=0
    _
  %s8 = ssub.s32 1, %s6
  %s9 = scalar_select 0, %s8, %s6
  loop: start=0, step=1, limit=4
  $region2: #{decoder_forward.8} parent=0 // loop_pre_header
    _
  $region3: #{decoder_forward.8} parent=0 // loop_header
    %s11 = sphi 0, %s15
    %p12 = scmp.ge.s32.totalorder %s11, 4
    %s21 = sphi 0, %s23
    %s24 = sphi 0, %s21
    %s25 = sphi 0, %s24
    %s41 = sphi 0, %s25
    %s47 = sphi 0, %s49
    %s50 = sphi 0, %s47
    %s51 = sphi 0, %s50
    %s67 = sphi 0, %s51
    %s71 = sphi 0, %s71
    %s73 = sphi 0, %s71
    %s74 = sphi 0, %s73
    %s88 = sphi 0, %s74
    %s92 = sphi 0, %s92
    %s94 = sphi 0, %s92
    %s95 = sphi 0, %s94
    %s109 = sphi 0, %s95
    %s113 = sphi 0, %s113
    %s115 = sphi 0, %s113
    %s116 = sphi 0, %s115
    %s130 = sphi 0, %s116
    %s136 = sphi 0, %s138
    %s139 = sphi 0, %s136
    %s140 = sphi 0, %s139
    %s156 = sphi 0, %s140
  $region4: #{decoder_forward.8} parent=0 // loop_header_branch
    %14 = sbr.rel (%p12) target = $region8
  $region5: #{decoder_forward.8} parent=0 // loop_body
    %s16 = ssub.s32 %s11, 1
    %s17 = ssub.s32 %s11, 2
    %s18 = sadd.s32 %s11, 1
    %s19 = ssub.s32 %s11, %s18
    %p20 = scmp.eq.s32.totalorder %s19, 0
    %s22 = sadd.s32 %s21, 1
    %s23 = scalar_select %p20, %s21, %s22
    %p26 = pneg %p20
    %p27 = scmp.eq.s32.totalorder %s11, 1
    %p28 = por %p26, %p27
    %p29 = scmp.ne.s32.totalorder %s21, %s24
    %p30 = scmp.eq.s32.totalorder %s11, 0
    %p31 = por %p29, %p30
    %p32 = scmp.ne.s32.totalorder %s21, %s24
    %p33 = scmp.eq.s32.totalorder %s16, 1
    %p34 = por %p32, %p33
    %p35 = scmp.ne.s32.totalorder %s24, %s25
    %p36 = scmp.eq.s32.totalorder %s16, 0
    %p37 = por %p35, %p36
    %p38 = scmp.ne.s32.totalorder %s24, %s25
    %p39 = scmp.eq.s32.totalorder %s17, 1
    %p40 = por %p38, %p39
    %p42 = scmp.ne.s32.totalorder %s25, %s41
    %p43 = scmp.eq.s32.totalorder %s17, 0
    %p44 = por %p42, %p43
    %s45 = ssub.s32 %s11, %s18
    %p46 = scmp.eq.s32.totalorder %s45, 0
    %s48 = sadd.s32 %s47, 1
    %s49 = scalar_select %p46, %s47, %s48
    %p52 = pneg %p46
    %p53 = scmp.eq.s32.totalorder %s11, 1
    %p54 = por %p52, %p53
    %p55 = scmp.ne.s32.totalorder %s47, %s50
    %p56 = scmp.eq.s32.totalorder %s11, 0
    %p57 = por %p55, %p56
    %p58 = scmp.ne.s32.totalorder %s47, %s50
    %p59 = scmp.eq.s32.totalorder %s16, 1
    %p60 = por %p58, %p59
    %p61 = scmp.ne.s32.totalorder %s50, %s51
    %p62 = scmp.eq.s32.totalorder %s16, 0
    %p63 = por %p61, %p62
    %p64 = scmp.ne.s32.totalorder %s50, %s51
    %p65 = scmp.eq.s32.totalorder %s17, 1
    %p66 = por %p64, %p65
    %p68 = scmp.ne.s32.totalorder %s51, %s67
    %p69 = scmp.eq.s32.totalorder %s17, 0
    %p70 = por %p68, %p69
    %s72 = sadd.s32 %s71, 1
    %p75 = scmp.eq.s32.totalorder %s11, 1
    %p76 = scmp.ne.s32.totalorder %s71, %s73
    %p77 = scmp.eq.s32.totalorder %s11, 0
    %p78 = por %p76, %p77
    %p79 = scmp.ne.s32.totalorder %s71, %s73
    %p80 = scmp.eq.s32.totalorder %s16, 1
    %p81 = por %p79, %p80
    %p82 = scmp.ne.s32.totalorder %s73, %s74
    %p83 = scmp.eq.s32.totalorder %s16, 0
    %p84 = por %p82, %p83
    %p85 = scmp.ne.s32.totalorder %s73, %s74
    %p86 = scmp.eq.s32.totalorder %s17, 1
    %p87 = por %p85, %p86
    %p89 = scmp.ne.s32.totalorder %s74, %s88
    %p90 = scmp.eq.s32.totalorder %s17, 0
    %p91 = por %p89, %p90
    %s93 = sadd.s32 %s92, 1
    %p96 = scmp.eq.s32.totalorder %s11, 1
    %p97 = scmp.ne.s32.totalorder %s92, %s94
    %p98 = scmp.eq.s32.totalorder %s11, 0
    %p99 = por %p97, %p98
    %p100 = scmp.ne.s32.totalorder %s92, %s94
    %p101 = scmp.eq.s32.totalorder %s16, 1
    %p102 = por %p100, %p101
    %p103 = scmp.ne.s32.totalorder %s94, %s95
    %p104 = scmp.eq.s32.totalorder %s16, 0
    %p105 = por %p103, %p104
    %p106 = scmp.ne.s32.totalorder %s94, %s95
    %p107 = scmp.eq.s32.totalorder %s17, 1
    %p108 = por %p106, %p107
    %p110 = scmp.ne.s32.totalorder %s95, %s109
    %p111 = scmp.eq.s32.totalorder %s17, 0
    %p112 = por %p110, %p111
    %s114 = sadd.s32 %s113, 1
    %p117 = scmp.eq.s32.totalorder %s11, 1
    %p118 = scmp.ne.s32.totalorder %s113, %s115
    %p119 = scmp.eq.s32.totalorder %s11, 0
    %p120 = por %p118, %p119
    %p121 = scmp.ne.s32.totalorder %s113, %s115
    %p122 = scmp.eq.s32.totalorder %s16, 1
    %p123 = por %p121, %p122
    %p124 = scmp.ne.s32.totalorder %s115, %s116
    %p125 = scmp.eq.s32.totalorder %s16, 0
    %p126 = por %p124, %p125
    %p127 = scmp.ne.s32.totalorder %s115, %s116
    %p128 = scmp.eq.s32.totalorder %s17, 1
    %p129 = por %p127, %p128
    %p131 = scmp.ne.s32.totalorder %s116, %s130
    %p132 = scmp.eq.s32.totalorder %s17, 0
    %p133 = por %p131, %p132
    %s134 = ssub.s32 %s11, %s18
    %p135 = scmp.eq.s32.totalorder %s134, 0
    %s137 = sadd.s32 %s136, 1
    %s138 = scalar_select %p135, %s136, %s137
    %p141 = pneg %p135
    %p142 = scmp.eq.s32.totalorder %s11, 1
    %p143 = por %p141, %p142
    %p144 = scmp.ne.s32.totalorder %s136, %s139
    %p145 = scmp.eq.s32.totalorder %s11, 0
    %p146 = por %p144, %p145
    %p147 = scmp.ne.s32.totalorder %s136, %s139
    %p148 = scmp.eq.s32.totalorder %s16, 1
    %p149 = por %p147, %p148
    %p150 = scmp.ne.s32.totalorder %s139, %s140
    %p151 = scmp.eq.s32.totalorder %s16, 0
    %p152 = por %p150, %p151
    %p153 = scmp.ne.s32.totalorder %s139, %s140
    %p154 = scmp.eq.s32.totalorder %s17, 1
    %p155 = por %p153, %p154
    %p157 = scmp.ne.s32.totalorder %s140, %s156
    %p158 = scmp.eq.s32.totalorder %s17, 0
    %p159 = por %p157, %p158
    %p160 = scmp.le.s32.totalorder 1, %s11
    %p161 = scmp.lt.s32.totalorder %s11, 3
    %p162 = pnand %p160, %p161
    %p163 = pneg %p162
    // Predicated region
    $region9: #{decoder_forward.8} parent=5 // pred_check
      _
    $region10: #{decoder_forward.8} parent=5 // pred_check_branch
      %165 = sbr.rel (%p162) target = $region12
    $region11: #{decoder_forward.8} parent=5 // pred_region
      %s166 = ssub.s32 %s11, 1
      // Predicated region
      $region13: #{decoder_forward.8} parent=11 // pred_check
        %p167 = pneg %p84
      $region14: #{decoder_forward.8} parent=11 // pred_check_branch
        %169 = sbr.rel (%p167) target = $region16
      $region15: #{decoder_forward.8} parent=11 // pred_region
        _
      $region16: #{decoder_forward.8} parent=11 // pred_fallthru
        _
      // Predicated region
      $region17: #{decoder_forward.8} parent=11 // pred_check
        %p170 = pneg %p105
      $region18: #{decoder_forward.8} parent=11 // pred_check_branch
        %172 = sbr.rel (%p170) target = $region20
      $region19: #{decoder_forward.8} parent=11 // pred_region
        _
      $region20: #{decoder_forward.8} parent=11 // pred_fallthru
        _
      // Predicated region
      $region21: #{decoder_forward.8} parent=11 // pred_check
        %p173 = pneg %p126
      $region22: #{decoder_forward.8} parent=11 // pred_check_branch
        %175 = sbr.rel (%p173) target = $region24
      $region23: #{decoder_forward.8} parent=11 // pred_region
        _
      $region24: #{decoder_forward.8} parent=11 // pred_fallthru
        _
    $region12: #{decoder_forward.8} parent=5 // pred_fallthru
      _
    %p176 = scmp.lt.s32.totalorder %s11, 2
    // Predicated region
    $region25: #{decoder_forward.8} parent=5 // pred_check
      %p177 = pneg %p176
    $region26: #{decoder_forward.8} parent=5 // pred_check_branch
      %179 = sbr.rel (%p177) target = $region28
    $region27: #{decoder_forward.8} parent=5 // pred_region
      // Predicated region
      $region29: #{decoder_forward.8} parent=27 // pred_check
        %p180 = pneg %p31
      $region30: #{decoder_forward.8} parent=27 // pred_check_branch
        %182 = sbr.rel (%p180) target = $region32
      $region31: #{decoder_forward.8} parent=27 // pred_region
        %p183 = scmp.lt.s32.totalorder %s11, 1
        %s184 = scalar_select %p183, %s11, 1
        %s185 = smul.addr %s184, 3
        %s186 = smul.addr %s185, 8
        %s187 = scalar_lea.vmem %s0, %s186
      $region32: #{decoder_forward.8} parent=27 // pred_fallthru
        _
      // Predicated region
      $region33: #{decoder_forward.8} parent=27 // pred_check
        %p188 = pneg %p57
      $region34: #{decoder_forward.8} parent=27 // pred_check_branch
        %190 = sbr.rel (%p188) target = $region36
      $region35: #{decoder_forward.8} parent=27 // pred_region
        %p191 = scmp.lt.s32.totalorder %s11, 1
        %s192 = scalar_select %p191, %s11, 1
        %s193 = smul.addr %s192, 6
        %s194 = smul.addr %s193, 8
        %s195 = scalar_lea.vmem %s1, %s194
      $region36: #{decoder_forward.8} parent=27 // pred_fallthru
        _
    $region28: #{decoder_forward.8} parent=5 // pred_fallthru
      _
    %p196 = scmp.le.s32.totalorder 1, %s11
    %p197 = scmp.lt.s32.totalorder %s11, 3
    %p198 = pnand %p196, %p197
    %p199 = pneg %p198
    // Predicated region
    $region37: #{decoder_forward.8} parent=5 // pred_check
      _
    $region38: #{decoder_forward.8} parent=5 // pred_check_branch
      %201 = sbr.rel (%p198) target = $region40
    $region39: #{decoder_forward.8} parent=5 // pred_region
      %s202 = ssub.s32 %s11, 1
      %p203 = scmp.lt.s32.totalorder %s16, 1
      %s204 = scalar_select %p203, %s16, 1
      %s205 = smul.addr %s204, 3
      %s206 = smul.addr %s205, 8
      %s207 = scalar_lea.vmem %s0, %s206
      %p208 = pneg %p37
      %p209 = pneg %p34
      %p210 = scmp.lt.s32.totalorder %s16, 1
      %s211 = scalar_select %p210, %s16, 1
      %s212 = smul.addr %s211, 6
      %s213 = smul.addr %s212, 8
      %s214 = scalar_lea.vmem %s1, %s213
      %p215 = pneg %p63
      %p216 = pneg %p60
      %p217 = pneg %p84
      %p218 = pneg %p81
      %p219 = pneg %p105
      %p220 = pneg %p102
      %p221 = pneg %p126
      %p222 = pneg %p123
      %p223 = pneg %p152
      %p224 = pneg %p149
      %p225 = scmp.lt.s32.totalorder %s16, 1
      %s226 = scalar_select %p225, %s16, 1
      %s227 = smul.addr %s226, 3
      %s228 = smul.addr %s227, 8
      %s229 = scalar_lea.vmem %s5, %s228
      %p230 = scmp.lt.s32.totalorder %s16, 1
      %s231 = scalar_select %p230, %s16, 1
      %s232 = smul.addr %s231, 3
      %s233 = smul.addr %s232, 8
      %s234 = scalar_lea.vmem %s0, %s233
      %p235 = scmp.lt.s32.totalorder %s16, 1
      %s236 = scalar_select %p235, %s16, 1
      %s237 = smul.addr %s236, 6
      %s238 = smul.addr %s237, 8
      %s239 = scalar_lea.vmem %s1, %s238
      %p240 = scmp.lt.s32.totalorder %s16, 1
      %s241 = scalar_select %p240, %s16, 1
      %s242 = smul.addr %s241, 3
      %s243 = smul.addr %s242, 8
      %s244 = scalar_lea.vmem %s5, %s243
      %v246 = vld [vmem:[%s234] sm:$0xff]
      %v247 = vld [vmem:[%s234 + $0x8] sm:$0xff]
      %v248 = vld [vmem:[%s234 + $0x10] sm:$0xff]
      %v249 = vld [vmem:[%s239] sm:$0xff]
      %v250 = vld [vmem:[%s239 + $0x8] sm:$0xff]
      %v251 = vld [vmem:[%s239 + $0x10] sm:$0xff]
      %v252 = vld [vmem:[%s239 + $0x18] sm:$0xff]
      %v253 = vld [vmem:[%s239 + $0x20] sm:$0xff]
      %v254 = vld [vmem:[%s239 + $0x28] sm:$0xff]
      %258 = vrot.lane.b32.xlu0 %v246, 127
      %v259 = vpop.permute.xlu0 %258
      %260 = vrot.lane.b32.xlu0 %v247, 127
      %v261 = vpop.permute.xlu0 %260
      %262 = vrot.lane.b32.xlu0 %v248, 127
      %v263 = vpop.permute.xlu0 %262
      %vm264 = vcmask 1039360
      %v265 = vsel %vm264, %v259, %v261
      %v266 = vsel %vm264, %v261, %v263
      %270 = vrot.lane.b32.xlu0 %v246, 126
      %v271 = vpop.permute.xlu0 %270
      %272 = vrot.lane.b32.xlu0 %v247, 126
      %v273 = vpop.permute.xlu0 %272
      %274 = vrot.lane.b32.xlu0 %v248, 126
      %v275 = vpop.permute.xlu0 %274
      %vm276 = vcmask 1031168
      %v277 = vsel %vm276, %v271, %v273
      %v278 = vsel %vm276, %v273, %v275
      %282 = vrot.lane.b32.xlu0 %v246, 110
      %v283 = vpop.permute.xlu0 %282
      %284 = vrot.lane.b32.xlu0 %v247, 110
      %v285 = vpop.permute.xlu0 %284
      %286 = vrot.lane.b32.xlu0 %v248, 110
      %v287 = vpop.permute.xlu0 %286
      %vm288 = vcmask 900096
      %v289 = vsel %vm288, %v283, %v285
      %v290 = vsel %vm288, %v285, %v287
      %294 = vrot.lane.b32.xlu0 %v246, 109
      %v295 = vpop.permute.xlu0 %294
      %296 = vrot.lane.b32.xlu0 %v247, 109
      %v297 = vpop.permute.xlu0 %296
      %298 = vrot.lane.b32.xlu0 %v248, 109
      %v299 = vpop.permute.xlu0 %298
      %vm300 = vcmask 891904
      %v301 = vsel %vm300, %v295, %v297
      %v302 = vsel %vm300, %v297, %v299
      %306 = vrot.lane.b32.xlu0 %v246, 108
      %v307 = vpop.permute.xlu0 %306
      %308 = vrot.lane.b32.xlu0 %v247, 108
      %v309 = vpop.permute.xlu0 %308
      %310 = vrot.lane.b32.xlu0 %v248, 108
      %v311 = vpop.permute.xlu0 %310
      %vm312 = vcmask 883712
      %v313 = vsel %vm312, %v307, %v309
      %v314 = vsel %vm312, %v309, %v311
      %318 = vrot.lane.b32.xlu0 %v246, 92
      %v319 = vpop.permute.xlu0 %318
      %320 = vrot.lane.b32.xlu0 %v247, 92
      %v321 = vpop.permute.xlu0 %320
      %322 = vrot.lane.b32.xlu0 %v248, 92
      %v323 = vpop.permute.xlu0 %322
      %vm324 = vcmask 752640
      %v325 = vsel %vm324, %v319, %v321
      %v326 = vsel %vm324, %v321, %v323
      %330 = vrot.lane.b32.xlu0 %v246, 91
      %v331 = vpop.permute.xlu0 %330
      %332 = vrot.lane.b32.xlu0 %v247, 91
      %v333 = vpop.permute.xlu0 %332
      %334 = vrot.lane.b32.xlu0 %v248, 91
      %v335 = vpop.permute.xlu0 %334
      %vm336 = vcmask 744448
      %v337 = vsel %vm336, %v331, %v333
      %v338 = vsel %vm336, %v333, %v335
      %342 = vrot.lane.b32.xlu0 %v246, 90
      %v343 = vpop.permute.xlu0 %342
      %344 = vrot.lane.b32.xlu0 %v247, 90
      %v345 = vpop.permute.xlu0 %344
      %346 = vrot.lane.b32.xlu0 %v248, 90
      %v347 = vpop.permute.xlu0 %346
      %vm348 = vcmask 736256
      %v349 = vsel %vm348, %v343, %v345
      %v350 = vsel %vm348, %v345, %v347
      %360 = vrot.lane.b32.xlu0 %v249, 127
      %v361 = vpop.permute.xlu0 %360
      %362 = vrot.lane.b32.xlu0 %v250, 127
      %v363 = vpop.permute.xlu0 %362
      %364 = vrot.lane.b32.xlu0 %v251, 127
      %v365 = vpop.permute.xlu0 %364
      %366 = vrot.lane.b32.xlu0 %v252, 127
      %v367 = vpop.permute.xlu0 %366
      %368 = vrot.lane.b32.xlu0 %v253, 127
      %v369 = vpop.permute.xlu0 %368
      %370 = vrot.lane.b32.xlu0 %v254, 127
      %v371 = vpop.permute.xlu0 %370
      %v372 = vsel %vm264, %v361, %v363
      %v373 = vsel %vm264, %v363, %v365
      %v374 = vsel %vm264, %v367, %v369
      %v375 = vsel %vm264, %v369, %v371
      %382 = vrot.lane.b32.xlu0 %v249, 126
      %v383 = vpop.permute.xlu0 %382
      %384 = vrot.lane.b32.xlu0 %v250, 126
      %v385 = vpop.permute.xlu0 %384
      %386 = vrot.lane.b32.xlu0 %v251, 126
      %v387 = vpop.permute.xlu0 %386
      %388 = vrot.lane.b32.xlu0 %v252, 126
      %v389 = vpop.permute.xlu0 %388
      %390 = vrot.lane.b32.xlu0 %v253, 126
      %v391 = vpop.permute.xlu0 %390
      %392 = vrot.lane.b32.xlu0 %v254, 126
      %v393 = vpop.permute.xlu0 %392
      %v394 = vsel %vm276, %v383, %v385
      %v395 = vsel %vm276, %v385, %v387
      %v396 = vsel %vm276, %v389, %v391
      %v397 = vsel %vm276, %v391, %v393
      %404 = vrot.lane.b32.xlu0 %v249, 110
      %v405 = vpop.permute.xlu0 %404
      %406 = vrot.lane.b32.xlu0 %v250, 110
      %v407 = vpop.permute.xlu0 %406
      %408 = vrot.lane.b32.xlu0 %v251, 110
      %v409 = vpop.permute.xlu0 %408
      %410 = vrot.lane.b32.xlu0 %v252, 110
      %v411 = vpop.permute.xlu0 %410
      %412 = vrot.lane.b32.xlu0 %v253, 110
      %v413 = vpop.permute.xlu0 %412
      %414 = vrot.lane.b32.xlu0 %v254, 110
      %v415 = vpop.permute.xlu0 %414
      %v416 = vsel %vm288, %v405, %v407
      %v417 = vsel %vm288, %v407, %v409
      %v418 = vsel %vm288, %v411, %v413
      %v419 = vsel %vm288, %v413, %v415
      %426 = vrot.lane.b32.xlu0 %v249, 109
      %v427 = vpop.permute.xlu0 %426
      %428 = vrot.lane.b32.xlu0 %v250, 109
      %v429 = vpop.permute.xlu0 %428
      %430 = vrot.lane.b32.xlu0 %v251, 109
      %v431 = vpop.permute.xlu0 %430
      %432 = vrot.lane.b32.xlu0 %v252, 109
      %v433 = vpop.permute.xlu0 %432
      %434 = vrot.lane.b32.xlu0 %v253, 109
      %v435 = vpop.permute.xlu0 %434
      %436 = vrot.lane.b32.xlu0 %v254, 109
      %v437 = vpop.permute.xlu0 %436
      %v438 = vsel %vm300, %v427, %v429
      %v439 = vsel %vm300, %v429, %v431
      %v440 = vsel %vm300, %v433, %v435
      %v441 = vsel %vm300, %v435, %v437
      %448 = vrot.lane.b32.xlu0 %v249, 108
      %v449 = vpop.permute.xlu0 %448
      %450 = vrot.lane.b32.xlu0 %v250, 108
      %v451 = vpop.permute.xlu0 %450
      %452 = vrot.lane.b32.xlu0 %v251, 108
      %v453 = vpop.permute.xlu0 %452
      %454 = vrot.lane.b32.xlu0 %v252, 108
      %v455 = vpop.permute.xlu0 %454
      %456 = vrot.lane.b32.xlu0 %v253, 108
      %v457 = vpop.permute.xlu0 %456
      %458 = vrot.lane.b32.xlu0 %v254, 108
      %v459 = vpop.permute.xlu0 %458
      %v460 = vsel %vm312, %v449, %v451
      %v461 = vsel %vm312, %v451, %v453
      %v462 = vsel %vm312, %v455, %v457
      %v463 = vsel %vm312, %v457, %v459
      %470 = vrot.lane.b32.xlu0 %v249, 92
      %v471 = vpop.permute.xlu0 %470
      %472 = vrot.lane.b32.xlu0 %v250, 92
      %v473 = vpop.permute.xlu0 %472
      %474 = vrot.lane.b32.xlu0 %v251, 92
      %v475 = vpop.permute.xlu0 %474
      %476 = vrot.lane.b32.xlu0 %v252, 92
      %v477 = vpop.permute.xlu0 %476
      %478 = vrot.lane.b32.xlu0 %v253, 92
      %v479 = vpop.permute.xlu0 %478
      %480 = vrot.lane.b32.xlu0 %v254, 92
      %v481 = vpop.permute.xlu0 %480
      %v482 = vsel %vm324, %v471, %v473
      %v483 = vsel %vm324, %v473, %v475
      %v484 = vsel %vm324, %v477, %v479
      %v485 = vsel %vm324, %v479, %v481
      %492 = vrot.lane.b32.xlu0 %v249, 91
      %v493 = vpop.permute.xlu0 %492
      %494 = vrot.lane.b32.xlu0 %v250, 91
      %v495 = vpop.permute.xlu0 %494
      %496 = vrot.lane.b32.xlu0 %v251, 91
      %v497 = vpop.permute.xlu0 %496
      %498 = vrot.lane.b32.xlu0 %v252, 91
      %v499 = vpop.permute.xlu0 %498
      %500 = vrot.lane.b32.xlu0 %v253, 91
      %v501 = vpop.permute.xlu0 %500
      %502 = vrot.lane.b32.xlu0 %v254, 91
      %v503 = vpop.permute.xlu0 %502
      %504 = vrot.lane.b32.xlu0 %v372, 91
      %v505 = vpop.permute.xlu0 %504
      %506 = vrot.lane.b32.xlu0 %v373, 91
      %v507 = vpop.permute.xlu0 %506
      %508 = vrot.lane.b32.xlu0 %v365, 91
      %v509 = vpop.permute.xlu0 %508
      %510 = vrot.lane.b32.xlu0 %v374, 91
      %v511 = vpop.permute.xlu0 %510
      %512 = vrot.lane.b32.xlu0 %v375, 91
      %v513 = vpop.permute.xlu0 %512
      %514 = vrot.lane.b32.xlu0 %v371, 91
      %v515 = vpop.permute.xlu0 %514
      %v516 = vsel %vm336, %v493, %v495
      %v517 = vsel %vm336, %v495, %v497
      %v518 = vsel %vm336, %v499, %v501
      %v519 = vsel %vm336, %v501, %v503
      %v520 = vsel %vm336, %v505, %v507
      %v521 = vsel %vm336, %v507, %v509
      %v522 = vsel %vm336, %v511, %v513
      %v523 = vsel %vm336, %v513, %v515
      %v536 = vpack.c.bf16 %v265, %v246
      %v537 = vpack.c.bf16 %v266, %v247
      %v538 = vpack.c.bf16 %v263, %v248
      %v539 = vpack.c.bf16 %v289, %v277
      %v540 = vpack.c.bf16 %v290, %v278
      %v541 = vpack.c.bf16 %v287, %v275
      %v542 = vpack.c.bf16 %v313, %v301
      %v543 = vpack.c.bf16 %v314, %v302
      %v544 = vpack.c.bf16 %v311, %v299
      %v545 = vpack.c.bf16 %v337, %v325
      %v546 = vpack.c.bf16 %v338, %v326
      %v547 = vpack.c.bf16 %v335, %v323
      %v548 = vpack.c.bf16 %v249, %v349
      %v549 = vpack.c.bf16 %v250, %v350
      %v550 = vpack.c.bf16 %v251, %v347
      %v551 = vpack.c.bf16 %v372, %v252
      %v552 = vpack.c.bf16 %v373, %v253
      %v553 = vpack.c.bf16 %v365, %v254
      %v554 = vpack.c.bf16 %v394, %v374
      %v555 = vpack.c.bf16 %v395, %v375
      %v556 = vpack.c.bf16 %v387, %v371
      %v557 = vpack.c.bf16 %v416, %v396
      %v558 = vpack.c.bf16 %v417, %v397
      %v559 = vpack.c.bf16 %v409, %v393
      %v560 = vpack.c.bf16 %v438, %v418
      %v561 = vpack.c.bf16 %v439, %v419
      %v562 = vpack.c.bf16 %v431, %v415
      %v563 = vpack.c.bf16 %v460, %v440
      %v564 = vpack.c.bf16 %v461, %v441
      %v565 = vpack.c.bf16 %v453, %v437
      %v566 = vpack.c.bf16 %v482, %v462
      %v567 = vpack.c.bf16 %v483, %v463
      %v568 = vpack.c.bf16 %v475, %v459
      %v569 = vpack.c.bf16 %v516, %v484
      %v570 = vpack.c.bf16 %v517, %v485
      %v571 = vpack.c.bf16 %v497, %v481
      %v572 = vpack.c.bf16 %v520, %v518
      %v573 = vpack.c.bf16 %v521, %v519
      %v574 = vpack.c.bf16 %v509, %v503
      %v575 = vpack.c.bf16 %v522, %v522
      %v576 = vpack.c.bf16 %v523, %v523
      %v577 = vpack.c.bf16 %v515, %v515
      %v578 = vld [vmem:[%s2] sm:$0xff]
      %v580 = vunpack.c.l.b16 %v578
      %v581 = vunpack.c.h.b16 %v578
      %v582 = vpack.c.b16 %v580, %v580
      %v583 = vpack.c.b16 %v581, %v581
      %vm585 = vcmask 719872
      %v587 = vsel %vm585, %v583, 0
      %vm589 = vcmask 1043456
      %v591 = vsel %vm589, %v575, 0
      %v594 = vsel %vm589, %v576, 0
      %v597 = vsel %vm589, %v577, 0
      %599 = vmatpush.bf16.msra.mxu0 %v557
      %600 = vmatpush.bf16.msra.mxu0 %v554
      %601 = vmatpush.bf16.msra.mxu0 %v551
      %602 = vmatpush.bf16.msra.mxu0 %v548
      %603 = vmatpush.bf16.msra.mxu0 %v545
      %604 = vmatpush.bf16.msra.mxu0 %v542
      %605 = vmatpush.bf16.msra.mxu0 %v539
      %606 = vmatpush.bf16.msra.mxu0 %v536
      %607 = vmatmul.bf16.gmra.mxu0 %v582
      %v608 = vpop.f32.mrf.mxu0
      %v609 = vadd.f32 0.0, %v608
      %v610 = vpop.f32.mrf.mxu0
      %611 = vdwg.mxu0
      %612 = vmatpush.bf16.msra.mxu0 0
      %613 = vmatpush.bf16.msra.mxu0 0
      %614 = vmatpush.bf16.msra.mxu0 %v591
      %615 = vmatpush.bf16.msra.mxu0 %v572
      %616 = vmatpush.bf16.msra.mxu0 %v569
      %617 = vmatpush.bf16.msra.mxu0 %v566
      %618 = vmatpush.bf16.msra.mxu0 %v563
      %619 = vmatpush.bf16.msra.mxu0 %v560
      %620 = vmatmul.bf16.gmra.mxu0 %v587
      %v621 = vpop.f32.mrf.mxu0
      %v622 = vadd.f32 %v609, %v621
      %v623 = vpop.f32.mrf.mxu0
      %624 = vdwg.mxu0
      %625 = vmatpush.bf16.msra.mxu0 %v558
      %626 = vmatpush.bf16.msra.mxu0 %v555
      %627 = vmatpush.bf16.msra.mxu0 %v552
      %628 = vmatpush.bf16.msra.mxu0 %v549
      %629 = vmatpush.bf16.msra.mxu0 %v546
      %630 = vmatpush.bf16.msra.mxu0 %v543
      %631 = vmatpush.bf16.msra.mxu0 %v540
      %632 = vmatpush.bf16.msra.mxu0 %v537
      %633 = vmatmul.bf16.gmra.mxu0 %v582
      %v634 = vpop.f32.mrf.mxu0
      %v635 = vadd.f32 0.0, %v634
      %v636 = vpop.f32.mrf.mxu0
      %637 = vdwg.mxu0
      %638 = vmatpush.bf16.msra.mxu0 0
      %639 = vmatpush.bf16.msra.mxu0 0
      %640 = vmatpush.bf16.msra.mxu0 %v594
      %641 = vmatpush.bf16.msra.mxu0 %v573
      %642 = vmatpush.bf16.msra.mxu0 %v570
      %643 = vmatpush.bf16.msra.mxu0 %v567
      %644 = vmatpush.bf16.msra.mxu0 %v564
      %645 = vmatpush.bf16.msra.mxu0 %v561
      %646 = vmatmul.bf16.gmra.mxu0 %v587
      %v647 = vpop.f32.mrf.mxu0
      %v648 = vadd.f32 %v635, %v647
      %v649 = vpop.f32.mrf.mxu0
      %650 = vdwg.mxu0
      %651 = vmatpush.bf16.msra.mxu0 %v559
      %652 = vmatpush.bf16.msra.mxu0 %v556
      %653 = vmatpush.bf16.msra.mxu0 %v553
      %654 = vmatpush.bf16.msra.mxu0 %v550
      %655 = vmatpush.bf16.msra.mxu0 %v547
      %656 = vmatpush.bf16.msra.mxu0 %v544
      %657 = vmatpush.bf16.msra.mxu0 %v541
      %658 = vmatpush.bf16.msra.mxu0 %v538
      %659 = vmatmul.bf16.gmra.mxu0 %v582
      %v660 = vpop.f32.mrf.mxu0
      %v661 = vadd.f32 0.0, %v660
      %v662 = vpop.f32.mrf.mxu0
      %663 = vdwg.mxu0
      %664 = vmatpush.bf16.msra.mxu0 0
      %665 = vmatpush.bf16.msra.mxu0 0
      %666 = vmatpush.bf16.msra.mxu0 %v597
      %667 = vmatpush.bf16.msra.mxu0 %v574
      %668 = vmatpush.bf16.msra.mxu0 %v571
      %669 = vmatpush.bf16.msra.mxu0 %v568
      %670 = vmatpush.bf16.msra.mxu0 %v565
      %671 = vmatpush.bf16.msra.mxu0 %v562
      %672 = vmatmul.bf16.gmra.mxu0 %v587
      %v673 = vpop.f32.mrf.mxu0
      %v674 = vadd.f32 %v661, %v673
      %v675 = vpop.f32.mrf.mxu0
      %676 = vdwg.mxu0
      %v677 = vld [vmem:[%s3] sm:$0xff]
      %679 = vset.pattern.permute.xlu0 0
      %680 = vperm.xlu0 %679, %v677
      %v681 = vpop.permute.xlu0 %680
      %v683 = vmul.f32 %v622, %v681
      %v684 = vmul.f32 %v648, %v681
      %v685 = vmul.f32 %v674, %v681
      %v686 = vld [vmem:[%s4] sm:$0xff]
      %688 = vset.pattern.permute.xlu0 0
      %689 = vperm.xlu0 %688, %v686
      %v690 = vpop.permute.xlu0 %689
      %v692 = vadd.f32 %v683, %v690
      %v693 = vadd.f32 %v684, %v690
      %v694 = vadd.f32 %v685, %v690
      %v695 = vmax.f32 %v692, 0.0
      %v696 = vmax.f32 %v693, 0.0
      %v697 = vmax.f32 %v694, 0.0
      %698 = vst [vmem:[%s244] sm:$0xff] %v695
      %699 = vst [vmem:[%s244 + $0x8] sm:$0xff] %v696
      %vm700 = vcmask 261120
      %701 = vst.msk [vmem:[%s244 + $0x10] sm:$0xff] %vm700, %v697
      %p702 = scmp.lt.s32.totalorder %s16, 1
      %s703 = scalar_select %p702, %s16, 1
      %s704 = smul.addr %s703, 3
      %s705 = smul.addr %s704, 8
      %s706 = scalar_lea.vmem %s5, %s705
      // Predicated region
      $region41: #{decoder_forward.8} parent=39 // pred_check
        %p707 = pneg %p149
      $region42: #{decoder_forward.8} parent=39 // pred_check_branch
        %709 = sbr.rel (%p707) target = $region44
      $region43: #{decoder_forward.8} parent=39 // pred_region
        _
      $region44: #{decoder_forward.8} parent=39 // pred_fallthru
        _
    $region40: #{decoder_forward.8} parent=5 // pred_fallthru
      _
    %p710 = scmp.le.s32.totalorder 2, %s11
    // Predicated region
    $region45: #{decoder_forward.8} parent=5 // pred_check
      %p711 = pneg %p710
    $region46: #{decoder_forward.8} parent=5 // pred_check_branch
      %713 = sbr.rel (%p711) target = $region48
    $region47: #{decoder_forward.8} parent=5 // pred_region
      %s714 = ssub.s32 %s11, 2
      // Predicated region
      $region49: #{decoder_forward.8} parent=47 // pred_check
        %p715 = pneg %p155
      $region50: #{decoder_forward.8} parent=47 // pred_check_branch
        %717 = sbr.rel (%p715) target = $region52
      $region51: #{decoder_forward.8} parent=47 // pred_region
        %p718 = scmp.lt.s32.totalorder %s17, 1
        %s719 = scalar_select %p718, %s17, 1
        %s720 = smul.addr %s719, 3
        %s721 = smul.addr %s720, 8
        %s722 = scalar_lea.vmem %s5, %s721
      $region52: #{decoder_forward.8} parent=47 // pred_fallthru
        _
    $region48: #{decoder_forward.8} parent=5 // pred_fallthru
      _
  $region6: #{decoder_forward.8} parent=0 // loop_footer
    %s15 = sadd.s32 1, %s11
  $region7: #{decoder_forward.8} parent=0 // loop_footer_branch
    %10 = sbr.rel target = $region3
  $region8: #{decoder_forward.8} parent=0 // loop_exit
    _

// kernel: decoder_forward.10
$region0: #{decoder_forward.10}
  #allocation0 [shape = 'u32[]', space=smem, size = 0x4, offset = 0x4, fixed_abs, tag = 'smem constant byte address 0x4 - core index']
  #allocation1 [shape = 'u32[72,128]{1,0:T(1,128)}', space=vmem, size = 0x9000, scoped, tag = 'internal scratch']
  %s0 = inlined_call_operand.vmem [shape: f32[2,8,1158], index: 0, kind: input, shape index: {}]
  %s1 = inlined_call_operand.vmem [shape: bf16[8,72], index: 1, kind: input, shape index: {}]
  %s2 = inlined_call_operand.vmem [shape: f32[8,1], index: 2, kind: input, shape index: {}]
  %s3 = inlined_call_operand.vmem [shape: f32[8,1], index: 3, kind: input, shape index: {}]
  %s4 = inlined_call_operand.vmem [shape: f32[2,8,1088], index: 4, kind: output, shape index: {}]
  %s5 = sld [smem:[#allocation0]]
  $region49: #{decoder_forward.10} parent=0
    _
  %s7 = ssub.s32 1, %s5
  %s8 = scalar_select 0, %s7, %s5
  loop: start=0, step=1, limit=4
  $region2: #{decoder_forward.10} parent=0 // loop_pre_header
    _
  $region3: #{decoder_forward.10} parent=0 // loop_header
    %s10 = sphi 0, %s14
    %p11 = scmp.ge.s32.totalorder %s10, 4
    %s20 = sphi 0, %s22
    %s23 = sphi 0, %s20
    %s24 = sphi 0, %s23
    %s40 = sphi 0, %s24
    %s44 = sphi 0, %s44
    %s46 = sphi 0, %s44
    %s47 = sphi 0, %s46
    %s61 = sphi 0, %s47
    %s65 = sphi 0, %s65
    %s67 = sphi 0, %s65
    %s68 = sphi 0, %s67
    %s82 = sphi 0, %s68
    %s86 = sphi 0, %s86
    %s88 = sphi 0, %s86
    %s89 = sphi 0, %s88
    %s103 = sphi 0, %s89
    %s109 = sphi 0, %s111
    %s112 = sphi 0, %s109
    %s113 = sphi 0, %s112
    %s129 = sphi 0, %s113
  $region4: #{decoder_forward.10} parent=0 // loop_header_branch
    %13 = sbr.rel (%p11) target = $region8
  $region5: #{decoder_forward.10} parent=0 // loop_body
    %s15 = ssub.s32 %s10, 1
    %s16 = ssub.s32 %s10, 2
    %s17 = sadd.s32 %s10, 1
    %s18 = ssub.s32 %s10, %s17
    %p19 = scmp.eq.s32.totalorder %s18, 0
    %s21 = sadd.s32 %s20, 1
    %s22 = scalar_select %p19, %s20, %s21
    %p25 = pneg %p19
    %p26 = scmp.eq.s32.totalorder %s10, 1
    %p27 = por %p25, %p26
    %p28 = scmp.ne.s32.totalorder %s20, %s23
    %p29 = scmp.eq.s32.totalorder %s10, 0
    %p30 = por %p28, %p29
    %p31 = scmp.ne.s32.totalorder %s20, %s23
    %p32 = scmp.eq.s32.totalorder %s15, 1
    %p33 = por %p31, %p32
    %p34 = scmp.ne.s32.totalorder %s23, %s24
    %p35 = scmp.eq.s32.totalorder %s15, 0
    %p36 = por %p34, %p35
    %p37 = scmp.ne.s32.totalorder %s23, %s24
    %p38 = scmp.eq.s32.totalorder %s16, 1
    %p39 = por %p37, %p38
    %p41 = scmp.ne.s32.totalorder %s24, %s40
    %p42 = scmp.eq.s32.totalorder %s16, 0
    %p43 = por %p41, %p42
    %s45 = sadd.s32 %s44, 1
    %p48 = scmp.eq.s32.totalorder %s10, 1
    %p49 = scmp.ne.s32.totalorder %s44, %s46
    %p50 = scmp.eq.s32.totalorder %s10, 0
    %p51 = por %p49, %p50
    %p52 = scmp.ne.s32.totalorder %s44, %s46
    %p53 = scmp.eq.s32.totalorder %s15, 1
    %p54 = por %p52, %p53
    %p55 = scmp.ne.s32.totalorder %s46, %s47
    %p56 = scmp.eq.s32.totalorder %s15, 0
    %p57 = por %p55, %p56
    %p58 = scmp.ne.s32.totalorder %s46, %s47
    %p59 = scmp.eq.s32.totalorder %s16, 1
    %p60 = por %p58, %p59
    %p62 = scmp.ne.s32.totalorder %s47, %s61
    %p63 = scmp.eq.s32.totalorder %s16, 0
    %p64 = por %p62, %p63
    %s66 = sadd.s32 %s65, 1
    %p69 = scmp.eq.s32.totalorder %s10, 1
    %p70 = scmp.ne.s32.totalorder %s65, %s67
    %p71 = scmp.eq.s32.totalorder %s10, 0
    %p72 = por %p70, %p71
    %p73 = scmp.ne.s32.totalorder %s65, %s67
    %p74 = scmp.eq.s32.totalorder %s15, 1
    %p75 = por %p73, %p74
    %p76 = scmp.ne.s32.totalorder %s67, %s68
    %p77 = scmp.eq.s32.totalorder %s15, 0
    %p78 = por %p76, %p77
    %p79 = scmp.ne.s32.totalorder %s67, %s68
    %p80 = scmp.eq.s32.totalorder %s16, 1
    %p81 = por %p79, %p80
    %p83 = scmp.ne.s32.totalorder %s68, %s82
    %p84 = scmp.eq.s32.totalorder %s16, 0
    %p85 = por %p83, %p84
    %s87 = sadd.s32 %s86, 1
    %p90 = scmp.eq.s32.totalorder %s10, 1
    %p91 = scmp.ne.s32.totalorder %s86, %s88
    %p92 = scmp.eq.s32.totalorder %s10, 0
    %p93 = por %p91, %p92
    %p94 = scmp.ne.s32.totalorder %s86, %s88
    %p95 = scmp.eq.s32.totalorder %s15, 1
    %p96 = por %p94, %p95
    %p97 = scmp.ne.s32.totalorder %s88, %s89
    %p98 = scmp.eq.s32.totalorder %s15, 0
    %p99 = por %p97, %p98
    %p100 = scmp.ne.s32.totalorder %s88, %s89
    %p101 = scmp.eq.s32.totalorder %s16, 1
    %p102 = por %p100, %p101
    %p104 = scmp.ne.s32.totalorder %s89, %s103
    %p105 = scmp.eq.s32.totalorder %s16, 0
    %p106 = por %p104, %p105
    %s107 = ssub.s32 %s10, %s17
    %p108 = scmp.eq.s32.totalorder %s107, 0
    %s110 = sadd.s32 %s109, 1
    %s111 = scalar_select %p108, %s109, %s110
    %p114 = pneg %p108
    %p115 = scmp.eq.s32.totalorder %s10, 1
    %p116 = por %p114, %p115
    %p117 = scmp.ne.s32.totalorder %s109, %s112
    %p118 = scmp.eq.s32.totalorder %s10, 0
    %p119 = por %p117, %p118
    %p120 = scmp.ne.s32.totalorder %s109, %s112
    %p121 = scmp.eq.s32.totalorder %s15, 1
    %p122 = por %p120, %p121
    %p123 = scmp.ne.s32.totalorder %s112, %s113
    %p124 = scmp.eq.s32.totalorder %s15, 0
    %p125 = por %p123, %p124
    %p126 = scmp.ne.s32.totalorder %s112, %s113
    %p127 = scmp.eq.s32.totalorder %s16, 1
    %p128 = por %p126, %p127
    %p130 = scmp.ne.s32.totalorder %s113, %s129
    %p131 = scmp.eq.s32.totalorder %s16, 0
    %p132 = por %p130, %p131
    %p133 = scmp.le.s32.totalorder 1, %s10
    %p134 = scmp.lt.s32.totalorder %s10, 3
    %p135 = pnand %p133, %p134
    %p136 = pneg %p135
    // Predicated region
    $region9: #{decoder_forward.10} parent=5 // pred_check
      _
    $region10: #{decoder_forward.10} parent=5 // pred_check_branch
      %138 = sbr.rel (%p135) target = $region12
    $region11: #{decoder_forward.10} parent=5 // pred_region
      %s139 = ssub.s32 %s10, 1
      // Predicated region
      $region13: #{decoder_forward.10} parent=11 // pred_check
        %p140 = pneg %p57
      $region14: #{decoder_forward.10} parent=11 // pred_check_branch
        %142 = sbr.rel (%p140) target = $region16
      $region15: #{decoder_forward.10} parent=11 // pred_region
        _
      $region16: #{decoder_forward.10} parent=11 // pred_fallthru
        _
      // Predicated region
      $region17: #{decoder_forward.10} parent=11 // pred_check
        %p143 = pneg %p78
      $region18: #{decoder_forward.10} parent=11 // pred_check_branch
        %145 = sbr.rel (%p143) target = $region20
      $region19: #{decoder_forward.10} parent=11 // pred_region
        _
      $region20: #{decoder_forward.10} parent=11 // pred_fallthru
        _
      // Predicated region
      $region21: #{decoder_forward.10} parent=11 // pred_check
        %p146 = pneg %p99
      $region22: #{decoder_forward.10} parent=11 // pred_check_branch
        %148 = sbr.rel (%p146) target = $region24
      $region23: #{decoder_forward.10} parent=11 // pred_region
        _
      $region24: #{decoder_forward.10} parent=11 // pred_fallthru
        _
    $region12: #{decoder_forward.10} parent=5 // pred_fallthru
      _
    %p149 = scmp.lt.s32.totalorder %s10, 2
    // Predicated region
    $region25: #{decoder_forward.10} parent=5 // pred_check
      %p150 = pneg %p149
    $region26: #{decoder_forward.10} parent=5 // pred_check_branch
      %152 = sbr.rel (%p150) target = $region28
    $region27: #{decoder_forward.10} parent=5 // pred_region
      // Predicated region
      $region29: #{decoder_forward.10} parent=27 // pred_check
        %p153 = pneg %p30
      $region30: #{decoder_forward.10} parent=27 // pred_check_branch
        %155 = sbr.rel (%p153) target = $region32
      $region31: #{decoder_forward.10} parent=27 // pred_region
        %p156 = scmp.lt.s32.totalorder %s10, 1
        %s157 = scalar_select %p156, %s10, 1
        %s158 = smul.addr %s157, 10
        %s159 = smul.addr %s158, 8
        %s160 = scalar_lea.vmem %s0, %s159
      $region32: #{decoder_forward.10} parent=27 // pred_fallthru
        _
    $region28: #{decoder_forward.10} parent=5 // pred_fallthru
      _
    %p161 = scmp.le.s32.totalorder 1, %s10
    %p162 = scmp.lt.s32.totalorder %s10, 3
    %p163 = pnand %p161, %p162
    %p164 = pneg %p163
    // Predicated region
    $region33: #{decoder_forward.10} parent=5 // pred_check
      _
    $region34: #{decoder_forward.10} parent=5 // pred_check_branch
      %166 = sbr.rel (%p163) target = $region36
    $region35: #{decoder_forward.10} parent=5 // pred_region
      %s167 = ssub.s32 %s10, 1
      %p168 = scmp.lt.s32.totalorder %s15, 1
      %s169 = scalar_select %p168, %s15, 1
      %s170 = smul.addr %s169, 10
      %s171 = smul.addr %s170, 8
      %s172 = scalar_lea.vmem %s0, %s171
      %p173 = pneg %p36
      %p174 = pneg %p33
      %p175 = pneg %p57
      %p176 = pneg %p54
      %p177 = pneg %p78
      %p178 = pneg %p75
      %p179 = pneg %p99
      %p180 = pneg %p96
      %p181 = pneg %p125
      %p182 = pneg %p122
      %p183 = scmp.lt.s32.totalorder %s15, 1
      %s184 = scalar_select %p183, %s15, 1
      %s185 = smul.addr %s184, 9
      %s186 = smul.addr %s185, 8
      %s187 = scalar_lea.vmem %s4, %s186
      %p188 = scmp.lt.s32.totalorder %s15, 1
      %s189 = scalar_select %p188, %s15, 1
      %s190 = smul.addr %s189, 10
      %s191 = smul.addr %s190, 8
      %s192 = scalar_lea.vmem %s0, %s191
      %p193 = scmp.lt.s32.totalorder %s15, 1
      %s194 = scalar_select %p193, %s15, 1
      %s195 = smul.addr %s194, 9
      %s196 = smul.addr %s195, 8
      %s197 = scalar_lea.vmem %s4, %s196
      %v199 = vld [vmem:[%s192] sm:$0xff]
      %v200 = vld [vmem:[%s192 + $0x8] sm:$0xff]
      %v201 = vld [vmem:[%s192 + $0x10] sm:$0xff]
      %v202 = vld [vmem:[%s192 + $0x18] sm:$0xff]
      %v203 = vld [vmem:[%s192 + $0x20] sm:$0xff]
      %v204 = vld [vmem:[%s192 + $0x28] sm:$0xff]
      %v205 = vld [vmem:[%s192 + $0x30] sm:$0xff]
      %v206 = vld [vmem:[%s192 + $0x38] sm:$0xff]
      %v207 = vld [vmem:[%s192 + $0x40] sm:$0xff]
      %v208 = vld [vmem:[%s192 + $0x48] sm:$0xff]
      %218 = vrot.lane.b32.xlu0 %v199, 127
      %v219 = vpop.permute.xlu0 %218
      %220 = vrot.lane.b32.xlu0 %v200, 127
      %v221 = vpop.permute.xlu0 %220
      %222 = vrot.lane.b32.xlu0 %v201, 127
      %v223 = vpop.permute.xlu0 %222
      %224 = vrot.lane.b32.xlu0 %v202, 127
      %v225 = vpop.permute.xlu0 %224
      %226 = vrot.lane.b32.xlu0 %v203, 127
      %v227 = vpop.permute.xlu0 %226
      %228 = vrot.lane.b32.xlu0 %v204, 127
      %v229 = vpop.permute.xlu0 %228
      %230 = vrot.lane.b32.xlu0 %v205, 127
      %v231 = vpop.permute.xlu0 %230
      %232 = vrot.lane.b32.xlu0 %v206, 127
      %v233 = vpop.permute.xlu0 %232
      %234 = vrot.lane.b32.xlu0 %v207, 127
      %v235 = vpop.permute.xlu0 %234
      %vm236 = vcmask 1039360
      %v237 = vsel %vm236, %v219, %v221
      %v238 = vsel %vm236, %v221, %v223
      %v239 = vsel %vm236, %v223, %v225
      %v240 = vsel %vm236, %v225, %v227
      %v241 = vsel %vm236, %v227, %v229
      %v242 = vsel %vm236, %v229, %v231
      %v243 = vsel %vm236, %v231, %v233
      %v244 = vsel %vm236, %v233, %v235
      %254 = vrot.lane.b32.xlu0 %v199, 126
      %v255 = vpop.permute.xlu0 %254
      %256 = vrot.lane.b32.xlu0 %v200, 126
      %v257 = vpop.permute.xlu0 %256
      %258 = vrot.lane.b32.xlu0 %v201, 126
      %v259 = vpop.permute.xlu0 %258
      %260 = vrot.lane.b32.xlu0 %v202, 126
      %v261 = vpop.permute.xlu0 %260
      %262 = vrot.lane.b32.xlu0 %v203, 126
      %v263 = vpop.permute.xlu0 %262
      %264 = vrot.lane.b32.xlu0 %v204, 126
      %v265 = vpop.permute.xlu0 %264
      %266 = vrot.lane.b32.xlu0 %v205, 126
      %v267 = vpop.permute.xlu0 %266
      %268 = vrot.lane.b32.xlu0 %v206, 126
      %v269 = vpop.permute.xlu0 %268
      %270 = vrot.lane.b32.xlu0 %v207, 126
      %v271 = vpop.permute.xlu0 %270
      %vm272 = vcmask 1031168
      %v273 = vsel %vm272, %v255, %v257
      %v274 = vsel %vm272, %v257, %v259
      %v275 = vsel %vm272, %v259, %v261
      %v276 = vsel %vm272, %v261, %v263
      %v277 = vsel %vm272, %v263, %v265
      %v278 = vsel %vm272, %v265, %v267
      %v279 = vsel %vm272, %v267, %v269
      %v280 = vsel %vm272, %v269, %v271
      %290 = vrot.lane.b32.xlu0 %v199, 94
      %v291 = vpop.permute.xlu0 %290
      %292 = vrot.lane.b32.xlu0 %v200, 94
      %v293 = vpop.permute.xlu0 %292
      %294 = vrot.lane.b32.xlu0 %v201, 94
      %v295 = vpop.permute.xlu0 %294
      %296 = vrot.lane.b32.xlu0 %v202, 94
      %v297 = vpop.permute.xlu0 %296
      %298 = vrot.lane.b32.xlu0 %v203, 94
      %v299 = vpop.permute.xlu0 %298
      %300 = vrot.lane.b32.xlu0 %v204, 94
      %v301 = vpop.permute.xlu0 %300
      %302 = vrot.lane.b32.xlu0 %v205, 94
      %v303 = vpop.permute.xlu0 %302
      %304 = vrot.lane.b32.xlu0 %v206, 94
      %v305 = vpop.permute.xlu0 %304
      %306 = vrot.lane.b32.xlu0 %v207, 94
      %v307 = vpop.permute.xlu0 %306
      %vm308 = vcmask 769024
      %v309 = vsel %vm308, %v291, %v293
      %v310 = vsel %vm308, %v293, %v295
      %v311 = vsel %vm308, %v295, %v297
      %v312 = vsel %vm308, %v297, %v299
      %v313 = vsel %vm308, %v299, %v301
      %v314 = vsel %vm308, %v301, %v303
      %v315 = vsel %vm308, %v303, %v305
      %v316 = vsel %vm308, %v305, %v307
      %326 = vrot.lane.b32.xlu0 %v199, 93
      %v327 = vpop.permute.xlu0 %326
      %328 = vrot.lane.b32.xlu0 %v200, 93
      %v329 = vpop.permute.xlu0 %328
      %330 = vrot.lane.b32.xlu0 %v201, 93
      %v331 = vpop.permute.xlu0 %330
      %332 = vrot.lane.b32.xlu0 %v202, 93
      %v333 = vpop.permute.xlu0 %332
      %334 = vrot.lane.b32.xlu0 %v203, 93
      %v335 = vpop.permute.xlu0 %334
      %336 = vrot.lane.b32.xlu0 %v204, 93
      %v337 = vpop.permute.xlu0 %336
      %338 = vrot.lane.b32.xlu0 %v205, 93
      %v339 = vpop.permute.xlu0 %338
      %340 = vrot.lane.b32.xlu0 %v206, 93
      %v341 = vpop.permute.xlu0 %340
      %342 = vrot.lane.b32.xlu0 %v207, 93
      %v343 = vpop.permute.xlu0 %342
      %vm344 = vcmask 760832
      %v345 = vsel %vm344, %v327, %v329
      %v346 = vsel %vm344, %v329, %v331
      %v347 = vsel %vm344, %v331, %v333
      %v348 = vsel %vm344, %v333, %v335
      %v349 = vsel %vm344, %v335, %v337
      %v350 = vsel %vm344, %v337, %v339
      %v351 = vsel %vm344, %v339, %v341
      %v352 = vsel %vm344, %v341, %v343
      %362 = vrot.lane.b32.xlu0 %v199, 92
      %v363 = vpop.permute.xlu0 %362
      %364 = vrot.lane.b32.xlu0 %v200, 92
      %v365 = vpop.permute.xlu0 %364
      %366 = vrot.lane.b32.xlu0 %v201, 92
      %v367 = vpop.permute.xlu0 %366
      %368 = vrot.lane.b32.xlu0 %v202, 92
      %v369 = vpop.permute.xlu0 %368
      %370 = vrot.lane.b32.xlu0 %v203, 92
      %v371 = vpop.permute.xlu0 %370
      %372 = vrot.lane.b32.xlu0 %v204, 92
      %v373 = vpop.permute.xlu0 %372
      %374 = vrot.lane.b32.xlu0 %v205, 92
      %v375 = vpop.permute.xlu0 %374
      %376 = vrot.lane.b32.xlu0 %v206, 92
      %v377 = vpop.permute.xlu0 %376
      %378 = vrot.lane.b32.xlu0 %v207, 92
      %v379 = vpop.permute.xlu0 %378
      %vm380 = vcmask 752640
      %v381 = vsel %vm380, %v363, %v365
      %v382 = vsel %vm380, %v365, %v367
      %v383 = vsel %vm380, %v367, %v369
      %v384 = vsel %vm380, %v369, %v371
      %v385 = vsel %vm380, %v371, %v373
      %v386 = vsel %vm380, %v373, %v375
      %v387 = vsel %vm380, %v375, %v377
      %v388 = vsel %vm380, %v377, %v379
      %399 = vrot.lane.b32.xlu0 %v199, 60
      %v400 = vpop.permute.xlu0 %399
      %401 = vrot.lane.b32.xlu0 %v200, 60
      %v402 = vpop.permute.xlu0 %401
      %403 = vrot.lane.b32.xlu0 %v201, 60
      %v404 = vpop.permute.xlu0 %403
      %405 = vrot.lane.b32.xlu0 %v202, 60
      %v406 = vpop.permute.xlu0 %405
      %407 = vrot.lane.b32.xlu0 %v203, 60
      %v408 = vpop.permute.xlu0 %407
      %409 = vrot.lane.b32.xlu0 %v204, 60
      %v410 = vpop.permute.xlu0 %409
      %411 = vrot.lane.b32.xlu0 %v205, 60
      %v412 = vpop.permute.xlu0 %411
      %413 = vrot.lane.b32.xlu0 %v206, 60
      %v414 = vpop.permute.xlu0 %413
      %415 = vrot.lane.b32.xlu0 %v207, 60
      %v416 = vpop.permute.xlu0 %415
      %417 = vrot.lane.b32.xlu0 %v208, 60
      %v418 = vpop.permute.xlu0 %417
      %vm419 = vcmask 490496
      %v420 = vsel %vm419, %v400, %v402
      %v421 = vsel %vm419, %v402, %v404
      %v422 = vsel %vm419, %v404, %v406
      %v423 = vsel %vm419, %v406, %v408
      %v424 = vsel %vm419, %v408, %v410
      %v425 = vsel %vm419, %v410, %v412
      %v426 = vsel %vm419, %v412, %v414
      %v427 = vsel %vm419, %v414, %v416
      %v428 = vsel %vm419, %v416, %v418
      %438 = vrot.lane.b32.xlu0 %v199, 59
      %v439 = vpop.permute.xlu0 %438
      %440 = vrot.lane.b32.xlu0 %v200, 59
      %v441 = vpop.permute.xlu0 %440
      %442 = vrot.lane.b32.xlu0 %v201, 59
      %v443 = vpop.permute.xlu0 %442
      %444 = vrot.lane.b32.xlu0 %v202, 59
      %v445 = vpop.permute.xlu0 %444
      %446 = vrot.lane.b32.xlu0 %v203, 59
      %v447 = vpop.permute.xlu0 %446
      %448 = vrot.lane.b32.xlu0 %v204, 59
      %v449 = vpop.permute.xlu0 %448
      %450 = vrot.lane.b32.xlu0 %v205, 59
      %v451 = vpop.permute.xlu0 %450
      %452 = vrot.lane.b32.xlu0 %v206, 59
      %v453 = vpop.permute.xlu0 %452
      %454 = vrot.lane.b32.xlu0 %v207, 59
      %v455 = vpop.permute.xlu0 %454
      %456 = vrot.lane.b32.xlu0 %v208, 59
      %v457 = vpop.permute.xlu0 %456
      %vm458 = vcmask 482304
      %v459 = vsel %vm458, %v439, %v441
      %v460 = vsel %vm458, %v441, %v443
      %v461 = vsel %vm458, %v443, %v445
      %v462 = vsel %vm458, %v445, %v447
      %v463 = vsel %vm458, %v447, %v449
      %v464 = vsel %vm458, %v449, %v451
      %v465 = vsel %vm458, %v451, %v453
      %v466 = vsel %vm458, %v453, %v455
      %v467 = vsel %vm458, %v455, %v457
      %477 = vrot.lane.b32.xlu0 %v199, 58
      %v478 = vpop.permute.xlu0 %477
      %479 = vrot.lane.b32.xlu0 %v200, 58
      %v480 = vpop.permute.xlu0 %479
      %481 = vrot.lane.b32.xlu0 %v201, 58
      %v482 = vpop.permute.xlu0 %481
      %483 = vrot.lane.b32.xlu0 %v202, 58
      %v484 = vpop.permute.xlu0 %483
      %485 = vrot.lane.b32.xlu0 %v203, 58
      %v486 = vpop.permute.xlu0 %485
      %487 = vrot.lane.b32.xlu0 %v204, 58
      %v488 = vpop.permute.xlu0 %487
      %489 = vrot.lane.b32.xlu0 %v205, 58
      %v490 = vpop.permute.xlu0 %489
      %491 = vrot.lane.b32.xlu0 %v206, 58
      %v492 = vpop.permute.xlu0 %491
      %493 = vrot.lane.b32.xlu0 %v207, 58
      %v494 = vpop.permute.xlu0 %493
      %495 = vrot.lane.b32.xlu0 %v208, 58
      %v496 = vpop.permute.xlu0 %495
      %vm497 = vcmask 474112
      %v498 = vsel %vm497, %v478, %v480
      %v499 = vsel %vm497, %v480, %v482
      %v500 = vsel %vm497, %v482, %v484
      %v501 = vsel %vm497, %v484, %v486
      %v502 = vsel %vm497, %v486, %v488
      %v503 = vsel %vm497, %v488, %v490
      %v504 = vsel %vm497, %v490, %v492
      %v505 = vsel %vm497, %v492, %v494
      %v506 = vsel %vm497, %v494, %v496
      %v516 = vpack.c.bf16 %v237, %v199
      %v517 = vpack.c.bf16 %v238, %v200
      %v518 = vpack.c.bf16 %v239, %v201
      %v519 = vpack.c.bf16 %v240, %v202
      %v520 = vpack.c.bf16 %v241, %v203
      %v521 = vpack.c.bf16 %v242, %v204
      %v522 = vpack.c.bf16 %v243, %v205
      %v523 = vpack.c.bf16 %v244, %v206
      %v524 = vpack.c.bf16 %v235, %v207
      %v525 = vpack.c.bf16 %v309, %v273
      %v526 = vpack.c.bf16 %v310, %v274
      %v527 = vpack.c.bf16 %v311, %v275
      %v528 = vpack.c.bf16 %v312, %v276
      %v529 = vpack.c.bf16 %v313, %v277
      %v530 = vpack.c.bf16 %v314, %v278
      %v531 = vpack.c.bf16 %v315, %v279
      %v532 = vpack.c.bf16 %v316, %v280
      %v533 = vpack.c.bf16 %v307, %v271
      %v534 = vpack.c.bf16 %v381, %v345
      %v535 = vpack.c.bf16 %v382, %v346
      %v536 = vpack.c.bf16 %v383, %v347
      %v537 = vpack.c.bf16 %v384, %v348
      %v538 = vpack.c.bf16 %v385, %v349
      %v539 = vpack.c.bf16 %v386, %v350
      %v540 = vpack.c.bf16 %v387, %v351
      %v541 = vpack.c.bf16 %v388, %v352
      %v542 = vpack.c.bf16 %v379, %v343
      %v543 = vpack.c.bf16 %v459, %v420
      %v544 = vpack.c.bf16 %v460, %v421
      %v545 = vpack.c.bf16 %v461, %v422
      %v546 = vpack.c.bf16 %v462, %v423
      %v547 = vpack.c.bf16 %v463, %v424
      %v548 = vpack.c.bf16 %v464, %v425
      %v549 = vpack.c.bf16 %v465, %v426
      %v550 = vpack.c.bf16 %v466, %v427
      %v551 = vpack.c.bf16 %v467, %v428
      %v552 = vpack.c.bf16 %v498, %v498
      %v553 = vpack.c.bf16 %v499, %v499
      %v554 = vpack.c.bf16 %v500, %v500
      %v555 = vpack.c.bf16 %v501, %v501
      %v556 = vpack.c.bf16 %v502, %v502
      %v557 = vpack.c.bf16 %v503, %v503
      %v558 = vpack.c.bf16 %v504, %v504
      %v559 = vpack.c.bf16 %v505, %v505
      %v560 = vpack.c.bf16 %v506, %v506
      %v561 = vld [vmem:[%s1] sm:$0xf]
      %vm562 = vcmask 588800
      %v564 = vsel %vm562, %v561, 0
      %vm566 = vcmask 1043456
      %v568 = vsel %vm566, %v552, 0
      %v571 = vsel %vm566, %v553, 0
      %v574 = vsel %vm566, %v554, 0
      %v577 = vsel %vm566, %v555, 0
      %v580 = vsel %vm566, %v556, 0
      %v583 = vsel %vm566, %v557, 0
      %v586 = vsel %vm566, %v558, 0
      %v589 = vsel %vm566, %v559, 0
      %v592 = vsel %vm566, %v560, 0
      %594 = vmatpush.bf16.msra.mxu0 0
      %595 = vmatpush.bf16.msra.mxu0 0
      %596 = vmatpush.bf16.msra.mxu0 0
      %597 = vmatpush.bf16.msra.mxu0 %v568
      %598 = vmatpush.bf16.msra.mxu0 %v543
      %599 = vmatpush.bf16.msra.mxu0 %v534
      %600 = vmatpush.bf16.msra.mxu0 %v525
      %601 = vmatpush.bf16.msra.mxu0 %v516
      %602 = vmatmul.bf16.gmra.mxu0 %v564
      %v603 = vpop.f32.mrf.mxu0
      %v604 = vadd.f32 0.0, %v603
      %v605 = vpop.f32.mrf.mxu0
      %606 = vdwg.mxu0
      %607 = vmatpush.bf16.msra.mxu0 0
      %608 = vmatpush.bf16.msra.mxu0 0
      %609 = vmatpush.bf16.msra.mxu0 0
      %610 = vmatpush.bf16.msra.mxu0 %v571
      %611 = vmatpush.bf16.msra.mxu0 %v544
      %612 = vmatpush.bf16.msra.mxu0 %v535
      %613 = vmatpush.bf16.msra.mxu0 %v526
      %614 = vmatpush.bf16.msra.mxu0 %v517
      %615 = vmatmul.bf16.gmra.mxu0 %v564
      %v616 = vpop.f32.mrf.mxu0
      %v617 = vadd.f32 0.0, %v616
      %v618 = vpop.f32.mrf.mxu0
      %619 = vdwg.mxu0
      %620 = vmatpush.bf16.msra.mxu0 0
      %621 = vmatpush.bf16.msra.mxu0 0
      %622 = vmatpush.bf16.msra.mxu0 0
      %623 = vmatpush.bf16.msra.mxu0 %v574
      %624 = vmatpush.bf16.msra.mxu0 %v545
      %625 = vmatpush.bf16.msra.mxu0 %v536
      %626 = vmatpush.bf16.msra.mxu0 %v527
      %627 = vmatpush.bf16.msra.mxu0 %v518
      %628 = vmatmul.bf16.gmra.mxu0 %v564
      %v629 = vpop.f32.mrf.mxu0
      %v630 = vadd.f32 0.0, %v629
      %v631 = vpop.f32.mrf.mxu0
      %632 = vdwg.mxu0
      %633 = vmatpush.bf16.msra.mxu0 0
      %634 = vmatpush.bf16.msra.mxu0 0
      %635 = vmatpush.bf16.msra.mxu0 0
      %636 = vmatpush.bf16.msra.mxu0 %v577
      %637 = vmatpush.bf16.msra.mxu0 %v546
      %638 = vmatpush.bf16.msra.mxu0 %v537
      %639 = vmatpush.bf16.msra.mxu0 %v528
      %640 = vmatpush.bf16.msra.mxu0 %v519
      %641 = vmatmul.bf16.gmra.mxu0 %v564
      %v642 = vpop.f32.mrf.mxu0
      %v643 = vadd.f32 0.0, %v642
      %v644 = vpop.f32.mrf.mxu0
      %645 = vdwg.mxu0
      %646 = vmatpush.bf16.msra.mxu0 0
      %647 = vmatpush.bf16.msra.mxu0 0
      %648 = vmatpush.bf16.msra.mxu0 0
      %649 = vmatpush.bf16.msra.mxu0 %v580
      %650 = vmatpush.bf16.msra.mxu0 %v547
      %651 = vmatpush.bf16.msra.mxu0 %v538
      %652 = vmatpush.bf16.msra.mxu0 %v529
      %653 = vmatpush.bf16.msra.mxu0 %v520
      %654 = vmatmul.bf16.gmra.mxu0 %v564
      %v655 = vpop.f32.mrf.mxu0
      %v656 = vadd.f32 0.0, %v655
      %v657 = vpop.f32.mrf.mxu0
      %658 = vdwg.mxu0
      %659 = vmatpush.bf16.msra.mxu0 0
      %660 = vmatpush.bf16.msra.mxu0 0
      %661 = vmatpush.bf16.msra.mxu0 0
      %662 = vmatpush.bf16.msra.mxu0 %v583
      %663 = vmatpush.bf16.msra.mxu0 %v548
      %664 = vmatpush.bf16.msra.mxu0 %v539
      %665 = vmatpush.bf16.msra.mxu0 %v530
      %666 = vmatpush.bf16.msra.mxu0 %v521
      %667 = vmatmul.bf16.gmra.mxu0 %v564
      %v668 = vpop.f32.mrf.mxu0
      %v669 = vadd.f32 0.0, %v668
      %v670 = vpop.f32.mrf.mxu0
      %671 = vdwg.mxu0
      %672 = vmatpush.bf16.msra.mxu0 0
      %673 = vmatpush.bf16.msra.mxu0 0
      %674 = vmatpush.bf16.msra.mxu0 0
      %675 = vmatpush.bf16.msra.mxu0 %v586
      %676 = vmatpush.bf16.msra.mxu0 %v549
      %677 = vmatpush.bf16.msra.mxu0 %v540
      %678 = vmatpush.bf16.msra.mxu0 %v531
      %679 = vmatpush.bf16.msra.mxu0 %v522
      %680 = vmatmul.bf16.gmra.mxu0 %v564
      %v681 = vpop.f32.mrf.mxu0
      %v682 = vadd.f32 0.0, %v681
      %v683 = vpop.f32.mrf.mxu0
      %684 = vdwg.mxu0
      %685 = vmatpush.bf16.msra.mxu0 0
      %686 = vmatpush.bf16.msra.mxu0 0
      %687 = vmatpush.bf16.msra.mxu0 0
      %688 = vmatpush.bf16.msra.mxu0 %v589
      %689 = vmatpush.bf16.msra.mxu0 %v550
      %690 = vmatpush.bf16.msra.mxu0 %v541
      %691 = vmatpush.bf16.msra.mxu0 %v532
      %692 = vmatpush.bf16.msra.mxu0 %v523
      %693 = vmatmul.bf16.gmra.mxu0 %v564
      %v694 = vpop.f32.mrf.mxu0
      %v695 = vadd.f32 0.0, %v694
      %v696 = vpop.f32.mrf.mxu0
      %697 = vdwg.mxu0
      %698 = vmatpush.bf16.msra.mxu0 0
      %699 = vmatpush.bf16.msra.mxu0 0
      %700 = vmatpush.bf16.msra.mxu0 0
      %701 = vmatpush.bf16.msra.mxu0 %v592
      %702 = vmatpush.bf16.msra.mxu0 %v551
      %703 = vmatpush.bf16.msra.mxu0 %v542
      %704 = vmatpush.bf16.msra.mxu0 %v533
      %705 = vmatpush.bf16.msra.mxu0 %v524
      %706 = vmatmul.bf16.gmra.mxu0 %v564
      %v707 = vpop.f32.mrf.mxu0
      %v708 = vadd.f32 0.0, %v707
      %v709 = vpop.f32.mrf.mxu0
      %710 = vdwg.mxu0
      %v711 = vld [vmem:[%s2] sm:$0xff]
      %713 = vset.pattern.permute.xlu0 0
      %714 = vperm.xlu0 %713, %v711
      %v715 = vpop.permute.xlu0 %714
      %v717 = vmul.f32 %v604, %v715
      %v718 = vmul.f32 %v617, %v715
      %v719 = vmul.f32 %v630, %v715
      %v720 = vmul.f32 %v643, %v715
      %v721 = vmul.f32 %v656, %v715
      %v722 = vmul.f32 %v669, %v715
      %v723 = vmul.f32 %v682, %v715
      %v724 = vmul.f32 %v695, %v715
      %v725 = vmul.f32 %v708, %v715
      %v726 = vld [vmem:[%s3] sm:$0xff]
      %728 = vset.pattern.permute.xlu0 0
      %729 = vperm.xlu0 %728, %v726
      %v730 = vpop.permute.xlu0 %729
      %v732 = vadd.f32 %v717, %v730
      %v733 = vadd.f32 %v718, %v730
      %v734 = vadd.f32 %v719, %v730
      %v735 = vadd.f32 %v720, %v730
      %v736 = vadd.f32 %v721, %v730
      %v737 = vadd.f32 %v722, %v730
      %v738 = vadd.f32 %v723, %v730
      %v739 = vadd.f32 %v724, %v730
      %v740 = vadd.f32 %v725, %v730
      %v741 = vmax.f32 %v732, 0.0
      %v742 = vmax.f32 %v733, 0.0
      %v743 = vmax.f32 %v734, 0.0
      %v744 = vmax.f32 %v735, 0.0
      %v745 = vmax.f32 %v736, 0.0
      %v746 = vmax.f32 %v737, 0.0
      %v747 = vmax.f32 %v738, 0.0
      %v748 = vmax.f32 %v739, 0.0
      %v749 = vmax.f32 %v740, 0.0
      %750 = vst [vmem:[%s197] sm:$0xff] %v741
      %751 = vst [vmem:[%s197 + $0x8] sm:$0xff] %v742
      %752 = vst [vmem:[%s197 + $0x10] sm:$0xff] %v743
      %753 = vst [vmem:[%s197 + $0x18] sm:$0xff] %v744
      %754 = vst [vmem:[%s197 + $0x20] sm:$0xff] %v745
      %755 = vst [vmem:[%s197 + $0x28] sm:$0xff] %v746
      %756 = vst [vmem:[%s197 + $0x30] sm:$0xff] %v747
      %757 = vst [vmem:[%s197 + $0x38] sm:$0xff] %v748
      %vm758 = vcmask 523264
      %759 = vst.msk [vmem:[%s197 + $0x40] sm:$0xff] %vm758, %v749
      %p760 = scmp.lt.s32.totalorder %s15, 1
      %s761 = scalar_select %p760, %s15, 1
      %s762 = smul.addr %s761, 9
      %s763 = smul.addr %s762, 8
      %s764 = scalar_lea.vmem %s4, %s763
      // Predicated region
      $region37: #{decoder_forward.10} parent=35 // pred_check
        %p765 = pneg %p122
      $region38: #{decoder_forward.10} parent=35 // pred_check_branch
        %767 = sbr.rel (%p765) target = $region40
      $region39: #{decoder_forward.10} parent=35 // pred_region
        _
      $region40: #{decoder_forward.10} parent=35 // pred_fallthru
        _
    $region36: #{decoder_forward.10} parent=5 // pred_fallthru
      _
    %p768 = scmp.le.s32.totalorder 2, %s10
    // Predicated region
    $region41: #{decoder_forward.10} parent=5 // pred_check
      %p769 = pneg %p768
    $region42: #{decoder_forward.10} parent=5 // pred_check_branch
      %771 = sbr.rel (%p769) target = $region44
    $region43: #{decoder_forward.10} parent=5 // pred_region
      %s772 = ssub.s32 %s10, 2
      // Predicated region
      $region45: #{decoder_forward.10} parent=43 // pred_check
        %p773 = pneg %p128
      $region46: #{decoder_forward.10} parent=43 // pred_check_branch
        %775 = sbr.rel (%p773) target = $region48
      $region47: #{decoder_forward.10} parent=43 // pred_region
        %p776 = scmp.lt.s32.totalorder %s16, 1
        %s777 = scalar_select %p776, %s16, 1
        %s778 = smul.addr %s777, 9
        %s779 = smul.addr %s778, 8
        %s780 = scalar_lea.vmem %s4, %s779
      $region48: #{decoder_forward.10} parent=43 // pred_fallthru
        _
    $region44: #{decoder_forward.10} parent=5 // pred_fallthru
      _
  $region6: #{decoder_forward.10} parent=0 // loop_footer
    %s14 = sadd.s32 1, %s10
  $region7: #{decoder_forward.10} parent=0 // loop_footer_branch
    %9 = sbr.rel target = $region3
  $region8: #{decoder_forward.10} parent=0 // loop_exit
    _

// kernel: decoder_forward.11
$region0: #{decoder_forward.11}
  #allocation0 [shape = 'u32[]', space=smem, size = 0x4, offset = 0x4, fixed_abs, tag = 'smem constant byte address 0x4 - core index']
  #allocation1 [shape = 'u32[72,128]{1,0:T(1,128)}', space=vmem, size = 0x9000, scoped, tag = 'internal scratch']
  %s0 = inlined_call_operand.vmem [shape: f32[2,8,1158], index: 0, kind: input, shape index: {}]
  %s1 = inlined_call_operand.vmem [shape: f32[2,8,1158], index: 1, kind: input, shape index: {}]
  %s2 = inlined_call_operand.vmem [shape: bf16[8,144], index: 2, kind: input, shape index: {}]
  %s3 = inlined_call_operand.vmem [shape: f32[8,1], index: 3, kind: input, shape index: {}]
  %s4 = inlined_call_operand.vmem [shape: f32[8,1], index: 4, kind: input, shape index: {}]
  %s5 = inlined_call_operand.vmem [shape: f32[2,8,1088], index: 5, kind: output, shape index: {}]
  %s6 = sld [smem:[#allocation0]]
  $region53: #{decoder_forward.11} parent=0
    _
  %s8 = ssub.s32 1, %s6
  %s9 = scalar_select 0, %s8, %s6
  loop: start=0, step=1, limit=4
  $region2: #{decoder_forward.11} parent=0 // loop_pre_header
    _
  $region3: #{decoder_forward.11} parent=0 // loop_header
    %s11 = sphi 0, %s15
    %p12 = scmp.ge.s32.totalorder %s11, 4
    %s21 = sphi 0, %s23
    %s24 = sphi 0, %s21
    %s25 = sphi 0, %s24
    %s41 = sphi 0, %s25
    %s47 = sphi 0, %s49
    %s50 = sphi 0, %s47
    %s51 = sphi 0, %s50
    %s67 = sphi 0, %s51
    %s71 = sphi 0, %s71
    %s73 = sphi 0, %s71
    %s74 = sphi 0, %s73
    %s88 = sphi 0, %s74
    %s92 = sphi 0, %s92
    %s94 = sphi 0, %s92
    %s95 = sphi 0, %s94
    %s109 = sphi 0, %s95
    %s113 = sphi 0, %s113
    %s115 = sphi 0, %s113
    %s116 = sphi 0, %s115
    %s130 = sphi 0, %s116
    %s136 = sphi 0, %s138
    %s139 = sphi 0, %s136
    %s140 = sphi 0, %s139
    %s156 = sphi 0, %s140
  $region4: #{decoder_forward.11} parent=0 // loop_header_branch
    %14 = sbr.rel (%p12) target = $region8
  $region5: #{decoder_forward.11} parent=0 // loop_body
    %s16 = ssub.s32 %s11, 1
    %s17 = ssub.s32 %s11, 2
    %s18 = sadd.s32 %s11, 1
    %s19 = ssub.s32 %s11, %s18
    %p20 = scmp.eq.s32.totalorder %s19, 0
    %s22 = sadd.s32 %s21, 1
    %s23 = scalar_select %p20, %s21, %s22
    %p26 = pneg %p20
    %p27 = scmp.eq.s32.totalorder %s11, 1
    %p28 = por %p26, %p27
    %p29 = scmp.ne.s32.totalorder %s21, %s24
    %p30 = scmp.eq.s32.totalorder %s11, 0
    %p31 = por %p29, %p30
    %p32 = scmp.ne.s32.totalorder %s21, %s24
    %p33 = scmp.eq.s32.totalorder %s16, 1
    %p34 = por %p32, %p33
    %p35 = scmp.ne.s32.totalorder %s24, %s25
    %p36 = scmp.eq.s32.totalorder %s16, 0
    %p37 = por %p35, %p36
    %p38 = scmp.ne.s32.totalorder %s24, %s25
    %p39 = scmp.eq.s32.totalorder %s17, 1
    %p40 = por %p38, %p39
    %p42 = scmp.ne.s32.totalorder %s25, %s41
    %p43 = scmp.eq.s32.totalorder %s17, 0
    %p44 = por %p42, %p43
    %s45 = ssub.s32 %s11, %s18
    %p46 = scmp.eq.s32.totalorder %s45, 0
    %s48 = sadd.s32 %s47, 1
    %s49 = scalar_select %p46, %s47, %s48
    %p52 = pneg %p46
    %p53 = scmp.eq.s32.totalorder %s11, 1
    %p54 = por %p52, %p53
    %p55 = scmp.ne.s32.totalorder %s47, %s50
    %p56 = scmp.eq.s32.totalorder %s11, 0
    %p57 = por %p55, %p56
    %p58 = scmp.ne.s32.totalorder %s47, %s50
    %p59 = scmp.eq.s32.totalorder %s16, 1
    %p60 = por %p58, %p59
    %p61 = scmp.ne.s32.totalorder %s50, %s51
    %p62 = scmp.eq.s32.totalorder %s16, 0
    %p63 = por %p61, %p62
    %p64 = scmp.ne.s32.totalorder %s50, %s51
    %p65 = scmp.eq.s32.totalorder %s17, 1
    %p66 = por %p64, %p65
    %p68 = scmp.ne.s32.totalorder %s51, %s67
    %p69 = scmp.eq.s32.totalorder %s17, 0
    %p70 = por %p68, %p69
    %s72 = sadd.s32 %s71, 1
    %p75 = scmp.eq.s32.totalorder %s11, 1
    %p76 = scmp.ne.s32.totalorder %s71, %s73
    %p77 = scmp.eq.s32.totalorder %s11, 0
    %p78 = por %p76, %p77
    %p79 = scmp.ne.s32.totalorder %s71, %s73
    %p80 = scmp.eq.s32.totalorder %s16, 1
    %p81 = por %p79, %p80
    %p82 = scmp.ne.s32.totalorder %s73, %s74
    %p83 = scmp.eq.s32.totalorder %s16, 0
    %p84 = por %p82, %p83
    %p85 = scmp.ne.s32.totalorder %s73, %s74
    %p86 = scmp.eq.s32.totalorder %s17, 1
    %p87 = por %p85, %p86
    %p89 = scmp.ne.s32.totalorder %s74, %s88
    %p90 = scmp.eq.s32.totalorder %s17, 0
    %p91 = por %p89, %p90
    %s93 = sadd.s32 %s92, 1
    %p96 = scmp.eq.s32.totalorder %s11, 1
    %p97 = scmp.ne.s32.totalorder %s92, %s94
    %p98 = scmp.eq.s32.totalorder %s11, 0
    %p99 = por %p97, %p98
    %p100 = scmp.ne.s32.totalorder %s92, %s94
    %p101 = scmp.eq.s32.totalorder %s16, 1
    %p102 = por %p100, %p101
    %p103 = scmp.ne.s32.totalorder %s94, %s95
    %p104 = scmp.eq.s32.totalorder %s16, 0
    %p105 = por %p103, %p104
    %p106 = scmp.ne.s32.totalorder %s94, %s95
    %p107 = scmp.eq.s32.totalorder %s17, 1
    %p108 = por %p106, %p107
    %p110 = scmp.ne.s32.totalorder %s95, %s109
    %p111 = scmp.eq.s32.totalorder %s17, 0
    %p112 = por %p110, %p111
    %s114 = sadd.s32 %s113, 1
    %p117 = scmp.eq.s32.totalorder %s11, 1
    %p118 = scmp.ne.s32.totalorder %s113, %s115
    %p119 = scmp.eq.s32.totalorder %s11, 0
    %p120 = por %p118, %p119
    %p121 = scmp.ne.s32.totalorder %s113, %s115
    %p122 = scmp.eq.s32.totalorder %s16, 1
    %p123 = por %p121, %p122
    %p124 = scmp.ne.s32.totalorder %s115, %s116
    %p125 = scmp.eq.s32.totalorder %s16, 0
    %p126 = por %p124, %p125
    %p127 = scmp.ne.s32.totalorder %s115, %s116
    %p128 = scmp.eq.s32.totalorder %s17, 1
    %p129 = por %p127, %p128
    %p131 = scmp.ne.s32.totalorder %s116, %s130
    %p132 = scmp.eq.s32.totalorder %s17, 0
    %p133 = por %p131, %p132
    %s134 = ssub.s32 %s11, %s18
    %p135 = scmp.eq.s32.totalorder %s134, 0
    %s137 = sadd.s32 %s136, 1
    %s138 = scalar_select %p135, %s136, %s137
    %p141 = pneg %p135
    %p142 = scmp.eq.s32.totalorder %s11, 1
    %p143 = por %p141, %p142
    %p144 = scmp.ne.s32.totalorder %s136, %s139
    %p145 = scmp.eq.s32.totalorder %s11, 0
    %p146 = por %p144, %p145
    %p147 = scmp.ne.s32.totalorder %s136, %s139
    %p148 = scmp.eq.s32.totalorder %s16, 1
    %p149 = por %p147, %p148
    %p150 = scmp.ne.s32.totalorder %s139, %s140
    %p151 = scmp.eq.s32.totalorder %s16, 0
    %p152 = por %p150, %p151
    %p153 = scmp.ne.s32.totalorder %s139, %s140
    %p154 = scmp.eq.s32.totalorder %s17, 1
    %p155 = por %p153, %p154
    %p157 = scmp.ne.s32.totalorder %s140, %s156
    %p158 = scmp.eq.s32.totalorder %s17, 0
    %p159 = por %p157, %p158
    %p160 = scmp.le.s32.totalorder 1, %s11
    %p161 = scmp.lt.s32.totalorder %s11, 3
    %p162 = pnand %p160, %p161
    %p163 = pneg %p162
    // Predicated region
    $region9: #{decoder_forward.11} parent=5 // pred_check
      _
    $region10: #{decoder_forward.11} parent=5 // pred_check_branch
      %165 = sbr.rel (%p162) target = $region12
    $region11: #{decoder_forward.11} parent=5 // pred_region
      %s166 = ssub.s32 %s11, 1
      // Predicated region
      $region13: #{decoder_forward.11} parent=11 // pred_check
        %p167 = pneg %p84
      $region14: #{decoder_forward.11} parent=11 // pred_check_branch
        %169 = sbr.rel (%p167) target = $region16
      $region15: #{decoder_forward.11} parent=11 // pred_region
        _
      $region16: #{decoder_forward.11} parent=11 // pred_fallthru
        _
      // Predicated region
      $region17: #{decoder_forward.11} parent=11 // pred_check
        %p170 = pneg %p105
      $region18: #{decoder_forward.11} parent=11 // pred_check_branch
        %172 = sbr.rel (%p170) target = $region20
      $region19: #{decoder_forward.11} parent=11 // pred_region
        _
      $region20: #{decoder_forward.11} parent=11 // pred_fallthru
        _
      // Predicated region
      $region21: #{decoder_forward.11} parent=11 // pred_check
        %p173 = pneg %p126
      $region22: #{decoder_forward.11} parent=11 // pred_check_branch
        %175 = sbr.rel (%p173) target = $region24
      $region23: #{decoder_forward.11} parent=11 // pred_region
        _
      $region24: #{decoder_forward.11} parent=11 // pred_fallthru
        _
    $region12: #{decoder_forward.11} parent=5 // pred_fallthru
      _
    %p176 = scmp.lt.s32.totalorder %s11, 2
    // Predicated region
    $region25: #{decoder_forward.11} parent=5 // pred_check
      %p177 = pneg %p176
    $region26: #{decoder_forward.11} parent=5 // pred_check_branch
      %179 = sbr.rel (%p177) target = $region28
    $region27: #{decoder_forward.11} parent=5 // pred_region
      // Predicated region
      $region29: #{decoder_forward.11} parent=27 // pred_check
        %p180 = pneg %p31
      $region30: #{decoder_forward.11} parent=27 // pred_check_branch
        %182 = sbr.rel (%p180) target = $region32
      $region31: #{decoder_forward.11} parent=27 // pred_region
        %p183 = scmp.lt.s32.totalorder %s11, 1
        %s184 = scalar_select %p183, %s11, 1
        %s185 = smul.addr %s184, 10
        %s186 = smul.addr %s185, 8
        %s187 = scalar_lea.vmem %s0, %s186
      $region32: #{decoder_forward.11} parent=27 // pred_fallthru
        _
      // Predicated region
      $region33: #{decoder_forward.11} parent=27 // pred_check
        %p188 = pneg %p57
      $region34: #{decoder_forward.11} parent=27 // pred_check_branch
        %190 = sbr.rel (%p188) target = $region36
      $region35: #{decoder_forward.11} parent=27 // pred_region
        %p191 = scmp.lt.s32.totalorder %s11, 1
        %s192 = scalar_select %p191, %s11, 1
        %s193 = smul.addr %s192, 10
        %s194 = smul.addr %s193, 8
        %s195 = scalar_lea.vmem %s1, %s194
      $region36: #{decoder_forward.11} parent=27 // pred_fallthru
        _
    $region28: #{decoder_forward.11} parent=5 // pred_fallthru
      _
    %p196 = scmp.le.s32.totalorder 1, %s11
    %p197 = scmp.lt.s32.totalorder %s11, 3
    %p198 = pnand %p196, %p197
    %p199 = pneg %p198
    // Predicated region
    $region37: #{decoder_forward.11} parent=5 // pred_check
      _
    $region38: #{decoder_forward.11} parent=5 // pred_check_branch
      %201 = sbr.rel (%p198) target = $region40
    $region39: #{decoder_forward.11} parent=5 // pred_region
      %s202 = ssub.s32 %s11, 1
      %p203 = scmp.lt.s32.totalorder %s16, 1
      %s204 = scalar_select %p203, %s16, 1
      %s205 = smul.addr %s204, 10
      %s206 = smul.addr %s205, 8
      %s207 = scalar_lea.vmem %s0, %s206
      %p208 = pneg %p37
      %p209 = pneg %p34
      %p210 = scmp.lt.s32.totalorder %s16, 1
      %s211 = scalar_select %p210, %s16, 1
      %s212 = smul.addr %s211, 10
      %s213 = smul.addr %s212, 8
      %s214 = scalar_lea.vmem %s1, %s213
      %p215 = pneg %p63
      %p216 = pneg %p60
      %p217 = pneg %p84
      %p218 = pneg %p81
      %p219 = pneg %p105
      %p220 = pneg %p102
      %p221 = pneg %p126
      %p222 = pneg %p123
      %p223 = pneg %p152
      %p224 = pneg %p149
      %p225 = scmp.lt.s32.totalorder %s16, 1
      %s226 = scalar_select %p225, %s16, 1
      %s227 = smul.addr %s226, 9
      %s228 = smul.addr %s227, 8
      %s229 = scalar_lea.vmem %s5, %s228
      %p230 = scmp.lt.s32.totalorder %s16, 1
      %s231 = scalar_select %p230, %s16, 1
      %s232 = smul.addr %s231, 10
      %s233 = smul.addr %s232, 8
      %s234 = scalar_lea.vmem %s0, %s233
      %p235 = scmp.lt.s32.totalorder %s16, 1
      %s236 = scalar_select %p235, %s16, 1
      %s237 = smul.addr %s236, 10
      %s238 = smul.addr %s237, 8
      %s239 = scalar_lea.vmem %s1, %s238
      %p240 = scmp.lt.s32.totalorder %s16, 1
      %s241 = scalar_select %p240, %s16, 1
      %s242 = smul.addr %s241, 9
      %s243 = smul.addr %s242, 8
      %s244 = scalar_lea.vmem %s5, %s243
      %v246 = vld [vmem:[%s234] sm:$0xff]
      %v247 = vld [vmem:[%s234 + $0x8] sm:$0xff]
      %v248 = vld [vmem:[%s234 + $0x10] sm:$0xff]
      %v249 = vld [vmem:[%s234 + $0x18] sm:$0xff]
      %v250 = vld [vmem:[%s234 + $0x20] sm:$0xff]
      %v251 = vld [vmem:[%s234 + $0x28] sm:$0xff]
      %v252 = vld [vmem:[%s234 + $0x30] sm:$0xff]
      %v253 = vld [vmem:[%s234 + $0x38] sm:$0xff]
      %v254 = vld [vmem:[%s234 + $0x40] sm:$0xff]
      %v255 = vld [vmem:[%s234 + $0x48] sm:$0xff]
      %v256 = vld [vmem:[%s239] sm:$0xff]
      %v257 = vld [vmem:[%s239 + $0x8] sm:$0xff]
      %v258 = vld [vmem:[%s239 + $0x10] sm:$0xff]
      %v259 = vld [vmem:[%s239 + $0x18] sm:$0xff]
      %v260 = vld [vmem:[%s239 + $0x20] sm:$0xff]
      %v261 = vld [vmem:[%s239 + $0x28] sm:$0xff]
      %v262 = vld [vmem:[%s239 + $0x30] sm:$0xff]
      %v263 = vld [vmem:[%s239 + $0x38] sm:$0xff]
      %v264 = vld [vmem:[%s239 + $0x40] sm:$0xff]
      %v265 = vld [vmem:[%s239 + $0x48] sm:$0xff]
      %275 = vrot.lane.b32.xlu0 %v246, 127
      %v276 = vpop.permute.xlu0 %275
      %277 = vrot.lane.b32.xlu0 %v247, 127
      %v278 = vpop.permute.xlu0 %277
      %279 = vrot.lane.b32.xlu0 %v248, 127
      %v280 = vpop.permute.xlu0 %279
      %281 = vrot.lane.b32.xlu0 %v249, 127
      %v282 = vpop.permute.xlu0 %281
      %283 = vrot.lane.b32.xlu0 %v250, 127
      %v284 = vpop.permute.xlu0 %283
      %285 = vrot.lane.b32.xlu0 %v251, 127
      %v286 = vpop.permute.xlu0 %285
      %287 = vrot.lane.b32.xlu0 %v252, 127
      %v288 = vpop.permute.xlu0 %287
      %289 = vrot.lane.b32.xlu0 %v253, 127
      %v290 = vpop.permute.xlu0 %289
      %291 = vrot.lane.b32.xlu0 %v254, 127
      %v292 = vpop.permute.xlu0 %291
      %vm293 = vcmask 1039360
      %v294 = vsel %vm293, %v276, %v278
      %v295 = vsel %vm293, %v278, %v280
      %v296 = vsel %vm293, %v280, %v282
      %v297 = vsel %vm293, %v282, %v284
      %v298 = vsel %vm293, %v284, %v286
      %v299 = vsel %vm293, %v286, %v288
      %v300 = vsel %vm293, %v288, %v290
      %v301 = vsel %vm293, %v290, %v292
      %311 = vrot.lane.b32.xlu0 %v246, 126
      %v312 = vpop.permute.xlu0 %311
      %313 = vrot.lane.b32.xlu0 %v247, 126
      %v314 = vpop.permute.xlu0 %313
      %315 = vrot.lane.b32.xlu0 %v248, 126
      %v316 = vpop.permute.xlu0 %315
      %317 = vrot.lane.b32.xlu0 %v249, 126
      %v318 = vpop.permute.xlu0 %317
      %319 = vrot.lane.b32.xlu0 %v250, 126
      %v320 = vpop.permute.xlu0 %319
      %321 = vrot.lane.b32.xlu0 %v251, 126
      %v322 = vpop.permute.xlu0 %321
      %323 = vrot.lane.b32.xlu0 %v252, 126
      %v324 = vpop.permute.xlu0 %323
      %325 = vrot.lane.b32.xlu0 %v253, 126
      %v326 = vpop.permute.xlu0 %325
      %327 = vrot.lane.b32.xlu0 %v254, 126
      %v328 = vpop.permute.xlu0 %327
      %vm329 = vcmask 1031168
      %v330 = vsel %vm329, %v312, %v314
      %v331 = vsel %vm329, %v314, %v316
      %v332 = vsel %vm329, %v316, %v318
      %v333 = vsel %vm329, %v318, %v320
      %v334 = vsel %vm329, %v320, %v322
      %v335 = vsel %vm329, %v322, %v324
      %v336 = vsel %vm329, %v324, %v326
      %v337 = vsel %vm329, %v326, %v328
      %347 = vrot.lane.b32.xlu0 %v246, 94
      %v348 = vpop.permute.xlu0 %347
      %349 = vrot.lane.b32.xlu0 %v247, 94
      %v350 = vpop.permute.xlu0 %349
      %351 = vrot.lane.b32.xlu0 %v248, 94
      %v352 = vpop.permute.xlu0 %351
      %353 = vrot.lane.b32.xlu0 %v249, 94
      %v354 = vpop.permute.xlu0 %353
      %355 = vrot.lane.b32.xlu0 %v250, 94
      %v356 = vpop.permute.xlu0 %355
      %357 = vrot.lane.b32.xlu0 %v251, 94
      %v358 = vpop.permute.xlu0 %357
      %359 = vrot.lane.b32.xlu0 %v252, 94
      %v360 = vpop.permute.xlu0 %359
      %361 = vrot.lane.b32.xlu0 %v253, 94
      %v362 = vpop.permute.xlu0 %361
      %363 = vrot.lane.b32.xlu0 %v254, 94
      %v364 = vpop.permute.xlu0 %363
      %vm365 = vcmask 769024
      %v366 = vsel %vm365, %v348, %v350
      %v367 = vsel %vm365, %v350, %v352
      %v368 = vsel %vm365, %v352, %v354
      %v369 = vsel %vm365, %v354, %v356
      %v370 = vsel %vm365, %v356, %v358
      %v371 = vsel %vm365, %v358, %v360
      %v372 = vsel %vm365, %v360, %v362
      %v373 = vsel %vm365, %v362, %v364
      %383 = vrot.lane.b32.xlu0 %v246, 93
      %v384 = vpop.permute.xlu0 %383
      %385 = vrot.lane.b32.xlu0 %v247, 93
      %v386 = vpop.permute.xlu0 %385
      %387 = vrot.lane.b32.xlu0 %v248, 93
      %v388 = vpop.permute.xlu0 %387
      %389 = vrot.lane.b32.xlu0 %v249, 93
      %v390 = vpop.permute.xlu0 %389
      %391 = vrot.lane.b32.xlu0 %v250, 93
      %v392 = vpop.permute.xlu0 %391
      %393 = vrot.lane.b32.xlu0 %v251, 93
      %v394 = vpop.permute.xlu0 %393
      %395 = vrot.lane.b32.xlu0 %v252, 93
      %v396 = vpop.permute.xlu0 %395
      %397 = vrot.lane.b32.xlu0 %v253, 93
      %v398 = vpop.permute.xlu0 %397
      %399 = vrot.lane.b32.xlu0 %v254, 93
      %v400 = vpop.permute.xlu0 %399
      %vm401 = vcmask 760832
      %v402 = vsel %vm401, %v384, %v386
      %v403 = vsel %vm401, %v386, %v388
      %v404 = vsel %vm401, %v388, %v390
      %v405 = vsel %vm401, %v390, %v392
      %v406 = vsel %vm401, %v392, %v394
      %v407 = vsel %vm401, %v394, %v396
      %v408 = vsel %vm401, %v396, %v398
      %v409 = vsel %vm401, %v398, %v400
      %419 = vrot.lane.b32.xlu0 %v246, 92
      %v420 = vpop.permute.xlu0 %419
      %421 = vrot.lane.b32.xlu0 %v247, 92
      %v422 = vpop.permute.xlu0 %421
      %423 = vrot.lane.b32.xlu0 %v248, 92
      %v424 = vpop.permute.xlu0 %423
      %425 = vrot.lane.b32.xlu0 %v249, 92
      %v426 = vpop.permute.xlu0 %425
      %427 = vrot.lane.b32.xlu0 %v250, 92
      %v428 = vpop.permute.xlu0 %427
      %429 = vrot.lane.b32.xlu0 %v251, 92
      %v430 = vpop.permute.xlu0 %429
      %431 = vrot.lane.b32.xlu0 %v252, 92
      %v432 = vpop.permute.xlu0 %431
      %433 = vrot.lane.b32.xlu0 %v253, 92
      %v434 = vpop.permute.xlu0 %433
      %435 = vrot.lane.b32.xlu0 %v254, 92
      %v436 = vpop.permute.xlu0 %435
      %vm437 = vcmask 752640
      %v438 = vsel %vm437, %v420, %v422
      %v439 = vsel %vm437, %v422, %v424
      %v440 = vsel %vm437, %v424, %v426
      %v441 = vsel %vm437, %v426, %v428
      %v442 = vsel %vm437, %v428, %v430
      %v443 = vsel %vm437, %v430, %v432
      %v444 = vsel %vm437, %v432, %v434
      %v445 = vsel %vm437, %v434, %v436
      %456 = vrot.lane.b32.xlu0 %v246, 60
      %v457 = vpop.permute.xlu0 %456
      %458 = vrot.lane.b32.xlu0 %v247, 60
      %v459 = vpop.permute.xlu0 %458
      %460 = vrot.lane.b32.xlu0 %v248, 60
      %v461 = vpop.permute.xlu0 %460
      %462 = vrot.lane.b32.xlu0 %v249, 60
      %v463 = vpop.permute.xlu0 %462
      %464 = vrot.lane.b32.xlu0 %v250, 60
      %v465 = vpop.permute.xlu0 %464
      %466 = vrot.lane.b32.xlu0 %v251, 60
      %v467 = vpop.permute.xlu0 %466
      %468 = vrot.lane.b32.xlu0 %v252, 60
      %v469 = vpop.permute.xlu0 %468
      %470 = vrot.lane.b32.xlu0 %v253, 60
      %v471 = vpop.permute.xlu0 %470
      %472 = vrot.lane.b32.xlu0 %v254, 60
      %v473 = vpop.permute.xlu0 %472
      %474 = vrot.lane.b32.xlu0 %v255, 60
      %v475 = vpop.permute.xlu0 %474
      %vm476 = vcmask 490496
      %v477 = vsel %vm476, %v457, %v459
      %v478 = vsel %vm476, %v459, %v461
      %v479 = vsel %vm476, %v461, %v463
      %v480 = vsel %vm476, %v463, %v465
      %v481 = vsel %vm476, %v465, %v467
      %v482 = vsel %vm476, %v467, %v469
      %v483 = vsel %vm476, %v469, %v471
      %v484 = vsel %vm476, %v471, %v473
      %v485 = vsel %vm476, %v473, %v475
      %495 = vrot.lane.b32.xlu0 %v246, 59
      %v496 = vpop.permute.xlu0 %495
      %497 = vrot.lane.b32.xlu0 %v247, 59
      %v498 = vpop.permute.xlu0 %497
      %499 = vrot.lane.b32.xlu0 %v248, 59
      %v500 = vpop.permute.xlu0 %499
      %501 = vrot.lane.b32.xlu0 %v249, 59
      %v502 = vpop.permute.xlu0 %501
      %503 = vrot.lane.b32.xlu0 %v250, 59
      %v504 = vpop.permute.xlu0 %503
      %505 = vrot.lane.b32.xlu0 %v251, 59
      %v506 = vpop.permute.xlu0 %505
      %507 = vrot.lane.b32.xlu0 %v252, 59
      %v508 = vpop.permute.xlu0 %507
      %509 = vrot.lane.b32.xlu0 %v253, 59
      %v510 = vpop.permute.xlu0 %509
      %511 = vrot.lane.b32.xlu0 %v254, 59
      %v512 = vpop.permute.xlu0 %511
      %513 = vrot.lane.b32.xlu0 %v255, 59
      %v514 = vpop.permute.xlu0 %513
      %vm515 = vcmask 482304
      %v516 = vsel %vm515, %v496, %v498
      %v517 = vsel %vm515, %v498, %v500
      %v518 = vsel %vm515, %v500, %v502
      %v519 = vsel %vm515, %v502, %v504
      %v520 = vsel %vm515, %v504, %v506
      %v521 = vsel %vm515, %v506, %v508
      %v522 = vsel %vm515, %v508, %v510
      %v523 = vsel %vm515, %v510, %v512
      %v524 = vsel %vm515, %v512, %v514
      %534 = vrot.lane.b32.xlu0 %v246, 58
      %v535 = vpop.permute.xlu0 %534
      %536 = vrot.lane.b32.xlu0 %v247, 58
      %v537 = vpop.permute.xlu0 %536
      %538 = vrot.lane.b32.xlu0 %v248, 58
      %v539 = vpop.permute.xlu0 %538
      %540 = vrot.lane.b32.xlu0 %v249, 58
      %v541 = vpop.permute.xlu0 %540
      %542 = vrot.lane.b32.xlu0 %v250, 58
      %v543 = vpop.permute.xlu0 %542
      %544 = vrot.lane.b32.xlu0 %v251, 58
      %v545 = vpop.permute.xlu0 %544
      %546 = vrot.lane.b32.xlu0 %v252, 58
      %v547 = vpop.permute.xlu0 %546
      %548 = vrot.lane.b32.xlu0 %v253, 58
      %v549 = vpop.permute.xlu0 %548
      %550 = vrot.lane.b32.xlu0 %v254, 58
      %v551 = vpop.permute.xlu0 %550
      %552 = vrot.lane.b32.xlu0 %v255, 58
      %v553 = vpop.permute.xlu0 %552
      %vm554 = vcmask 474112
      %v555 = vsel %vm554, %v535, %v537
      %v556 = vsel %vm554, %v537, %v539
      %v557 = vsel %vm554, %v539, %v541
      %v558 = vsel %vm554, %v541, %v543
      %v559 = vsel %vm554, %v543, %v545
      %v560 = vsel %vm554, %v545, %v547
      %v561 = vsel %vm554, %v547, %v549
      %v562 = vsel %vm554, %v549, %v551
      %v563 = vsel %vm554, %v551, %v553
      %582 = vrot.lane.b32.xlu0 %v256, 127
      %v583 = vpop.permute.xlu0 %582
      %584 = vrot.lane.b32.xlu0 %v257, 127
      %v585 = vpop.permute.xlu0 %584
      %586 = vrot.lane.b32.xlu0 %v258, 127
      %v587 = vpop.permute.xlu0 %586
      %588 = vrot.lane.b32.xlu0 %v259, 127
      %v589 = vpop.permute.xlu0 %588
      %590 = vrot.lane.b32.xlu0 %v260, 127
      %v591 = vpop.permute.xlu0 %590
      %592 = vrot.lane.b32.xlu0 %v261, 127
      %v593 = vpop.permute.xlu0 %592
      %594 = vrot.lane.b32.xlu0 %v262, 127
      %v595 = vpop.permute.xlu0 %594
      %596 = vrot.lane.b32.xlu0 %v263, 127
      %v597 = vpop.permute.xlu0 %596
      %598 = vrot.lane.b32.xlu0 %v264, 127
      %v599 = vpop.permute.xlu0 %598
      %v600 = vsel %vm293, %v583, %v585
      %v601 = vsel %vm293, %v585, %v587
      %v602 = vsel %vm293, %v587, %v589
      %v603 = vsel %vm293, %v589, %v591
      %v604 = vsel %vm293, %v591, %v593
      %v605 = vsel %vm293, %v593, %v595
      %v606 = vsel %vm293, %v595, %v597
      %v607 = vsel %vm293, %v597, %v599
      %617 = vrot.lane.b32.xlu0 %v256, 126
      %v618 = vpop.permute.xlu0 %617
      %619 = vrot.lane.b32.xlu0 %v257, 126
      %v620 = vpop.permute.xlu0 %619
      %621 = vrot.lane.b32.xlu0 %v258, 126
      %v622 = vpop.permute.xlu0 %621
      %623 = vrot.lane.b32.xlu0 %v259, 126
      %v624 = vpop.permute.xlu0 %623
      %625 = vrot.lane.b32.xlu0 %v260, 126
      %v626 = vpop.permute.xlu0 %625
      %627 = vrot.lane.b32.xlu0 %v261, 126
      %v628 = vpop.permute.xlu0 %627
      %629 = vrot.lane.b32.xlu0 %v262, 126
      %v630 = vpop.permute.xlu0 %629
      %631 = vrot.lane.b32.xlu0 %v263, 126
      %v632 = vpop.permute.xlu0 %631
      %633 = vrot.lane.b32.xlu0 %v264, 126
      %v634 = vpop.permute.xlu0 %633
      %v635 = vsel %vm329, %v618, %v620
      %v636 = vsel %vm329, %v620, %v622
      %v637 = vsel %vm329, %v622, %v624
      %v638 = vsel %vm329, %v624, %v626
      %v639 = vsel %vm329, %v626, %v628
      %v640 = vsel %vm329, %v628, %v630
      %v641 = vsel %vm329, %v630, %v632
      %v642 = vsel %vm329, %v632, %v634
      %652 = vrot.lane.b32.xlu0 %v256, 94
      %v653 = vpop.permute.xlu0 %652
      %654 = vrot.lane.b32.xlu0 %v257, 94
      %v655 = vpop.permute.xlu0 %654
      %656 = vrot.lane.b32.xlu0 %v258, 94
      %v657 = vpop.permute.xlu0 %656
      %658 = vrot.lane.b32.xlu0 %v259, 94
      %v659 = vpop.permute.xlu0 %658
      %660 = vrot.lane.b32.xlu0 %v260, 94
      %v661 = vpop.permute.xlu0 %660
      %662 = vrot.lane.b32.xlu0 %v261, 94
      %v663 = vpop.permute.xlu0 %662
      %664 = vrot.lane.b32.xlu0 %v262, 94
      %v665 = vpop.permute.xlu0 %664
      %666 = vrot.lane.b32.xlu0 %v263, 94
      %v667 = vpop.permute.xlu0 %666
      %668 = vrot.lane.b32.xlu0 %v264, 94
      %v669 = vpop.permute.xlu0 %668
      %v670 = vsel %vm365, %v653, %v655
      %v671 = vsel %vm365, %v655, %v657
      %v672 = vsel %vm365, %v657, %v659
      %v673 = vsel %vm365, %v659, %v661
      %v674 = vsel %vm365, %v661, %v663
      %v675 = vsel %vm365, %v663, %v665
      %v676 = vsel %vm365, %v665, %v667
      %v677 = vsel %vm365, %v667, %v669
      %687 = vrot.lane.b32.xlu0 %v256, 93
      %v688 = vpop.permute.xlu0 %687
      %689 = vrot.lane.b32.xlu0 %v257, 93
      %v690 = vpop.permute.xlu0 %689
      %691 = vrot.lane.b32.xlu0 %v258, 93
      %v692 = vpop.permute.xlu0 %691
      %693 = vrot.lane.b32.xlu0 %v259, 93
      %v694 = vpop.permute.xlu0 %693
      %695 = vrot.lane.b32.xlu0 %v260, 93
      %v696 = vpop.permute.xlu0 %695
      %697 = vrot.lane.b32.xlu0 %v261, 93
      %v698 = vpop.permute.xlu0 %697
      %699 = vrot.lane.b32.xlu0 %v262, 93
      %v700 = vpop.permute.xlu0 %699
      %701 = vrot.lane.b32.xlu0 %v263, 93
      %v702 = vpop.permute.xlu0 %701
      %703 = vrot.lane.b32.xlu0 %v264, 93
      %v704 = vpop.permute.xlu0 %703
      %v705 = vsel %vm401, %v688, %v690
      %v706 = vsel %vm401, %v690, %v692
      %v707 = vsel %vm401, %v692, %v694
      %v708 = vsel %vm401, %v694, %v696
      %v709 = vsel %vm401, %v696, %v698
      %v710 = vsel %vm401, %v698, %v700
      %v711 = vsel %vm401, %v700, %v702
      %v712 = vsel %vm401, %v702, %v704
      %722 = vrot.lane.b32.xlu0 %v256, 92
      %v723 = vpop.permute.xlu0 %722
      %724 = vrot.lane.b32.xlu0 %v257, 92
      %v725 = vpop.permute.xlu0 %724
      %726 = vrot.lane.b32.xlu0 %v258, 92
      %v727 = vpop.permute.xlu0 %726
      %728 = vrot.lane.b32.xlu0 %v259, 92
      %v729 = vpop.permute.xlu0 %728
      %730 = vrot.lane.b32.xlu0 %v260, 92
      %v731 = vpop.permute.xlu0 %730
      %732 = vrot.lane.b32.xlu0 %v261, 92
      %v733 = vpop.permute.xlu0 %732
      %734 = vrot.lane.b32.xlu0 %v262, 92
      %v735 = vpop.permute.xlu0 %734
      %736 = vrot.lane.b32.xlu0 %v263, 92
      %v737 = vpop.permute.xlu0 %736
      %738 = vrot.lane.b32.xlu0 %v264, 92
      %v739 = vpop.permute.xlu0 %738
      %v740 = vsel %vm437, %v723, %v725
      %v741 = vsel %vm437, %v725, %v727
      %v742 = vsel %vm437, %v727, %v729
      %v743 = vsel %vm437, %v729, %v731
      %v744 = vsel %vm437, %v731, %v733
      %v745 = vsel %vm437, %v733, %v735
      %v746 = vsel %vm437, %v735, %v737
      %v747 = vsel %vm437, %v737, %v739
      %758 = vrot.lane.b32.xlu0 %v256, 60
      %v759 = vpop.permute.xlu0 %758
      %760 = vrot.lane.b32.xlu0 %v257, 60
      %v761 = vpop.permute.xlu0 %760
      %762 = vrot.lane.b32.xlu0 %v258, 60
      %v763 = vpop.permute.xlu0 %762
      %764 = vrot.lane.b32.xlu0 %v259, 60
      %v765 = vpop.permute.xlu0 %764
      %766 = vrot.lane.b32.xlu0 %v260, 60
      %v767 = vpop.permute.xlu0 %766
      %768 = vrot.lane.b32.xlu0 %v261, 60
      %v769 = vpop.permute.xlu0 %768
      %770 = vrot.lane.b32.xlu0 %v262, 60
      %v771 = vpop.permute.xlu0 %770
      %772 = vrot.lane.b32.xlu0 %v263, 60
      %v773 = vpop.permute.xlu0 %772
      %774 = vrot.lane.b32.xlu0 %v264, 60
      %v775 = vpop.permute.xlu0 %774
      %776 = vrot.lane.b32.xlu0 %v265, 60
      %v777 = vpop.permute.xlu0 %776
      %v778 = vsel %vm476, %v759, %v761
      %v779 = vsel %vm476, %v761, %v763
      %v780 = vsel %vm476, %v763, %v765
      %v781 = vsel %vm476, %v765, %v767
      %v782 = vsel %vm476, %v767, %v769
      %v783 = vsel %vm476, %v769, %v771
      %v784 = vsel %vm476, %v771, %v773
      %v785 = vsel %vm476, %v773, %v775
      %v786 = vsel %vm476, %v775, %v777
      %796 = vrot.lane.b32.xlu0 %v265, 127
      %v797 = vpop.permute.xlu0 %796
      %v798 = vsel %vm293, %v599, %v797
      %799 = vrot.lane.b32.xlu0 %v256, 59
      %v800 = vpop.permute.xlu0 %799
      %801 = vrot.lane.b32.xlu0 %v257, 59
      %v802 = vpop.permute.xlu0 %801
      %803 = vrot.lane.b32.xlu0 %v258, 59
      %v804 = vpop.permute.xlu0 %803
      %805 = vrot.lane.b32.xlu0 %v259, 59
      %v806 = vpop.permute.xlu0 %805
      %807 = vrot.lane.b32.xlu0 %v260, 59
      %v808 = vpop.permute.xlu0 %807
      %809 = vrot.lane.b32.xlu0 %v261, 59
      %v810 = vpop.permute.xlu0 %809
      %811 = vrot.lane.b32.xlu0 %v262, 59
      %v812 = vpop.permute.xlu0 %811
      %813 = vrot.lane.b32.xlu0 %v263, 59
      %v814 = vpop.permute.xlu0 %813
      %815 = vrot.lane.b32.xlu0 %v264, 59
      %v816 = vpop.permute.xlu0 %815
      %817 = vrot.lane.b32.xlu0 %v265, 59
      %v818 = vpop.permute.xlu0 %817
      %819 = vrot.lane.b32.xlu0 %v600, 59
      %v820 = vpop.permute.xlu0 %819
      %821 = vrot.lane.b32.xlu0 %v601, 59
      %v822 = vpop.permute.xlu0 %821
      %823 = vrot.lane.b32.xlu0 %v602, 59
      %v824 = vpop.permute.xlu0 %823
      %825 = vrot.lane.b32.xlu0 %v603, 59
      %v826 = vpop.permute.xlu0 %825
      %827 = vrot.lane.b32.xlu0 %v604, 59
      %v828 = vpop.permute.xlu0 %827
      %829 = vrot.lane.b32.xlu0 %v605, 59
      %v830 = vpop.permute.xlu0 %829
      %831 = vrot.lane.b32.xlu0 %v606, 59
      %v832 = vpop.permute.xlu0 %831
      %833 = vrot.lane.b32.xlu0 %v607, 59
      %v834 = vpop.permute.xlu0 %833
      %835 = vrot.lane.b32.xlu0 %v798, 59
      %v836 = vpop.permute.xlu0 %835
      %837 = vrot.lane.b32.xlu0 %v797, 59
      %v838 = vpop.permute.xlu0 %837
      %v839 = vsel %vm515, %v800, %v802
      %v840 = vsel %vm515, %v802, %v804
      %v841 = vsel %vm515, %v804, %v806
      %v842 = vsel %vm515, %v806, %v808
      %v843 = vsel %vm515, %v808, %v810
      %v844 = vsel %vm515, %v810, %v812
      %v845 = vsel %vm515, %v812, %v814
      %v846 = vsel %vm515, %v814, %v816
      %v847 = vsel %vm515, %v816, %v818
      %v848 = vsel %vm515, %v820, %v822
      %v849 = vsel %vm515, %v822, %v824
      %v850 = vsel %vm515, %v824, %v826
      %v851 = vsel %vm515, %v826, %v828
      %v852 = vsel %vm515, %v828, %v830
      %v853 = vsel %vm515, %v830, %v832
      %v854 = vsel %vm515, %v832, %v834
      %v855 = vsel %vm515, %v834, %v836
      %v856 = vsel %vm515, %v836, %v838
      %v875 = vpack.c.bf16 %v294, %v246
      %v876 = vpack.c.bf16 %v295, %v247
      %v877 = vpack.c.bf16 %v296, %v248
      %v878 = vpack.c.bf16 %v297, %v249
      %v879 = vpack.c.bf16 %v298, %v250
      %v880 = vpack.c.bf16 %v299, %v251
      %v881 = vpack.c.bf16 %v300, %v252
      %v882 = vpack.c.bf16 %v301, %v253
      %v883 = vpack.c.bf16 %v292, %v254
      %v884 = vpack.c.bf16 %v366, %v330
      %v885 = vpack.c.bf16 %v367, %v331
      %v886 = vpack.c.bf16 %v368, %v332
      %v887 = vpack.c.bf16 %v369, %v333
      %v888 = vpack.c.bf16 %v370, %v334
      %v889 = vpack.c.bf16 %v371, %v335
      %v890 = vpack.c.bf16 %v372, %v336
      %v891 = vpack.c.bf16 %v373, %v337
      %v892 = vpack.c.bf16 %v364, %v328
      %v893 = vpack.c.bf16 %v438, %v402
      %v894 = vpack.c.bf16 %v439, %v403
      %v895 = vpack.c.bf16 %v440, %v404
      %v896 = vpack.c.bf16 %v441, %v405
      %v897 = vpack.c.bf16 %v442, %v406
      %v898 = vpack.c.bf16 %v443, %v407
      %v899 = vpack.c.bf16 %v444, %v408
      %v900 = vpack.c.bf16 %v445, %v409
      %v901 = vpack.c.bf16 %v436, %v400
      %v902 = vpack.c.bf16 %v516, %v477
      %v903 = vpack.c.bf16 %v517, %v478
      %v904 = vpack.c.bf16 %v518, %v479
      %v905 = vpack.c.bf16 %v519, %v480
      %v906 = vpack.c.bf16 %v520, %v481
      %v907 = vpack.c.bf16 %v521, %v482
      %v908 = vpack.c.bf16 %v522, %v483
      %v909 = vpack.c.bf16 %v523, %v484
      %v910 = vpack.c.bf16 %v524, %v485
      %v911 = vpack.c.bf16 %v256, %v555
      %v912 = vpack.c.bf16 %v257, %v556
      %v913 = vpack.c.bf16 %v258, %v557
      %v914 = vpack.c.bf16 %v259, %v558
      %v915 = vpack.c.bf16 %v260, %v559
      %v916 = vpack.c.bf16 %v261, %v560
      %v917 = vpack.c.bf16 %v262, %v561
      %v918 = vpack.c.bf16 %v263, %v562
      %v919 = vpack.c.bf16 %v264, %v563
      %v920 = vpack.c.bf16 %v635, %v600
      %v921 = vpack.c.bf16 %v636, %v601
      %v922 = vpack.c.bf16 %v637, %v602
      %v923 = vpack.c.bf16 %v638, %v603
      %v924 = vpack.c.bf16 %v639, %v604
      %v925 = vpack.c.bf16 %v640, %v605
      %v926 = vpack.c.bf16 %v641, %v606
      %v927 = vpack.c.bf16 %v642, %v607
      %v928 = vpack.c.bf16 %v634, %v599
      %v929 = vpack.c.bf16 %v705, %v670
      %v930 = vpack.c.bf16 %v706, %v671
      %v931 = vpack.c.bf16 %v707, %v672
      %v932 = vpack.c.bf16 %v708, %v673
      %v933 = vpack.c.bf16 %v709, %v674
      %v934 = vpack.c.bf16 %v710, %v675
      %v935 = vpack.c.bf16 %v711, %v676
      %v936 = vpack.c.bf16 %v712, %v677
      %v937 = vpack.c.bf16 %v704, %v669
      %v938 = vpack.c.bf16 %v778, %v740
      %v939 = vpack.c.bf16 %v779, %v741
      %v940 = vpack.c.bf16 %v780, %v742
      %v941 = vpack.c.bf16 %v781, %v743
      %v942 = vpack.c.bf16 %v782, %v744
      %v943 = vpack.c.bf16 %v783, %v745
      %v944 = vpack.c.bf16 %v784, %v746
      %v945 = vpack.c.bf16 %v785, %v747
      %v946 = vpack.c.bf16 %v786, %v739
      %v947 = vpack.c.bf16 %v848, %v839
      %v948 = vpack.c.bf16 %v849, %v840
      %v949 = vpack.c.bf16 %v850, %v841
      %v950 = vpack.c.bf16 %v851, %v842
      %v951 = vpack.c.bf16 %v852, %v843
      %v952 = vpack.c.bf16 %v853, %v844
      %v953 = vpack.c.bf16 %v854, %v845
      %v954 = vpack.c.bf16 %v855, %v846
      %v955 = vpack.c.bf16 %v856, %v847
      %v956 = vld [vmem:[%s2] sm:$0xff]
      %v958 = vunpack.c.l.b16 %v956
      %v959 = vunpack.c.h.b16 %v956
      %v960 = vpack.c.b16 %v958, %v958
      %v961 = vpack.c.b16 %v959, %v959
      %vm963 = vcmask 130048
      %v965 = vsel %vm963, %v961, 0
      %967 = vmatpush.bf16.msra.mxu0 %v938
      %968 = vmatpush.bf16.msra.mxu0 %v929
      %969 = vmatpush.bf16.msra.mxu0 %v920
      %970 = vmatpush.bf16.msra.mxu0 %v911
      %971 = vmatpush.bf16.msra.mxu0 %v902
      %972 = vmatpush.bf16.msra.mxu0 %v893
      %973 = vmatpush.bf16.msra.mxu0 %v884
      %974 = vmatpush.bf16.msra.mxu0 %v875
      %975 = vmatmul.bf16.gmra.mxu0 %v960
      %v976 = vpop.f32.mrf.mxu0
      %v977 = vadd.f32 0.0, %v976
      %v978 = vpop.f32.mrf.mxu0
      %979 = vdwg.mxu0
      %980 = vmatpush.bf16.msra.mxu0 0
      %981 = vmatpush.bf16.msra.mxu0 0
      %982 = vmatpush.bf16.msra.mxu0 0
      %983 = vmatpush.bf16.msra.mxu0 0
      %984 = vmatpush.bf16.msra.mxu0 0
      %985 = vmatpush.bf16.msra.mxu0 0
      %986 = vmatpush.bf16.msra.mxu0 0
      %987 = vmatpush.bf16.msra.mxu0 %v947
      %988 = vmatmul.bf16.gmra.mxu0 %v965
      %v989 = vpop.f32.mrf.mxu0
      %v990 = vadd.f32 %v977, %v989
      %v991 = vpop.f32.mrf.mxu0
      %992 = vdwg.mxu0
      %993 = vmatpush.bf16.msra.mxu0 %v939
      %994 = vmatpush.bf16.msra.mxu0 %v930
      %995 = vmatpush.bf16.msra.mxu0 %v921
      %996 = vmatpush.bf16.msra.mxu0 %v912
      %997 = vmatpush.bf16.msra.mxu0 %v903
      %998 = vmatpush.bf16.msra.mxu0 %v894
      %999 = vmatpush.bf16.msra.mxu0 %v885
      %1000 = vmatpush.bf16.msra.mxu0 %v876
      %1001 = vmatmul.bf16.gmra.mxu0 %v960
      %v1002 = vpop.f32.mrf.mxu0
      %v1003 = vadd.f32 0.0, %v1002
      %v1004 = vpop.f32.mrf.mxu0
      %1005 = vdwg.mxu0
      %1006 = vmatpush.bf16.msra.mxu0 0
      %1007 = vmatpush.bf16.msra.mxu0 0
      %1008 = vmatpush.bf16.msra.mxu0 0
      %1009 = vmatpush.bf16.msra.mxu0 0
      %1010 = vmatpush.bf16.msra.mxu0 0
      %1011 = vmatpush.bf16.msra.mxu0 0
      %1012 = vmatpush.bf16.msra.mxu0 0
      %1013 = vmatpush.bf16.msra.mxu0 %v948
      %1014 = vmatmul.bf16.gmra.mxu0 %v965
      %v1015 = vpop.f32.mrf.mxu0
      %v1016 = vadd.f32 %v1003, %v1015
      %v1017 = vpop.f32.mrf.mxu0
      %1018 = vdwg.mxu0
      %1019 = vmatpush.bf16.msra.mxu0 %v940
      %1020 = vmatpush.bf16.msra.mxu0 %v931
      %1021 = vmatpush.bf16.msra.mxu0 %v922
      %1022 = vmatpush.bf16.msra.mxu0 %v913
      %1023 = vmatpush.bf16.msra.mxu0 %v904
      %1024 = vmatpush.bf16.msra.mxu0 %v895
      %1025 = vmatpush.bf16.msra.mxu0 %v886
      %1026 = vmatpush.bf16.msra.mxu0 %v877
      %1027 = vmatmul.bf16.gmra.mxu0 %v960
      %v1028 = vpop.f32.mrf.mxu0
      %v1029 = vadd.f32 0.0, %v1028
      %v1030 = vpop.f32.mrf.mxu0
      %1031 = vdwg.mxu0
      %1032 = vmatpush.bf16.msra.mxu0 0
      %1033 = vmatpush.bf16.msra.mxu0 0
      %1034 = vmatpush.bf16.msra.mxu0 0
      %1035 = vmatpush.bf16.msra.mxu0 0
      %1036 = vmatpush.bf16.msra.mxu0 0
      %1037 = vmatpush.bf16.msra.mxu0 0
      %1038 = vmatpush.bf16.msra.mxu0 0
      %1039 = vmatpush.bf16.msra.mxu0 %v949
      %1040 = vmatmul.bf16.gmra.mxu0 %v965
      %v1041 = vpop.f32.mrf.mxu0
      %v1042 = vadd.f32 %v1029, %v1041
      %v1043 = vpop.f32.mrf.mxu0
      %1044 = vdwg.mxu0
      %1045 = vmatpush.bf16.msra.mxu0 %v941
      %1046 = vmatpush.bf16.msra.mxu0 %v932
      %1047 = vmatpush.bf16.msra.mxu0 %v923
      %1048 = vmatpush.bf16.msra.mxu0 %v914
      %1049 = vmatpush.bf16.msra.mxu0 %v905
      %1050 = vmatpush.bf16.msra.mxu0 %v896
      %1051 = vmatpush.bf16.msra.mxu0 %v887
      %1052 = vmatpush.bf16.msra.mxu0 %v878
      %1053 = vmatmul.bf16.gmra.mxu0 %v960
      %v1054 = vpop.f32.mrf.mxu0
      %v1055 = vadd.f32 0.0, %v1054
      %v1056 = vpop.f32.mrf.mxu0
      %1057 = vdwg.mxu0
      %1058 = vmatpush.bf16.msra.mxu0 0
      %1059 = vmatpush.bf16.msra.mxu0 0
      %1060 = vmatpush.bf16.msra.mxu0 0
      %1061 = vmatpush.bf16.msra.mxu0 0
      %1062 = vmatpush.bf16.msra.mxu0 0
      %1063 = vmatpush.bf16.msra.mxu0 0
      %1064 = vmatpush.bf16.msra.mxu0 0
      %1065 = vmatpush.bf16.msra.mxu0 %v950
      %1066 = vmatmul.bf16.gmra.mxu0 %v965
      %v1067 = vpop.f32.mrf.mxu0
      %v1068 = vadd.f32 %v1055, %v1067
      %v1069 = vpop.f32.mrf.mxu0
      %1070 = vdwg.mxu0
      %1071 = vmatpush.bf16.msra.mxu0 %v942
      %1072 = vmatpush.bf16.msra.mxu0 %v933
      %1073 = vmatpush.bf16.msra.mxu0 %v924
      %1074 = vmatpush.bf16.msra.mxu0 %v915
      %1075 = vmatpush.bf16.msra.mxu0 %v906
      %1076 = vmatpush.bf16.msra.mxu0 %v897
      %1077 = vmatpush.bf16.msra.mxu0 %v888
      %1078 = vmatpush.bf16.msra.mxu0 %v879
      %1079 = vmatmul.bf16.gmra.mxu0 %v960
      %v1080 = vpop.f32.mrf.mxu0
      %v1081 = vadd.f32 0.0, %v1080
      %v1082 = vpop.f32.mrf.mxu0
      %1083 = vdwg.mxu0
      %1084 = vmatpush.bf16.msra.mxu0 0
      %1085 = vmatpush.bf16.msra.mxu0 0
      %1086 = vmatpush.bf16.msra.mxu0 0
      %1087 = vmatpush.bf16.msra.mxu0 0
      %1088 = vmatpush.bf16.msra.mxu0 0
      %1089 = vmatpush.bf16.msra.mxu0 0
      %1090 = vmatpush.bf16.msra.mxu0 0
      %1091 = vmatpush.bf16.msra.mxu0 %v951
      %1092 = vmatmul.bf16.gmra.mxu0 %v965
      %v1093 = vpop.f32.mrf.mxu0
      %v1094 = vadd.f32 %v1081, %v1093
      %v1095 = vpop.f32.mrf.mxu0
      %1096 = vdwg.mxu0
      %1097 = vmatpush.bf16.msra.mxu0 %v943
      %1098 = vmatpush.bf16.msra.mxu0 %v934
      %1099 = vmatpush.bf16.msra.mxu0 %v925
      %1100 = vmatpush.bf16.msra.mxu0 %v916
      %1101 = vmatpush.bf16.msra.mxu0 %v907
      %1102 = vmatpush.bf16.msra.mxu0 %v898
      %1103 = vmatpush.bf16.msra.mxu0 %v889
      %1104 = vmatpush.bf16.msra.mxu0 %v880
      %1105 = vmatmul.bf16.gmra.mxu0 %v960
      %v1106 = vpop.f32.mrf.mxu0
      %v1107 = vadd.f32 0.0, %v1106
      %v1108 = vpop.f32.mrf.mxu0
      %1109 = vdwg.mxu0
      %1110 = vmatpush.bf16.msra.mxu0 0
      %1111 = vmatpush.bf16.msra.mxu0 0
      %1112 = vmatpush.bf16.msra.mxu0 0
      %1113 = vmatpush.bf16.msra.mxu0 0
      %1114 = vmatpush.bf16.msra.mxu0 0
      %1115 = vmatpush.bf16.msra.mxu0 0
      %1116 = vmatpush.bf16.msra.mxu0 0
      %1117 = vmatpush.bf16.msra.mxu0 %v952
      %1118 = vmatmul.bf16.gmra.mxu0 %v965
      %v1119 = vpop.f32.mrf.mxu0
      %v1120 = vadd.f32 %v1107, %v1119
      %v1121 = vpop.f32.mrf.mxu0
      %1122 = vdwg.mxu0
      %1123 = vmatpush.bf16.msra.mxu0 %v944
      %1124 = vmatpush.bf16.msra.mxu0 %v935
      %1125 = vmatpush.bf16.msra.mxu0 %v926
      %1126 = vmatpush.bf16.msra.mxu0 %v917
      %1127 = vmatpush.bf16.msra.mxu0 %v908
      %1128 = vmatpush.bf16.msra.mxu0 %v899
      %1129 = vmatpush.bf16.msra.mxu0 %v890
      %1130 = vmatpush.bf16.msra.mxu0 %v881
      %1131 = vmatmul.bf16.gmra.mxu0 %v960
      %v1132 = vpop.f32.mrf.mxu0
      %v1133 = vadd.f32 0.0, %v1132
      %v1134 = vpop.f32.mrf.mxu0
      %1135 = vdwg.mxu0
      %1136 = vmatpush.bf16.msra.mxu0 0
      %1137 = vmatpush.bf16.msra.mxu0 0
      %1138 = vmatpush.bf16.msra.mxu0 0
      %1139 = vmatpush.bf16.msra.mxu0 0
      %1140 = vmatpush.bf16.msra.mxu0 0
      %1141 = vmatpush.bf16.msra.mxu0 0
      %1142 = vmatpush.bf16.msra.mxu0 0
      %1143 = vmatpush.bf16.msra.mxu0 %v953
      %1144 = vmatmul.bf16.gmra.mxu0 %v965
      %v1145 = vpop.f32.mrf.mxu0
      %v1146 = vadd.f32 %v1133, %v1145
      %v1147 = vpop.f32.mrf.mxu0
      %1148 = vdwg.mxu0
      %1149 = vmatpush.bf16.msra.mxu0 %v945
      %1150 = vmatpush.bf16.msra.mxu0 %v936
      %1151 = vmatpush.bf16.msra.mxu0 %v927
      %1152 = vmatpush.bf16.msra.mxu0 %v918
      %1153 = vmatpush.bf16.msra.mxu0 %v909
      %1154 = vmatpush.bf16.msra.mxu0 %v900
      %1155 = vmatpush.bf16.msra.mxu0 %v891
      %1156 = vmatpush.bf16.msra.mxu0 %v882
      %1157 = vmatmul.bf16.gmra.mxu0 %v960
      %v1158 = vpop.f32.mrf.mxu0
      %v1159 = vadd.f32 0.0, %v1158
      %v1160 = vpop.f32.mrf.mxu0
      %1161 = vdwg.mxu0
      %1162 = vmatpush.bf16.msra.mxu0 0
      %1163 = vmatpush.bf16.msra.mxu0 0
      %1164 = vmatpush.bf16.msra.mxu0 0
      %1165 = vmatpush.bf16.msra.mxu0 0
      %1166 = vmatpush.bf16.msra.mxu0 0
      %1167 = vmatpush.bf16.msra.mxu0 0
      %1168 = vmatpush.bf16.msra.mxu0 0
      %1169 = vmatpush.bf16.msra.mxu0 %v954
      %1170 = vmatmul.bf16.gmra.mxu0 %v965
      %v1171 = vpop.f32.mrf.mxu0
      %v1172 = vadd.f32 %v1159, %v1171
      %v1173 = vpop.f32.mrf.mxu0
      %1174 = vdwg.mxu0
      %1175 = vmatpush.bf16.msra.mxu0 %v946
      %1176 = vmatpush.bf16.msra.mxu0 %v937
      %1177 = vmatpush.bf16.msra.mxu0 %v928
      %1178 = vmatpush.bf16.msra.mxu0 %v919
      %1179 = vmatpush.bf16.msra.mxu0 %v910
      %1180 = vmatpush.bf16.msra.mxu0 %v901
      %1181 = vmatpush.bf16.msra.mxu0 %v892
      %1182 = vmatpush.bf16.msra.mxu0 %v883
      %1183 = vmatmul.bf16.gmra.mxu0 %v960
      %v1184 = vpop.f32.mrf.mxu0
      %v1185 = vadd.f32 0.0, %v1184
      %v1186 = vpop.f32.mrf.mxu0
      %1187 = vdwg.mxu0
      %1188 = vmatpush.bf16.msra.mxu0 0
      %1189 = vmatpush.bf16.msra.mxu0 0
      %1190 = vmatpush.bf16.msra.mxu0 0
      %1191 = vmatpush.bf16.msra.mxu0 0
      %1192 = vmatpush.bf16.msra.mxu0 0
      %1193 = vmatpush.bf16.msra.mxu0 0
      %1194 = vmatpush.bf16.msra.mxu0 0
      %1195 = vmatpush.bf16.msra.mxu0 %v955
      %1196 = vmatmul.bf16.gmra.mxu0 %v965
      %v1197 = vpop.f32.mrf.mxu0
      %v1198 = vadd.f32 %v1185, %v1197
      %v1199 = vpop.f32.mrf.mxu0
      %1200 = vdwg.mxu0
      %v1201 = vld [vmem:[%s3] sm:$0xff]
      %1203 = vset.pattern.permute.xlu0 0
      %1204 = vperm.xlu0 %1203, %v1201
      %v1205 = vpop.permute.xlu0 %1204
      %v1207 = vmul.f32 %v990, %v1205
      %v1208 = vmul.f32 %v1016, %v1205
      %v1209 = vmul.f32 %v1042, %v1205
      %v1210 = vmul.f32 %v1068, %v1205
      %v1211 = vmul.f32 %v1094, %v1205
      %v1212 = vmul.f32 %v1120, %v1205
      %v1213 = vmul.f32 %v1146, %v1205
      %v1214 = vmul.f32 %v1172, %v1205
      %v1215 = vmul.f32 %v1198, %v1205
      %v1216 = vld [vmem:[%s4] sm:$0xff]
      %1218 = vset.pattern.permute.xlu0 0
      %1219 = vperm.xlu0 %1218, %v1216
      %v1220 = vpop.permute.xlu0 %1219
      %v1222 = vadd.f32 %v1207, %v1220
      %v1223 = vadd.f32 %v1208, %v1220
      %v1224 = vadd.f32 %v1209, %v1220
      %v1225 = vadd.f32 %v1210, %v1220
      %v1226 = vadd.f32 %v1211, %v1220
      %v1227 = vadd.f32 %v1212, %v1220
      %v1228 = vadd.f32 %v1213, %v1220
      %v1229 = vadd.f32 %v1214, %v1220
      %v1230 = vadd.f32 %v1215, %v1220
      %v1231 = vmax.f32 %v1222, 0.0
      %v1232 = vmax.f32 %v1223, 0.0
      %v1233 = vmax.f32 %v1224, 0.0
      %v1234 = vmax.f32 %v1225, 0.0
      %v1235 = vmax.f32 %v1226, 0.0
      %v1236 = vmax.f32 %v1227, 0.0
      %v1237 = vmax.f32 %v1228, 0.0
      %v1238 = vmax.f32 %v1229, 0.0
      %v1239 = vmax.f32 %v1230, 0.0
      %1240 = vst [vmem:[%s244] sm:$0xff] %v1231
      %1241 = vst [vmem:[%s244 + $0x8] sm:$0xff] %v1232
      %1242 = vst [vmem:[%s244 + $0x10] sm:$0xff] %v1233
      %1243 = vst [vmem:[%s244 + $0x18] sm:$0xff] %v1234
      %1244 = vst [vmem:[%s244 + $0x20] sm:$0xff] %v1235
      %1245 = vst [vmem:[%s244 + $0x28] sm:$0xff] %v1236
      %1246 = vst [vmem:[%s244 + $0x30] sm:$0xff] %v1237
      %1247 = vst [vmem:[%s244 + $0x38] sm:$0xff] %v1238
      %vm1248 = vcmask 523264
      %1249 = vst.msk [vmem:[%s244 + $0x40] sm:$0xff] %vm1248, %v1239
      %p1250 = scmp.lt.s32.totalorder %s16, 1
      %s1251 = scalar_select %p1250, %s16, 1
      %s1252 = smul.addr %s1251, 9
      %s1253 = smul.addr %s1252, 8
      %s1254 = scalar_lea.vmem %s5, %s1253
      // Predicated region
      $region41: #{decoder_forward.11} parent=39 // pred_check
        %p1255 = pneg %p149
      $region42: #{decoder_forward.11} parent=39 // pred_check_branch
        %1257 = sbr.rel (%p1255) target = $region44
      $region43: #{decoder_forward.11} parent=39 // pred_region
        _
      $region44: #{decoder_forward.11} parent=39 // pred_fallthru
        _
    $region40: #{decoder_forward.11} parent=5 // pred_fallthru
      _
    %p1258 = scmp.le.s32.totalorder 2, %s11
    // Predicated region
    $region45: #{decoder_forward.11} parent=5 // pred_check
      %p1259 = pneg %p1258
    $region46: #{decoder_forward.11} parent=5 // pred_check_branch
      %1261 = sbr.rel (%p1259) target = $region48
    $region47: #{decoder_forward.11} parent=5 // pred_region
      %s1262 = ssub.s32 %s11, 2
      // Predicated region
      $region49: #{decoder_forward.11} parent=47 // pred_check
        %p1263 = pneg %p155
      $region50: #{decoder_forward.11} parent=47 // pred_check_branch
        %1265 = sbr.rel (%p1263) target = $region52
      $region51: #{decoder_forward.11} parent=47 // pred_region
        %p1266 = scmp.lt.s32.totalorder %s17, 1
        %s1267 = scalar_select %p1266, %s17, 1
        %s1268 = smul.addr %s1267, 9
        %s1269 = smul.addr %s1268, 8
        %s1270 = scalar_lea.vmem %s5, %s1269
      $region52: #{decoder_forward.11} parent=47 // pred_fallthru
        _
    $region48: #{decoder_forward.11} parent=5 // pred_fallthru
      _
  $region6: #{decoder_forward.11} parent=0 // loop_footer
    %s15 = sadd.s32 1, %s11
  $region7: #{decoder_forward.11} parent=0 // loop_footer_branch
    %10 = sbr.rel target = $region3
  $region8: #{decoder_forward.11} parent=0 // loop_exit
    _

// kernel: decoder_forward.13
$region0: #{decoder_forward.13}
  #allocation0 [shape = 'u32[]', space=smem, size = 0x4, offset = 0x4, fixed_abs, tag = 'smem constant byte address 0x4 - core index']
  #allocation1 [shape = 'u32[72,128]{1,0:T(1,128)}', space=vmem, size = 0x9000, scoped, tag = 'internal scratch']
  %s0 = inlined_call_operand.vmem [shape: f32[2,8,1158], index: 0, kind: input, shape index: {}]
  %s1 = inlined_call_operand.vmem [shape: bf16[8,72], index: 1, kind: input, shape index: {}]
  %s2 = inlined_call_operand.vmem [shape: f32[8,1], index: 2, kind: input, shape index: {}]
  %s3 = inlined_call_operand.vmem [shape: f32[8,1], index: 3, kind: input, shape index: {}]
  %s4 = inlined_call_operand.vmem [shape: f32[2,8,1088], index: 4, kind: output, shape index: {}]
  %s5 = sld [smem:[#allocation0]]
  $region49: #{decoder_forward.13} parent=0
    _
  %s7 = ssub.s32 1, %s5
  %s8 = scalar_select 0, %s7, %s5
  loop: start=0, step=1, limit=4
  $region2: #{decoder_forward.13} parent=0 // loop_pre_header
    _
  $region3: #{decoder_forward.13} parent=0 // loop_header
    %s10 = sphi 0, %s14
    %p11 = scmp.ge.s32.totalorder %s10, 4
    %s20 = sphi 0, %s22
    %s23 = sphi 0, %s20
    %s24 = sphi 0, %s23
    %s40 = sphi 0, %s24
    %s44 = sphi 0, %s44
    %s46 = sphi 0, %s44
    %s47 = sphi 0, %s46
    %s61 = sphi 0, %s47
    %s65 = sphi 0, %s65
    %s67 = sphi 0, %s65
    %s68 = sphi 0, %s67
    %s82 = sphi 0, %s68
    %s86 = sphi 0, %s86
    %s88 = sphi 0, %s86
    %s89 = sphi 0, %s88
    %s103 = sphi 0, %s89
    %s109 = sphi 0, %s111
    %s112 = sphi 0, %s109
    %s113 = sphi 0, %s112
    %s129 = sphi 0, %s113
  $region4: #{decoder_forward.13} parent=0 // loop_header_branch
    %13 = sbr.rel (%p11) target = $region8
  $region5: #{decoder_forward.13} parent=0 // loop_body
    %s15 = ssub.s32 %s10, 1
    %s16 = ssub.s32 %s10, 2
    %s17 = sadd.s32 %s10, 1
    %s18 = ssub.s32 %s10, %s17
    %p19 = scmp.eq.s32.totalorder %s18, 0
    %s21 = sadd.s32 %s20, 1
    %s22 = scalar_select %p19, %s20, %s21
    %p25 = pneg %p19
    %p26 = scmp.eq.s32.totalorder %s10, 1
    %p27 = por %p25, %p26
    %p28 = scmp.ne.s32.totalorder %s20, %s23
    %p29 = scmp.eq.s32.totalorder %s10, 0
    %p30 = por %p28, %p29
    %p31 = scmp.ne.s32.totalorder %s20, %s23
    %p32 = scmp.eq.s32.totalorder %s15, 1
    %p33 = por %p31, %p32
    %p34 = scmp.ne.s32.totalorder %s23, %s24
    %p35 = scmp.eq.s32.totalorder %s15, 0
    %p36 = por %p34, %p35
    %p37 = scmp.ne.s32.totalorder %s23, %s24
    %p38 = scmp.eq.s32.totalorder %s16, 1
    %p39 = por %p37, %p38
    %p41 = scmp.ne.s32.totalorder %s24, %s40
    %p42 = scmp.eq.s32.totalorder %s16, 0
    %p43 = por %p41, %p42
    %s45 = sadd.s32 %s44, 1
    %p48 = scmp.eq.s32.totalorder %s10, 1
    %p49 = scmp.ne.s32.totalorder %s44, %s46
    %p50 = scmp.eq.s32.totalorder %s10, 0
    %p51 = por %p49, %p50
    %p52 = scmp.ne.s32.totalorder %s44, %s46
    %p53 = scmp.eq.s32.totalorder %s15, 1
    %p54 = por %p52, %p53
    %p55 = scmp.ne.s32.totalorder %s46, %s47
    %p56 = scmp.eq.s32.totalorder %s15, 0
    %p57 = por %p55, %p56
    %p58 = scmp.ne.s32.totalorder %s46, %s47
    %p59 = scmp.eq.s32.totalorder %s16, 1
    %p60 = por %p58, %p59
    %p62 = scmp.ne.s32.totalorder %s47, %s61
    %p63 = scmp.eq.s32.totalorder %s16, 0
    %p64 = por %p62, %p63
    %s66 = sadd.s32 %s65, 1
    %p69 = scmp.eq.s32.totalorder %s10, 1
    %p70 = scmp.ne.s32.totalorder %s65, %s67
    %p71 = scmp.eq.s32.totalorder %s10, 0
    %p72 = por %p70, %p71
    %p73 = scmp.ne.s32.totalorder %s65, %s67
    %p74 = scmp.eq.s32.totalorder %s15, 1
    %p75 = por %p73, %p74
    %p76 = scmp.ne.s32.totalorder %s67, %s68
    %p77 = scmp.eq.s32.totalorder %s15, 0
    %p78 = por %p76, %p77
    %p79 = scmp.ne.s32.totalorder %s67, %s68
    %p80 = scmp.eq.s32.totalorder %s16, 1
    %p81 = por %p79, %p80
    %p83 = scmp.ne.s32.totalorder %s68, %s82
    %p84 = scmp.eq.s32.totalorder %s16, 0
    %p85 = por %p83, %p84
    %s87 = sadd.s32 %s86, 1
    %p90 = scmp.eq.s32.totalorder %s10, 1
    %p91 = scmp.ne.s32.totalorder %s86, %s88
    %p92 = scmp.eq.s32.totalorder %s10, 0
    %p93 = por %p91, %p92
    %p94 = scmp.ne.s32.totalorder %s86, %s88
    %p95 = scmp.eq.s32.totalorder %s15, 1
    %p96 = por %p94, %p95
    %p97 = scmp.ne.s32.totalorder %s88, %s89
    %p98 = scmp.eq.s32.totalorder %s15, 0
    %p99 = por %p97, %p98
    %p100 = scmp.ne.s32.totalorder %s88, %s89
    %p101 = scmp.eq.s32.totalorder %s16, 1
    %p102 = por %p100, %p101
    %p104 = scmp.ne.s32.totalorder %s89, %s103
    %p105 = scmp.eq.s32.totalorder %s16, 0
    %p106 = por %p104, %p105
    %s107 = ssub.s32 %s10, %s17
    %p108 = scmp.eq.s32.totalorder %s107, 0
    %s110 = sadd.s32 %s109, 1
    %s111 = scalar_select %p108, %s109, %s110
    %p114 = pneg %p108
    %p115 = scmp.eq.s32.totalorder %s10, 1
    %p116 = por %p114, %p115
    %p117 = scmp.ne.s32.totalorder %s109, %s112
    %p118 = scmp.eq.s32.totalorder %s10, 0
    %p119 = por %p117, %p118
    %p120 = scmp.ne.s32.totalorder %s109, %s112
    %p121 = scmp.eq.s32.totalorder %s15, 1
    %p122 = por %p120, %p121
    %p123 = scmp.ne.s32.totalorder %s112, %s113
    %p124 = scmp.eq.s32.totalorder %s15, 0
    %p125 = por %p123, %p124
    %p126 = scmp.ne.s32.totalorder %s112, %s113
    %p127 = scmp.eq.s32.totalorder %s16, 1
    %p128 = por %p126, %p127
    %p130 = scmp.ne.s32.totalorder %s113, %s129
    %p131 = scmp.eq.s32.totalorder %s16, 0
    %p132 = por %p130, %p131
    %p133 = scmp.le.s32.totalorder 1, %s10
    %p134 = scmp.lt.s32.totalorder %s10, 3
    %p135 = pnand %p133, %p134
    %p136 = pneg %p135
    // Predicated region
    $region9: #{decoder_forward.13} parent=5 // pred_check
      _
    $region10: #{decoder_forward.13} parent=5 // pred_check_branch
      %138 = sbr.rel (%p135) target = $region12
    $region11: #{decoder_forward.13} parent=5 // pred_region
      %s139 = ssub.s32 %s10, 1
      // Predicated region
      $region13: #{decoder_forward.13} parent=11 // pred_check
        %p140 = pneg %p57
      $region14: #{decoder_forward.13} parent=11 // pred_check_branch
        %142 = sbr.rel (%p140) target = $region16
      $region15: #{decoder_forward.13} parent=11 // pred_region
        _
      $region16: #{decoder_forward.13} parent=11 // pred_fallthru
        _
      // Predicated region
      $region17: #{decoder_forward.13} parent=11 // pred_check
        %p143 = pneg %p78
      $region18: #{decoder_forward.13} parent=11 // pred_check_branch
        %145 = sbr.rel (%p143) target = $region20
      $region19: #{decoder_forward.13} parent=11 // pred_region
        _
      $region20: #{decoder_forward.13} parent=11 // pred_fallthru
        _
      // Predicated region
      $region21: #{decoder_forward.13} parent=11 // pred_check
        %p146 = pneg %p99
      $region22: #{decoder_forward.13} parent=11 // pred_check_branch
        %148 = sbr.rel (%p146) target = $region24
      $region23: #{decoder_forward.13} parent=11 // pred_region
        _
      $region24: #{decoder_forward.13} parent=11 // pred_fallthru
        _
    $region12: #{decoder_forward.13} parent=5 // pred_fallthru
      _
    %p149 = scmp.lt.s32.totalorder %s10, 2
    // Predicated region
    $region25: #{decoder_forward.13} parent=5 // pred_check
      %p150 = pneg %p149
    $region26: #{decoder_forward.13} parent=5 // pred_check_branch
      %152 = sbr.rel (%p150) target = $region28
    $region27: #{decoder_forward.13} parent=5 // pred_region
      // Predicated region
      $region29: #{decoder_forward.13} parent=27 // pred_check
        %p153 = pneg %p30
      $region30: #{decoder_forward.13} parent=27 // pred_check_branch
        %155 = sbr.rel (%p153) target = $region32
      $region31: #{decoder_forward.13} parent=27 // pred_region
        %p156 = scmp.lt.s32.totalorder %s10, 1
        %s157 = scalar_select %p156, %s10, 1
        %s158 = smul.addr %s157, 10
        %s159 = smul.addr %s158, 8
        %s160 = scalar_lea.vmem %s0, %s159
      $region32: #{decoder_forward.13} parent=27 // pred_fallthru
        _
    $region28: #{decoder_forward.13} parent=5 // pred_fallthru
      _
    %p161 = scmp.le.s32.totalorder 1, %s10
    %p162 = scmp.lt.s32.totalorder %s10, 3
    %p163 = pnand %p161, %p162
    %p164 = pneg %p163
    // Predicated region
    $region33: #{decoder_forward.13} parent=5 // pred_check
      _
    $region34: #{decoder_forward.13} parent=5 // pred_check_branch
      %166 = sbr.rel (%p163) target = $region36
    $region35: #{decoder_forward.13} parent=5 // pred_region
      %s167 = ssub.s32 %s10, 1
      %p168 = scmp.lt.s32.totalorder %s15, 1
      %s169 = scalar_select %p168, %s15, 1
      %s170 = smul.addr %s169, 10
      %s171 = smul.addr %s170, 8
      %s172 = scalar_lea.vmem %s0, %s171
      %p173 = pneg %p36
      %p174 = pneg %p33
      %p175 = pneg %p57
      %p176 = pneg %p54
      %p177 = pneg %p78
      %p178 = pneg %p75
      %p179 = pneg %p99
      %p180 = pneg %p96
      %p181 = pneg %p125
      %p182 = pneg %p122
      %p183 = scmp.lt.s32.totalorder %s15, 1
      %s184 = scalar_select %p183, %s15, 1
      %s185 = smul.addr %s184, 9
      %s186 = smul.addr %s185, 8
      %s187 = scalar_lea.vmem %s4, %s186
      %p188 = scmp.lt.s32.totalorder %s15, 1
      %s189 = scalar_select %p188, %s15, 1
      %s190 = smul.addr %s189, 10
      %s191 = smul.addr %s190, 8
      %s192 = scalar_lea.vmem %s0, %s191
      %p193 = scmp.lt.s32.totalorder %s15, 1
      %s194 = scalar_select %p193, %s15, 1
      %s195 = smul.addr %s194, 9
      %s196 = smul.addr %s195, 8
      %s197 = scalar_lea.vmem %s4, %s196
      %v199 = vld [vmem:[%s192] sm:$0xff]
      %v200 = vld [vmem:[%s192 + $0x8] sm:$0xff]
      %v201 = vld [vmem:[%s192 + $0x10] sm:$0xff]
      %v202 = vld [vmem:[%s192 + $0x18] sm:$0xff]
      %v203 = vld [vmem:[%s192 + $0x20] sm:$0xff]
      %v204 = vld [vmem:[%s192 + $0x28] sm:$0xff]
      %v205 = vld [vmem:[%s192 + $0x30] sm:$0xff]
      %v206 = vld [vmem:[%s192 + $0x38] sm:$0xff]
      %v207 = vld [vmem:[%s192 + $0x40] sm:$0xff]
      %v208 = vld [vmem:[%s192 + $0x48] sm:$0xff]
      %218 = vrot.lane.b32.xlu0 %v199, 127
      %v219 = vpop.permute.xlu0 %218
      %220 = vrot.lane.b32.xlu0 %v200, 127
      %v221 = vpop.permute.xlu0 %220
      %222 = vrot.lane.b32.xlu0 %v201, 127
      %v223 = vpop.permute.xlu0 %222
      %224 = vrot.lane.b32.xlu0 %v202, 127
      %v225 = vpop.permute.xlu0 %224
      %226 = vrot.lane.b32.xlu0 %v203, 127
      %v227 = vpop.permute.xlu0 %226
      %228 = vrot.lane.b32.xlu0 %v204, 127
      %v229 = vpop.permute.xlu0 %228
      %230 = vrot.lane.b32.xlu0 %v205, 127
      %v231 = vpop.permute.xlu0 %230
      %232 = vrot.lane.b32.xlu0 %v206, 127
      %v233 = vpop.permute.xlu0 %232
      %234 = vrot.lane.b32.xlu0 %v207, 127
      %v235 = vpop.permute.xlu0 %234
      %vm236 = vcmask 1039360
      %v237 = vsel %vm236, %v219, %v221
      %v238 = vsel %vm236, %v221, %v223
      %v239 = vsel %vm236, %v223, %v225
      %v240 = vsel %vm236, %v225, %v227
      %v241 = vsel %vm236, %v227, %v229
      %v242 = vsel %vm236, %v229, %v231
      %v243 = vsel %vm236, %v231, %v233
      %v244 = vsel %vm236, %v233, %v235
      %254 = vrot.lane.b32.xlu0 %v199, 126
      %v255 = vpop.permute.xlu0 %254
      %256 = vrot.lane.b32.xlu0 %v200, 126
      %v257 = vpop.permute.xlu0 %256
      %258 = vrot.lane.b32.xlu0 %v201, 126
      %v259 = vpop.permute.xlu0 %258
      %260 = vrot.lane.b32.xlu0 %v202, 126
      %v261 = vpop.permute.xlu0 %260
      %262 = vrot.lane.b32.xlu0 %v203, 126
      %v263 = vpop.permute.xlu0 %262
      %264 = vrot.lane.b32.xlu0 %v204, 126
      %v265 = vpop.permute.xlu0 %264
      %266 = vrot.lane.b32.xlu0 %v205, 126
      %v267 = vpop.permute.xlu0 %266
      %268 = vrot.lane.b32.xlu0 %v206, 126
      %v269 = vpop.permute.xlu0 %268
      %270 = vrot.lane.b32.xlu0 %v207, 126
      %v271 = vpop.permute.xlu0 %270
      %vm272 = vcmask 1031168
      %v273 = vsel %vm272, %v255, %v257
      %v274 = vsel %vm272, %v257, %v259
      %v275 = vsel %vm272, %v259, %v261
      %v276 = vsel %vm272, %v261, %v263
      %v277 = vsel %vm272, %v263, %v265
      %v278 = vsel %vm272, %v265, %v267
      %v279 = vsel %vm272, %v267, %v269
      %v280 = vsel %vm272, %v269, %v271
      %290 = vrot.lane.b32.xlu0 %v199, 94
      %v291 = vpop.permute.xlu0 %290
      %292 = vrot.lane.b32.xlu0 %v200, 94
      %v293 = vpop.permute.xlu0 %292
      %294 = vrot.lane.b32.xlu0 %v201, 94
      %v295 = vpop.permute.xlu0 %294
      %296 = vrot.lane.b32.xlu0 %v202, 94
      %v297 = vpop.permute.xlu0 %296
      %298 = vrot.lane.b32.xlu0 %v203, 94
      %v299 = vpop.permute.xlu0 %298
      %300 = vrot.lane.b32.xlu0 %v204, 94
      %v301 = vpop.permute.xlu0 %300
      %302 = vrot.lane.b32.xlu0 %v205, 94
      %v303 = vpop.permute.xlu0 %302
      %304 = vrot.lane.b32.xlu0 %v206, 94
      %v305 = vpop.permute.xlu0 %304
      %306 = vrot.lane.b32.xlu0 %v207, 94
      %v307 = vpop.permute.xlu0 %306
      %vm308 = vcmask 769024
      %v309 = vsel %vm308, %v291, %v293
      %v310 = vsel %vm308, %v293, %v295
      %v311 = vsel %vm308, %v295, %v297
      %v312 = vsel %vm308, %v297, %v299
      %v313 = vsel %vm308, %v299, %v301
      %v314 = vsel %vm308, %v301, %v303
      %v315 = vsel %vm308, %v303, %v305
      %v316 = vsel %vm308, %v305, %v307
      %326 = vrot.lane.b32.xlu0 %v199, 93
      %v327 = vpop.permute.xlu0 %326
      %328 = vrot.lane.b32.xlu0 %v200, 93
      %v329 = vpop.permute.xlu0 %328
      %330 = vrot.lane.b32.xlu0 %v201, 93
      %v331 = vpop.permute.xlu0 %330
      %332 = vrot.lane.b32.xlu0 %v202, 93
      %v333 = vpop.permute.xlu0 %332
      %334 = vrot.lane.b32.xlu0 %v203, 93
      %v335 = vpop.permute.xlu0 %334
      %336 = vrot.lane.b32.xlu0 %v204, 93
      %v337 = vpop.permute.xlu0 %336
      %338 = vrot.lane.b32.xlu0 %v205, 93
      %v339 = vpop.permute.xlu0 %338
      %340 = vrot.lane.b32.xlu0 %v206, 93
      %v341 = vpop.permute.xlu0 %340
      %342 = vrot.lane.b32.xlu0 %v207, 93
      %v343 = vpop.permute.xlu0 %342
      %vm344 = vcmask 760832
      %v345 = vsel %vm344, %v327, %v329
      %v346 = vsel %vm344, %v329, %v331
      %v347 = vsel %vm344, %v331, %v333
      %v348 = vsel %vm344, %v333, %v335
      %v349 = vsel %vm344, %v335, %v337
      %v350 = vsel %vm344, %v337, %v339
      %v351 = vsel %vm344, %v339, %v341
      %v352 = vsel %vm344, %v341, %v343
      %362 = vrot.lane.b32.xlu0 %v199, 92
      %v363 = vpop.permute.xlu0 %362
      %364 = vrot.lane.b32.xlu0 %v200, 92
      %v365 = vpop.permute.xlu0 %364
      %366 = vrot.lane.b32.xlu0 %v201, 92
      %v367 = vpop.permute.xlu0 %366
      %368 = vrot.lane.b32.xlu0 %v202, 92
      %v369 = vpop.permute.xlu0 %368
      %370 = vrot.lane.b32.xlu0 %v203, 92
      %v371 = vpop.permute.xlu0 %370
      %372 = vrot.lane.b32.xlu0 %v204, 92
      %v373 = vpop.permute.xlu0 %372
      %374 = vrot.lane.b32.xlu0 %v205, 92
      %v375 = vpop.permute.xlu0 %374
      %376 = vrot.lane.b32.xlu0 %v206, 92
      %v377 = vpop.permute.xlu0 %376
      %378 = vrot.lane.b32.xlu0 %v207, 92
      %v379 = vpop.permute.xlu0 %378
      %vm380 = vcmask 752640
      %v381 = vsel %vm380, %v363, %v365
      %v382 = vsel %vm380, %v365, %v367
      %v383 = vsel %vm380, %v367, %v369
      %v384 = vsel %vm380, %v369, %v371
      %v385 = vsel %vm380, %v371, %v373
      %v386 = vsel %vm380, %v373, %v375
      %v387 = vsel %vm380, %v375, %v377
      %v388 = vsel %vm380, %v377, %v379
      %399 = vrot.lane.b32.xlu0 %v199, 60
      %v400 = vpop.permute.xlu0 %399
      %401 = vrot.lane.b32.xlu0 %v200, 60
      %v402 = vpop.permute.xlu0 %401
      %403 = vrot.lane.b32.xlu0 %v201, 60
      %v404 = vpop.permute.xlu0 %403
      %405 = vrot.lane.b32.xlu0 %v202, 60
      %v406 = vpop.permute.xlu0 %405
      %407 = vrot.lane.b32.xlu0 %v203, 60
      %v408 = vpop.permute.xlu0 %407
      %409 = vrot.lane.b32.xlu0 %v204, 60
      %v410 = vpop.permute.xlu0 %409
      %411 = vrot.lane.b32.xlu0 %v205, 60
      %v412 = vpop.permute.xlu0 %411
      %413 = vrot.lane.b32.xlu0 %v206, 60
      %v414 = vpop.permute.xlu0 %413
      %415 = vrot.lane.b32.xlu0 %v207, 60
      %v416 = vpop.permute.xlu0 %415
      %417 = vrot.lane.b32.xlu0 %v208, 60
      %v418 = vpop.permute.xlu0 %417
      %vm419 = vcmask 490496
      %v420 = vsel %vm419, %v400, %v402
      %v421 = vsel %vm419, %v402, %v404
      %v422 = vsel %vm419, %v404, %v406
      %v423 = vsel %vm419, %v406, %v408
      %v424 = vsel %vm419, %v408, %v410
      %v425 = vsel %vm419, %v410, %v412
      %v426 = vsel %vm419, %v412, %v414
      %v427 = vsel %vm419, %v414, %v416
      %v428 = vsel %vm419, %v416, %v418
      %438 = vrot.lane.b32.xlu0 %v199, 59
      %v439 = vpop.permute.xlu0 %438
      %440 = vrot.lane.b32.xlu0 %v200, 59
      %v441 = vpop.permute.xlu0 %440
      %442 = vrot.lane.b32.xlu0 %v201, 59
      %v443 = vpop.permute.xlu0 %442
      %444 = vrot.lane.b32.xlu0 %v202, 59
      %v445 = vpop.permute.xlu0 %444
      %446 = vrot.lane.b32.xlu0 %v203, 59
      %v447 = vpop.permute.xlu0 %446
      %448 = vrot.lane.b32.xlu0 %v204, 59
      %v449 = vpop.permute.xlu0 %448
      %450 = vrot.lane.b32.xlu0 %v205, 59
      %v451 = vpop.permute.xlu0 %450
      %452 = vrot.lane.b32.xlu0 %v206, 59
      %v453 = vpop.permute.xlu0 %452
      %454 = vrot.lane.b32.xlu0 %v207, 59
      %v455 = vpop.permute.xlu0 %454
      %456 = vrot.lane.b32.xlu0 %v208, 59
      %v457 = vpop.permute.xlu0 %456
      %vm458 = vcmask 482304
      %v459 = vsel %vm458, %v439, %v441
      %v460 = vsel %vm458, %v441, %v443
      %v461 = vsel %vm458, %v443, %v445
      %v462 = vsel %vm458, %v445, %v447
      %v463 = vsel %vm458, %v447, %v449
      %v464 = vsel %vm458, %v449, %v451
      %v465 = vsel %vm458, %v451, %v453
      %v466 = vsel %vm458, %v453, %v455
      %v467 = vsel %vm458, %v455, %v457
      %477 = vrot.lane.b32.xlu0 %v199, 58
      %v478 = vpop.permute.xlu0 %477
      %479 = vrot.lane.b32.xlu0 %v200, 58
      %v480 = vpop.permute.xlu0 %479
      %481 = vrot.lane.b32.xlu0 %v201, 58
      %v482 = vpop.permute.xlu0 %481
      %483 = vrot.lane.b32.xlu0 %v202, 58
      %v484 = vpop.permute.xlu0 %483
      %485 = vrot.lane.b32.xlu0 %v203, 58
      %v486 = vpop.permute.xlu0 %485
      %487 = vrot.lane.b32.xlu0 %v204, 58
      %v488 = vpop.permute.xlu0 %487
      %489 = vrot.lane.b32.xlu0 %v205, 58
      %v490 = vpop.permute.xlu0 %489
      %491 = vrot.lane.b32.xlu0 %v206, 58
      %v492 = vpop.permute.xlu0 %491
      %493 = vrot.lane.b32.xlu0 %v207, 58
      %v494 = vpop.permute.xlu0 %493
      %495 = vrot.lane.b32.xlu0 %v208, 58
      %v496 = vpop.permute.xlu0 %495
      %vm497 = vcmask 474112
      %v498 = vsel %vm497, %v478, %v480
      %v499 = vsel %vm497, %v480, %v482
      %v500 = vsel %vm497, %v482, %v484
      %v501 = vsel %vm497, %v484, %v486
      %v502 = vsel %vm497, %v486, %v488
      %v503 = vsel %vm497, %v488, %v490
      %v504 = vsel %vm497, %v490, %v492
      %v505 = vsel %vm497, %v492, %v494
      %v506 = vsel %vm497, %v494, %v496
      %v516 = vpack.c.bf16 %v237, %v199
      %v517 = vpack.c.bf16 %v238, %v200
      %v518 = vpack.c.bf16 %v239, %v201
      %v519 = vpack.c.bf16 %v240, %v202
      %v520 = vpack.c.bf16 %v241, %v203
      %v521 = vpack.c.bf16 %v242, %v204
      %v522 = vpack.c.bf16 %v243, %v205
      %v523 = vpack.c.bf16 %v244, %v206
      %v524 = vpack.c.bf16 %v235, %v207
      %v525 = vpack.c.bf16 %v309, %v273
      %v526 = vpack.c.bf16 %v310, %v274
      %v527 = vpack.c.bf16 %v311, %v275
      %v528 = vpack.c.bf16 %v312, %v276
      %v529 = vpack.c.bf16 %v313, %v277
      %v530 = vpack.c.bf16 %v314, %v278
      %v531 = vpack.c.bf16 %v315, %v279
      %v532 = vpack.c.bf16 %v316, %v280
      %v533 = vpack.c.bf16 %v307, %v271
      %v534 = vpack.c.bf16 %v381, %v345
      %v535 = vpack.c.bf16 %v382, %v346
      %v536 = vpack.c.bf16 %v383, %v347
      %v537 = vpack.c.bf16 %v384, %v348
      %v538 = vpack.c.bf16 %v385, %v349
      %v539 = vpack.c.bf16 %v386, %v350
      %v540 = vpack.c.bf16 %v387, %v351
      %v541 = vpack.c.bf16 %v388, %v352
      %v542 = vpack.c.bf16 %v379, %v343
      %v543 = vpack.c.bf16 %v459, %v420
      %v544 = vpack.c.bf16 %v460, %v421
      %v545 = vpack.c.bf16 %v461, %v422
      %v546 = vpack.c.bf16 %v462, %v423
      %v547 = vpack.c.bf16 %v463, %v424
      %v548 = vpack.c.bf16 %v464, %v425
      %v549 = vpack.c.bf16 %v465, %v426
      %v550 = vpack.c.bf16 %v466, %v427
      %v551 = vpack.c.bf16 %v467, %v428
      %v552 = vpack.c.bf16 %v498, %v498
      %v553 = vpack.c.bf16 %v499, %v499
      %v554 = vpack.c.bf16 %v500, %v500
      %v555 = vpack.c.bf16 %v501, %v501
      %v556 = vpack.c.bf16 %v502, %v502
      %v557 = vpack.c.bf16 %v503, %v503
      %v558 = vpack.c.bf16 %v504, %v504
      %v559 = vpack.c.bf16 %v505, %v505
      %v560 = vpack.c.bf16 %v506, %v506
      %v561 = vld [vmem:[%s1] sm:$0xf]
      %vm562 = vcmask 588800
      %v564 = vsel %vm562, %v561, 0
      %vm566 = vcmask 1043456
      %v568 = vsel %vm566, %v552, 0
      %v571 = vsel %vm566, %v553, 0
      %v574 = vsel %vm566, %v554, 0
      %v577 = vsel %vm566, %v555, 0
      %v580 = vsel %vm566, %v556, 0
      %v583 = vsel %vm566, %v557, 0
      %v586 = vsel %vm566, %v558, 0
      %v589 = vsel %vm566, %v559, 0
      %v592 = vsel %vm566, %v560, 0
      %594 = vmatpush.bf16.msra.mxu0 0
      %595 = vmatpush.bf16.msra.mxu0 0
      %596 = vmatpush.bf16.msra.mxu0 0
      %597 = vmatpush.bf16.msra.mxu0 %v568
      %598 = vmatpush.bf16.msra.mxu0 %v543
      %599 = vmatpush.bf16.msra.mxu0 %v534
      %600 = vmatpush.bf16.msra.mxu0 %v525
      %601 = vmatpush.bf16.msra.mxu0 %v516
      %602 = vmatmul.bf16.gmra.mxu0 %v564
      %v603 = vpop.f32.mrf.mxu0
      %v604 = vadd.f32 0.0, %v603
      %v605 = vpop.f32.mrf.mxu0
      %606 = vdwg.mxu0
      %607 = vmatpush.bf16.msra.mxu0 0
      %608 = vmatpush.bf16.msra.mxu0 0
      %609 = vmatpush.bf16.msra.mxu0 0
      %610 = vmatpush.bf16.msra.mxu0 %v571
      %611 = vmatpush.bf16.msra.mxu0 %v544
      %612 = vmatpush.bf16.msra.mxu0 %v535
      %613 = vmatpush.bf16.msra.mxu0 %v526
      %614 = vmatpush.bf16.msra.mxu0 %v517
      %615 = vmatmul.bf16.gmra.mxu0 %v564
      %v616 = vpop.f32.mrf.mxu0
      %v617 = vadd.f32 0.0, %v616
      %v618 = vpop.f32.mrf.mxu0
      %619 = vdwg.mxu0
      %620 = vmatpush.bf16.msra.mxu0 0
      %621 = vmatpush.bf16.msra.mxu0 0
      %622 = vmatpush.bf16.msra.mxu0 0
      %623 = vmatpush.bf16.msra.mxu0 %v574
      %624 = vmatpush.bf16.msra.mxu0 %v545
      %625 = vmatpush.bf16.msra.mxu0 %v536
      %626 = vmatpush.bf16.msra.mxu0 %v527
      %627 = vmatpush.bf16.msra.mxu0 %v518
      %628 = vmatmul.bf16.gmra.mxu0 %v564
      %v629 = vpop.f32.mrf.mxu0
      %v630 = vadd.f32 0.0, %v629
      %v631 = vpop.f32.mrf.mxu0
      %632 = vdwg.mxu0
      %633 = vmatpush.bf16.msra.mxu0 0
      %634 = vmatpush.bf16.msra.mxu0 0
      %635 = vmatpush.bf16.msra.mxu0 0
      %636 = vmatpush.bf16.msra.mxu0 %v577
      %637 = vmatpush.bf16.msra.mxu0 %v546
      %638 = vmatpush.bf16.msra.mxu0 %v537
      %639 = vmatpush.bf16.msra.mxu0 %v528
      %640 = vmatpush.bf16.msra.mxu0 %v519
      %641 = vmatmul.bf16.gmra.mxu0 %v564
      %v642 = vpop.f32.mrf.mxu0
      %v643 = vadd.f32 0.0, %v642
      %v644 = vpop.f32.mrf.mxu0
      %645 = vdwg.mxu0
      %646 = vmatpush.bf16.msra.mxu0 0
      %647 = vmatpush.bf16.msra.mxu0 0
      %648 = vmatpush.bf16.msra.mxu0 0
      %649 = vmatpush.bf16.msra.mxu0 %v580
      %650 = vmatpush.bf16.msra.mxu0 %v547
      %651 = vmatpush.bf16.msra.mxu0 %v538
      %652 = vmatpush.bf16.msra.mxu0 %v529
      %653 = vmatpush.bf16.msra.mxu0 %v520
      %654 = vmatmul.bf16.gmra.mxu0 %v564
      %v655 = vpop.f32.mrf.mxu0
      %v656 = vadd.f32 0.0, %v655
      %v657 = vpop.f32.mrf.mxu0
      %658 = vdwg.mxu0
      %659 = vmatpush.bf16.msra.mxu0 0
      %660 = vmatpush.bf16.msra.mxu0 0
      %661 = vmatpush.bf16.msra.mxu0 0
      %662 = vmatpush.bf16.msra.mxu0 %v583
      %663 = vmatpush.bf16.msra.mxu0 %v548
      %664 = vmatpush.bf16.msra.mxu0 %v539
      %665 = vmatpush.bf16.msra.mxu0 %v530
      %666 = vmatpush.bf16.msra.mxu0 %v521
      %667 = vmatmul.bf16.gmra.mxu0 %v564
      %v668 = vpop.f32.mrf.mxu0
      %v669 = vadd.f32 0.0, %v668
      %v670 = vpop.f32.mrf.mxu0
      %671 = vdwg.mxu0
      %672 = vmatpush.bf16.msra.mxu0 0
      %673 = vmatpush.bf16.msra.mxu0 0
      %674 = vmatpush.bf16.msra.mxu0 0
      %675 = vmatpush.bf16.msra.mxu0 %v586
      %676 = vmatpush.bf16.msra.mxu0 %v549
      %677 = vmatpush.bf16.msra.mxu0 %v540
      %678 = vmatpush.bf16.msra.mxu0 %v531
      %679 = vmatpush.bf16.msra.mxu0 %v522
      %680 = vmatmul.bf16.gmra.mxu0 %v564
      %v681 = vpop.f32.mrf.mxu0
      %v682 = vadd.f32 0.0, %v681
      %v683 = vpop.f32.mrf.mxu0
      %684 = vdwg.mxu0
      %685 = vmatpush.bf16.msra.mxu0 0
      %686 = vmatpush.bf16.msra.mxu0 0
      %687 = vmatpush.bf16.msra.mxu0 0
      %688 = vmatpush.bf16.msra.mxu0 %v589
      %689 = vmatpush.bf16.msra.mxu0 %v550
      %690 = vmatpush.bf16.msra.mxu0 %v541
      %691 = vmatpush.bf16.msra.mxu0 %v532
      %692 = vmatpush.bf16.msra.mxu0 %v523
      %693 = vmatmul.bf16.gmra.mxu0 %v564
      %v694 = vpop.f32.mrf.mxu0
      %v695 = vadd.f32 0.0, %v694
      %v696 = vpop.f32.mrf.mxu0
      %697 = vdwg.mxu0
      %698 = vmatpush.bf16.msra.mxu0 0
      %699 = vmatpush.bf16.msra.mxu0 0
      %700 = vmatpush.bf16.msra.mxu0 0
      %701 = vmatpush.bf16.msra.mxu0 %v592
      %702 = vmatpush.bf16.msra.mxu0 %v551
      %703 = vmatpush.bf16.msra.mxu0 %v542
      %704 = vmatpush.bf16.msra.mxu0 %v533
      %705 = vmatpush.bf16.msra.mxu0 %v524
      %706 = vmatmul.bf16.gmra.mxu0 %v564
      %v707 = vpop.f32.mrf.mxu0
      %v708 = vadd.f32 0.0, %v707
      %v709 = vpop.f32.mrf.mxu0
      %710 = vdwg.mxu0
      %v711 = vld [vmem:[%s2] sm:$0xff]
      %713 = vset.pattern.permute.xlu0 0
      %714 = vperm.xlu0 %713, %v711
      %v715 = vpop.permute.xlu0 %714
      %v717 = vmul.f32 %v604, %v715
      %v718 = vmul.f32 %v617, %v715
      %v719 = vmul.f32 %v630, %v715
      %v720 = vmul.f32 %v643, %v715
      %v721 = vmul.f32 %v656, %v715
      %v722 = vmul.f32 %v669, %v715
      %v723 = vmul.f32 %v682, %v715
      %v724 = vmul.f32 %v695, %v715
      %v725 = vmul.f32 %v708, %v715
      %v726 = vld [vmem:[%s3] sm:$0xff]
      %728 = vset.pattern.permute.xlu0 0
      %729 = vperm.xlu0 %728, %v726
      %v730 = vpop.permute.xlu0 %729
      %v732 = vadd.f32 %v717, %v730
      %v733 = vadd.f32 %v718, %v730
      %v734 = vadd.f32 %v719, %v730
      %v735 = vadd.f32 %v720, %v730
      %v736 = vadd.f32 %v721, %v730
      %v737 = vadd.f32 %v722, %v730
      %v738 = vadd.f32 %v723, %v730
      %v739 = vadd.f32 %v724, %v730
      %v740 = vadd.f32 %v725, %v730
      %741 = vst [vmem:[%s197] sm:$0xff] %v732
      %742 = vst [vmem:[%s197 + $0x8] sm:$0xff] %v733
      %743 = vst [vmem:[%s197 + $0x10] sm:$0xff] %v734
      %744 = vst [vmem:[%s197 + $0x18] sm:$0xff] %v735
      %745 = vst [vmem:[%s197 + $0x20] sm:$0xff] %v736
      %746 = vst [vmem:[%s197 + $0x28] sm:$0xff] %v737
      %747 = vst [vmem:[%s197 + $0x30] sm:$0xff] %v738
      %748 = vst [vmem:[%s197 + $0x38] sm:$0xff] %v739
      %vm749 = vcmask 523264
      %750 = vst.msk [vmem:[%s197 + $0x40] sm:$0xff] %vm749, %v740
      %p751 = scmp.lt.s32.totalorder %s15, 1
      %s752 = scalar_select %p751, %s15, 1
      %s753 = smul.addr %s752, 9
      %s754 = smul.addr %s753, 8
      %s755 = scalar_lea.vmem %s4, %s754
      // Predicated region
      $region37: #{decoder_forward.13} parent=35 // pred_check
        %p756 = pneg %p122
      $region38: #{decoder_forward.13} parent=35 // pred_check_branch
        %758 = sbr.rel (%p756) target = $region40
      $region39: #{decoder_forward.13} parent=35 // pred_region
        _
      $region40: #{decoder_forward.13} parent=35 // pred_fallthru
        _
    $region36: #{decoder_forward.13} parent=5 // pred_fallthru
      _
    %p759 = scmp.le.s32.totalorder 2, %s10
    // Predicated region
    $region41: #{decoder_forward.13} parent=5 // pred_check
      %p760 = pneg %p759
    $region42: #{decoder_forward.13} parent=5 // pred_check_branch
      %762 = sbr.rel (%p760) target = $region44
    $region43: #{decoder_forward.13} parent=5 // pred_region
      %s763 = ssub.s32 %s10, 2
      // Predicated region
      $region45: #{decoder_forward.13} parent=43 // pred_check
        %p764 = pneg %p128
      $region46: #{decoder_forward.13} parent=43 // pred_check_branch
        %766 = sbr.rel (%p764) target = $region48
      $region47: #{decoder_forward.13} parent=43 // pred_region
        %p767 = scmp.lt.s32.totalorder %s16, 1
        %s768 = scalar_select %p767, %s16, 1
        %s769 = smul.addr %s768, 9
        %s770 = smul.addr %s769, 8
        %s771 = scalar_lea.vmem %s4, %s770
      $region48: #{decoder_forward.13} parent=43 // pred_fallthru
        _
    $region44: #{decoder_forward.13} parent=5 // pred_fallthru
      _
  $region6: #{decoder_forward.13} parent=0 // loop_footer
    %s14 = sadd.s32 1, %s10
  $region7: #{decoder_forward.13} parent=0 // loop_footer_branch
    %9 = sbr.rel target = $region3
  $region8: #{decoder_forward.13} parent=0 // loop_exit
    _

</llo_original>
